<compile_context>
chip_gen: v7x
topology: tpu7x:2x2x1
jax: 0.10.0
libtpu: 0.0.40
codegen_flags: <defaults>
</compile_context>

<pallas_src>
import functools
import math

import jax
import jax.numpy as jnp
import numpy as np
from jax.experimental import pallas as pl
from jax.experimental.pallas import tpu as pltpu


# ----------------------------- in-kernel helpers -----------------------------

_SQRT_2_OVER_PI = math.sqrt(2.0 / math.pi)


def _gelu_tanh(x):
    # tanh-approximation GELU (EUP slot); |err| vs erf-GELU < ~1e-3 in f32.
    return 0.5 * x * (1.0 + jnp.tanh(_SQRT_2_OVER_PI * (x + 0.044715 * x * x * x)))


def _layer_norm(x, w, b, eps=1e-5):
    mu = jnp.mean(x, axis=-1, keepdims=True)
    var = jnp.mean(jnp.square(x - mu), axis=-1, keepdims=True)
    return (x - mu) * jax.lax.rsqrt(var + eps) * w + b


# --------------------------------- the kernel --------------------------------

def transformer_kernel(
    x_ref, pe_ref, emb_wT_ref, emb_sm_ref,
    qkv_wT_ref, out_wh_ref, ff1_wT_ref, ff2_wT_ref, lyr_sm_ref,
    dec1_wT_ref, dec2_wT_ref, dec_sm_ref,
    out_ref,
    y_ref,
    *, B_BLK, S, D, H, L,
):
    l = pl.program_id(1)
    hd = D // H
    rows = B_BLK * S
    D3 = 3 * D
    Dff = 2 * D
    Dh = D // 2

    # ---- l == 0: embedding Linear -> LayerNorm -> ReLU -> (+PE) into scratch ----
    @pl.when(l == 0)
    def _embed():
        emb_sm = emb_sm_ref[...]                               # (3, D) f32
        x = x_ref[...].astype(jnp.bfloat16)                    # (rows, input_dim)
        e = jnp.dot(x, emb_wT_ref[...],
                    preferred_element_type=jnp.float32) + emb_sm[0:1, :]
        e = _layer_norm(e, emb_sm[1:2, :], emb_sm[2:3, :])
        e = jnp.maximum(e, 0.0)
        # single full-block store of (embedding + positional encoding)
        y_ref[...] = (e.reshape(B_BLK, S, D) + pe_ref[...]).reshape(rows, D)

    # ---- unpack the packed per-layer small params (one DMA) ----
    sm = lyr_sm_ref[...]                                       # (8, 3D) f32
    qkv_b = sm[0:1, :]                                         # (1, 3D)
    out_b = sm[1:2, 0:D]
    ff1_b = sm[2:3, 0:Dff]
    ff2_b = sm[3:4, 0:D]
    n1w, n1b = sm[4:5, 0:D], sm[5:6, 0:D]
    n2w, n2b = sm[6:7, 0:D], sm[7:8, 0:D]

    y = y_ref[...]                                             # (rows, D) f32

    # --- self-attention sublayer: y = y + W_out * MHA(norm1(y)) ---
    n1 = _layer_norm(y, n1w, n1b).astype(jnp.bfloat16)
    # 1/sqrt(hd) already folded into the Q rows of the weight/bias (wrapper).
    qkv = jnp.dot(n1, qkv_wT_ref[...],
                  preferred_element_type=jnp.float32) + qkv_b  # (rows, 3D) f32

    def heads(col0):
        # assemble a head-major batch (H*B_BLK, S, hd); major-axis concat only,
        # one wide bf16 cast per tensor (no per-head narrow casts).
        hs = [qkv[:, col0 + h * hd: col0 + (h + 1) * hd].reshape(B_BLK, S, hd)
              for h in range(H)]
        return jnp.concatenate(hs, axis=0).astype(jnp.bfloat16)

    qh, kh, vh = heads(0), heads(D), heads(2 * D)

    # one batched einsum pair for all heads and batches
    s = jnp.einsum('bqd,bkd->bqk', qh, kh,
                   preferred_element_type=jnp.float32)         # (H*B_BLK, S, S)
    s = s - jnp.max(s, axis=-1, keepdims=True)
    p = jnp.exp(s)
    p = p * pl.reciprocal(jnp.sum(p, axis=-1, keepdims=True), approx=True)
    o = jnp.einsum('bqk,bkd->bqd', p.astype(jnp.bfloat16), vh,
                   preferred_element_type=jnp.float32)         # (H*B_BLK, S, hd)

    # out-projection folded into one batched matmul over heads + leading-axis sum
    o = o.reshape(H, rows, hd).astype(jnp.bfloat16)            # head-major
    attn = jnp.einsum('hrd,hdo->hro', o, out_wh_ref[...],
                      preferred_element_type=jnp.float32).sum(axis=0)   # (rows, D)
    y = y + attn + out_b

    # --- feed-forward sublayer: y = y + W2 gelu(W1 norm2(y)) ---
    n2 = _layer_norm(y, n2w, n2b).astype(jnp.bfloat16)
    hmid = _gelu_tanh(jnp.dot(n2, ff1_wT_ref[...],
                              preferred_element_type=jnp.float32) + ff1_b)
    y = y + jnp.dot(hmid.astype(jnp.bfloat16), ff2_wT_ref[...],
                    preferred_element_type=jnp.float32) + ff2_b
    y_ref[...] = y

    # ---- l == L-1: last-timestep gather + decoder head, lane-dense output ----
    @pl.when(l == L - 1)
    def _decode():
        dec_sm = dec_sm_ref[...]                               # (4, 128) f32
        last = y.reshape(B_BLK, S, D)[:, S - 1, :]             # (B_BLK, D)
        d1 = jnp.dot(last.astype(jnp.bfloat16), dec1_wT_ref[...],
                     preferred_element_type=jnp.float32) + dec_sm[0:1, 0:Dh]
        d1 = _layer_norm(d1, dec_sm[1:2, 0:Dh], dec_sm[2:3, 0:Dh])
        d1 = jnp.maximum(d1, 0.0)
        # dec2 weight is zero-padded to 128 output lanes -> lane-dense store;
        # the real scalar result lives in lane 0.
        out_ref[...] = jnp.dot(d1.astype(jnp.bfloat16), dec2_wT_ref[...],
                               preferred_element_type=jnp.float32) + dec_sm[3:4, :]


# --------------------------------- wrapper ------------------------------------

def transformer_forward(x, params, *, B, S, D, H, L, B_BLK=None):
    input_dim = x.shape[-1]
    if B_BLK is None:
        B_BLK = B          # nb = 1: stream per-layer weights exactly once
    assert B % B_BLK == 0 and S % 8 == 0 and D % H == 0
    nb = B // B_BLK        # on v7x pick B_BLK = B // 2 so nb == 2 uses both TCs
    rows_blk = B_BLK * S
    D3, Dff, Dh = 3 * D, 2 * D, D // 2
    hd = D // H

    flat_x = x.reshape(B * S, input_dim).astype(jnp.float32)

    inputs = [
        flat_x, params["pe"], params["emb_wT"], params["emb_sm"],
        params["qkv_wT"], params["out_wh"], params["ff1_wT"], params["ff2_wT"],
        params["lyr_sm"],
        params["dec1_wT"], params["dec2_wT"], params["dec_sm"],
    ]

    def _const(shape):                       # fetched once, resident across the grid
        return pl.BlockSpec(shape, lambda i, l: (0,) * len(shape))

    def _per_layer(shape):                   # (L, ...) stack -> per-layer block
        return pl.BlockSpec((None,) + shape, lambda i, l: (l,) + (0,) * len(shape))

    in_specs = [
        pl.BlockSpec((rows_blk, input_dim), lambda i, l: (i, 0)),   # x (batch block)
        _const((S, D)),                                             # positional enc.
        _const((input_dim, D)), _const((3, D)),                     # embedding
        _per_layer((D, D3)),                                        # qkv weight
        _per_layer((H, hd, D)),                                     # out-proj (per head)
        _per_layer((D, Dff)), _per_layer((Dff, D)),                 # ffn weights
        _per_layer((8, D3)),                                        # packed small params
        _const((D, Dh)), _const((Dh, 128)), _const((4, 128)),       # decoder head
    ]
    out_spec = pl.BlockSpec((None, B_BLK, 128), lambda i, l: (i, 0, 0))

    # ---- advisory cost estimate (per-layer weights are streamed nb times) ----
    rows_total = B * S
    mm_flops = 2 * rows_total * input_dim * D
    mm_flops += 2 * L * rows_total * (D * D3 + D * D + D * Dff + Dff * D)
    attn_flops = 2 * L * B * H * 2 * S * S * hd
    dec_flops = 2 * B * (D * Dh + Dh * 128)
    transcend = L * (rows_total * Dff + B * H * S * S)
    layer_bytes = sum(int(params[k].size) * params[k].dtype.itemsize
                      for k in ("qkv_wT", "out_wh", "ff1_wT", "ff2_wT", "lyr_sm"))
    const_bytes = sum(int(params[k].size) * params[k].dtype.itemsize
                      for k in ("pe", "emb_wT", "emb_sm", "dec1_wT", "dec2_wT", "dec_sm"))
    bytes_accessed = int(flat_x.size) * 4 + nb * layer_bytes + const_bytes + B * 128 * 4
    cost = pl.CostEstimate(flops=int(mm_flops + attn_flops + dec_flops),
                           transcendentals=int(transcend),
                           bytes_accessed=int(bytes_accessed))

    kernel = functools.partial(transformer_kernel, B_BLK=B_BLK, S=S, D=D, H=H, L=L)
    out_padded = pl.pallas_call(
        kernel,
        out_shape=jax.ShapeDtypeStruct((nb, B_BLK, 128), jnp.float32),
        grid_spec=pltpu.PrefetchScalarGridSpec(
            num_scalar_prefetch=0,
            grid=(nb, L),
            in_specs=in_specs,
            out_specs=out_spec,
            scratch_shapes=[pltpu.VMEM((rows_blk, D), jnp.float32)],
        ),
        compiler_params=pltpu.CompilerParams(
            dimension_semantics=("parallel", "arbitrary"),
            # default scoped-VMEM limit is ample at these block sizes; for large
            # rows_blk raise it on v5e/v6e (128 MiB phys) and keep <=~40 MiB on
            # v7x (64 MiB phys).
        ),
        cost_estimate=cost,
    )(*inputs)

    return out_padded.reshape(B, 128)[:, :1]


# ------------------------------ parameter init --------------------------------

def _xavier(key, out_dim, in_dim):
    limit = math.sqrt(6.0 / (in_dim + out_dim))
    return jax.random.uniform(key, (out_dim, in_dim), jnp.float32, -limit, limit)


def _bias(key, out_dim, fan_in):
    bound = 1.0 / math.sqrt(fan_in)
    return jax.random.uniform(key, (out_dim,), jnp.float32, -bound, bound)


def init_params(key, *, input_dim, D, H, L, S):
    Dh, Dff, D3, hd = D // 2, 2 * D, 3 * D, D // H
    scale = 1.0 / math.sqrt(hd)
    keys = iter(jax.random.split(key, 6 + 8 * L))

    p = {}
    # embedding: Linear(input_dim -> D) + LayerNorm (+ReLU), small params packed (3, D)
    emb_w = _xavier(next(keys), D, input_dim)                  # (D, input_dim)
    p["emb_wT"] = emb_w.T.astype(jnp.bfloat16)                 # (input_dim, D)
    emb_sm = jnp.zeros((3, D), jnp.float32)
    emb_sm = emb_sm.at[0].set(_bias(next(keys), D, input_dim)) # bias
    emb_sm = emb_sm.at[1].set(1.0)                             # LN weight (LN bias = 0)
    p["emb_sm"] = emb_sm

    # encoder layers: big weights bf16, tiny per-layer params packed into (8, 3D)
    qkv_wT, out_wh, ff1_wT, ff2_wT, lyr_sm = [], [], [], [], []
    for _ in range(L):
        w_qkv = _xavier(next(keys), D3, D)                     # in_proj_weight (3D, D)
        b_qkv = _bias(next(keys), D3, D)
        # fold the 1/sqrt(hd) attention scale into the Q projection
        w_qkv = w_qkv.at[:D].multiply(scale)
        b_qkv = b_qkv.at[:D].multiply(scale)
        w_out = _xavier(next(keys), D, D)                      # out_proj.weight (D, D)
        b_out = _bias(next(keys), D, D)
        w_ff1 = _xavier(next(keys), Dff, D); b_ff1 = _bias(next(keys), Dff, D)
        w_ff2 = _xavier(next(keys), D, Dff); b_ff2 = _bias(next(keys), D, Dff)

        qkv_wT.append(w_qkv.T)                                 # (D, 3D)
        out_wh.append(w_out.T.reshape(H, hd, D))               # (H, hd, D), head-major rows
        ff1_wT.append(w_ff1.T)                                 # (D, 2D)
        ff2_wT.append(w_ff2.T)                                 # (2D, D)

        sm = jnp.zeros((8, D3), jnp.float32)
        sm = sm.at[0, :D3].set(b_qkv)
        sm = sm.at[1, :D].set(b_out)
        sm = sm.at[2, :Dff].set(b_ff1)
        sm = sm.at[3, :D].set(b_ff2)
        sm = sm.at[4, :D].set(1.0)                             # norm1 weight
        sm = sm.at[6, :D].set(1.0)                             # norm2 weight
        lyr_sm.append(sm)

    p["qkv_wT"] = jnp.stack(qkv_wT).astype(jnp.bfloat16)       # (L, D, 3D)
    p["out_wh"] = jnp.stack(out_wh).astype(jnp.bfloat16)       # (L, H, hd, D)
    p["ff1_wT"] = jnp.stack(ff1_wT).astype(jnp.bfloat16)       # (L, D, 2D)
    p["ff2_wT"] = jnp.stack(ff2_wT).astype(jnp.bfloat16)       # (L, 2D, D)
    p["lyr_sm"] = jnp.stack(lyr_sm)                            # (L, 8, 3D) f32

    # decoder head: Linear(D->Dh) + LayerNorm + Linear(Dh->1), padded to 128 lanes
    dec1_w = _xavier(next(keys), Dh, D)                        # (Dh, D)
    p["dec1_wT"] = dec1_w.T.astype(jnp.bfloat16)               # (D, Dh)
    dec2_w = _xavier(next(keys), 1, Dh)                        # (1, Dh)
    dec2_b = _bias(next(keys), 1, Dh)
    p["dec2_wT"] = (jnp.zeros((Dh, 128), jnp.float32)
                    .at[:, 0].set(dec2_w[0]).astype(jnp.bfloat16))
    dec_sm = jnp.zeros((4, 128), jnp.float32)
    dec_sm = dec_sm.at[0, :Dh].set(_bias(next(keys), Dh, D))   # dec1 bias
    dec_sm = dec_sm.at[1, :Dh].set(1.0)                        # LN weight (bias row 2 = 0)
    dec_sm = dec_sm.at[3, 0].set(dec2_b[0])                    # dec2 bias
    p["dec_sm"] = dec_sm

    # sinusoidal positional encoding (first S rows of the (max_len, D) buffer)
    position = np.arange(S, dtype=np.float32)[:, None]
    div_term = np.exp(np.arange(0, D, 2, dtype=np.float32) * (-np.log(10000.0) / D))
    pe = np.zeros((S, D), dtype=np.float32)
    pe[:, 0::2] = np.sin(position * div_term)
    pe[:, 1::2] = np.cos(position * div_term)
    p["pe"] = jnp.asarray(pe)
    return p


# ----------------------------------- main --------------------------------------

if __name__ == "__main__":
    # Small shapes consistent with the module's forward: src is (B, S, input_dim).
    B, S, INPUT_DIM = 4, 8, 16
    D, H, L = 32, 4, 2          # d_model, nhead, num_layers (scaled down)

    key = jax.random.PRNGKey(0)
    pkey, xkey = jax.random.split(key)
    params = init_params(pkey, input_dim=INPUT_DIM, D=D, H=H, L=L, S=S)
    src = jax.random.normal(xkey, (B, S, INPUT_DIM), jnp.float32)

    out = transformer_forward(src, params, B=B, S=S, D=D, H=H, L=L)
    out = jax.block_until_ready(out)
    assert out.shape == (B, 1)
    assert bool(jnp.all(jnp.isfinite(out)))
    print("KERNEL_OK")
</pallas_src>

<mosaic_0001>
module attributes {stable_mosaic.version = 11 : i64} {
  func.func @transformer_kernel(%arg0: i32, %arg1: i32, %arg2: memref<32x16xf32, #tpu.memory_space<vmem>>, %arg3: memref<8x32xf32, #tpu.memory_space<vmem>>, %arg4: memref<16x32xbf16, #tpu.memory_space<vmem>>, %arg5: memref<3x32xf32, #tpu.memory_space<vmem>>, %arg6: memref<1x32x96xbf16, #tpu.memory_space<vmem>>, %arg7: memref<1x4x8x32xbf16, #tpu.memory_space<vmem>>, %arg8: memref<1x32x64xbf16, #tpu.memory_space<vmem>>, %arg9: memref<1x64x32xbf16, #tpu.memory_space<vmem>>, %arg10: memref<1x8x96xf32, #tpu.memory_space<vmem>>, %arg11: memref<32x16xbf16, #tpu.memory_space<vmem>>, %arg12: memref<16x128xbf16, #tpu.memory_space<vmem>>, %arg13: memref<4x128xf32, #tpu.memory_space<vmem>>, %arg14: memref<1x4x128xf32, #tpu.memory_space<vmem>>, %arg15: memref<32x32xf32, #tpu.memory_space<vmem>>) attributes {dimension_semantics = [#tpu.dimension_semantics<parallel>, #tpu.dimension_semantics<arbitrary>], iteration_bounds = array<i64: 1, 2>, scalar_prefetch = 0 : i64, scratch_operands = 1 : i64, tpu.core_type = #tpu.core_type<tc>, window_params = [{transform_indices = @transform_0, window_bounds = array<i64: 32, 16>}, {pipeline_mode = #tpu.pipeline_mode<synchronous>, transform_indices = @transform_1, window_bounds = array<i64: 8, 32>}, {pipeline_mode = #tpu.pipeline_mode<synchronous>, transform_indices = @transform_2, window_bounds = array<i64: 16, 32>}, {pipeline_mode = #tpu.pipeline_mode<synchronous>, transform_indices = @transform_3, window_bounds = array<i64: 3, 32>}, {transform_indices = @transform_4, window_bounds = array<i64: 1, 32, 96>}, {transform_indices = @transform_5, window_bounds = array<i64: 1, 4, 8, 32>}, {transform_indices = @transform_6, window_bounds = array<i64: 1, 32, 64>}, {transform_indices = @transform_7, window_bounds = array<i64: 1, 64, 32>}, {transform_indices = @transform_8, window_bounds = array<i64: 1, 8, 96>}, {pipeline_mode = #tpu.pipeline_mode<synchronous>, transform_indices = @transform_9, window_bounds = array<i64: 32, 16>}, {pipeline_mode = #tpu.pipeline_mode<synchronous>, transform_indices = @transform_10, window_bounds = array<i64: 16, 128>}, {pipeline_mode = #tpu.pipeline_mode<synchronous>, transform_indices = @transform_11, window_bounds = array<i64: 4, 128>}, {transform_indices = @transform_12, window_bounds = array<i64: 1, 4, 128>}]} {
    %c0_i32 = arith.constant 0 : i32
    %0 = arith.cmpi eq, %arg1, %c0_i32 : i32
    %1 = arith.extui %0 : i1 to i32
    %c0_i32_0 = arith.constant 0 : i32
    %2 = arith.cmpi ne, %1, %c0_i32_0 : i32
    scf.if %2 {
      %c0_43 = arith.constant 0 : index
      %c0_44 = arith.constant 0 : index
      %146 = vector.load %arg5[%c0_43, %c0_44] : memref<3x32xf32, #tpu.memory_space<vmem>>, vector<3x32xf32>
      %c0_45 = arith.constant 0 : index
      %c0_46 = arith.constant 0 : index
      %147 = vector.load %arg2[%c0_45, %c0_46] : memref<32x16xf32, #tpu.memory_space<vmem>>, vector<32x16xf32>
      %148 = arith.truncf %147 : vector<32x16xf32> to vector<32x16xbf16>
      %c0_47 = arith.constant 0 : index
      %c0_48 = arith.constant 0 : index
      %149 = vector.load %arg4[%c0_47, %c0_48] : memref<16x32xbf16, #tpu.memory_space<vmem>>, vector<16x32xbf16>
      %cst_49 = arith.constant dense<0.000000e+00> : vector<32x32xf32>
      %150 = tpu.matmul %148, %149, %cst_49 {dimension_numbers = #tpu.dot_dimension_numbers<[1], [0], [0], [1], [0, 0, 1, 1], [], []>} : vector<32x16xbf16>, vector<16x32xbf16>, vector<32x32xf32> -> vector<32x32xf32>
      %151 = vector.extract_strided_slice %146 {offsets = [0, 0], sizes = [1, 32], strides = [1, 1]} : vector<3x32xf32> to vector<1x32xf32>
      %152 = vector.broadcast %151 : vector<1x32xf32> to vector<32x32xf32>
      %153 = arith.addf %150, %152 : vector<32x32xf32>
      %154 = vector.extract_strided_slice %146 {offsets = [1, 0], sizes = [1, 32], strides = [1, 1]} : vector<3x32xf32> to vector<1x32xf32>
      %155 = vector.extract_strided_slice %146 {offsets = [2, 0], sizes = [1, 32], strides = [1, 1]} : vector<3x32xf32> to vector<1x32xf32>
      %cst_50 = arith.constant dense<0.000000e+00> : vector<32xf32>
      %156 = vector.multi_reduction <add>, %153, %cst_50 [1] : vector<32x32xf32> to vector<32xf32>
      %157 = vector.shape_cast %156 : vector<32xf32> to vector<32x1xf32>
      %cst_51 = arith.constant 3.200000e+01 : f32
      %158 = vector.broadcast %cst_51 : f32 to vector<32x1xf32>
      %159 = arith.divf %157, %158 : vector<32x1xf32>
      %160 = vector.broadcast %159 : vector<32x1xf32> to vector<32x32xf32>
      %161 = arith.subf %153, %160 : vector<32x32xf32>
      %162 = arith.mulf %161, %161 : vector<32x32xf32>
      %cst_52 = arith.constant dense<0.000000e+00> : vector<32xf32>
      %163 = vector.multi_reduction <add>, %162, %cst_52 [1] : vector<32x32xf32> to vector<32xf32>
      %164 = vector.shape_cast %163 : vector<32xf32> to vector<32x1xf32>
      %cst_53 = arith.constant 3.200000e+01 : f32
      %165 = vector.broadcast %cst_53 : f32 to vector<32x1xf32>
      %166 = arith.divf %164, %165 : vector<32x1xf32>
      %167 = vector.broadcast %159 : vector<32x1xf32> to vector<32x32xf32>
      %168 = arith.subf %153, %167 : vector<32x32xf32>
      %cst_54 = arith.constant 9.99999974E-6 : f32
      %169 = vector.broadcast %cst_54 : f32 to vector<32x1xf32>
      %170 = arith.addf %166, %169 : vector<32x1xf32>
      %171 = math.rsqrt %170 : vector<32x1xf32>
      %172 = vector.broadcast %171 : vector<32x1xf32> to vector<32x32xf32>
      %173 = arith.mulf %168, %172 : vector<32x32xf32>
      %174 = vector.broadcast %154 : vector<1x32xf32> to vector<32x32xf32>
      %175 = arith.mulf %173, %174 : vector<32x32xf32>
      %176 = vector.broadcast %155 : vector<1x32xf32> to vector<32x32xf32>
      %177 = arith.addf %175, %176 : vector<32x32xf32>
      %cst_55 = arith.constant 0.000000e+00 : f32
      %178 = vector.broadcast %cst_55 : f32 to vector<32x32xf32>
      %179 = arith.maximumf %177, %178 : vector<32x32xf32>
      %180 = vector.shape_cast %179 : vector<32x32xf32> to vector<4x8x32xf32>
      %c0_56 = arith.constant 0 : index
      %c0_57 = arith.constant 0 : index
      %181 = vector.load %arg3[%c0_56, %c0_57] : memref<8x32xf32, #tpu.memory_space<vmem>>, vector<8x32xf32>
      %182 = vector.shape_cast %181 : vector<8x32xf32> to vector<1x8x32xf32>
      %183 = vector.broadcast %182 : vector<1x8x32xf32> to vector<4x8x32xf32>
      %184 = arith.addf %180, %183 : vector<4x8x32xf32>
      %185 = vector.shape_cast %184 : vector<4x8x32xf32> to vector<32x32xf32>
      %c0_58 = arith.constant 0 : index
      %c0_59 = arith.constant 0 : index
      %186 = vector.load %arg15[%c0_58, %c0_59] : memref<32x32xf32, #tpu.memory_space<vmem>>, vector<32x32xf32>
      tpu.vector_store %arg15[%c0_58, %c0_59], %185 {strides = array<i32>} : memref<32x32xf32, #tpu.memory_space<vmem>>, vector<32x32xf32>,
    } else {
    }
    %c0 = arith.constant 0 : index
    %c0_1 = arith.constant 0 : index
    %c0_2 = arith.constant 0 : index
    %3 = vector.load %arg10[%c0, %c0_1, %c0_2] : memref<1x8x96xf32, #tpu.memory_space<vmem>>, vector<1x8x96xf32>
    %4 = vector.shape_cast %3 : vector<1x8x96xf32> to vector<8x96xf32>
    %5 = vector.extract_strided_slice %4 {offsets = [0, 0], sizes = [1, 96], strides = [1, 1]} : vector<8x96xf32> to vector<1x96xf32>
    %6 = vector.extract_strided_slice %4 {offsets = [1, 0], sizes = [1, 32], strides = [1, 1]} : vector<8x96xf32> to vector<1x32xf32>
    %7 = vector.extract_strided_slice %4 {offsets = [2, 0], sizes = [1, 64], strides = [1, 1]} : vector<8x96xf32> to vector<1x64xf32>
    %8 = vector.extract_strided_slice %4 {offsets = [3, 0], sizes = [1, 32], strides = [1, 1]} : vector<8x96xf32> to vector<1x32xf32>
    %9 = vector.extract_strided_slice %4 {offsets = [4, 0], sizes = [1, 32], strides = [1, 1]} : vector<8x96xf32> to vector<1x32xf32>
    %10 = vector.extract_strided_slice %4 {offsets = [5, 0], sizes = [1, 32], strides = [1, 1]} : vector<8x96xf32> to vector<1x32xf32>
    %11 = vector.extract_strided_slice %4 {offsets = [6, 0], sizes = [1, 32], strides = [1, 1]} : vector<8x96xf32> to vector<1x32xf32>
    %12 = vector.extract_strided_slice %4 {offsets = [7, 0], sizes = [1, 32], strides = [1, 1]} : vector<8x96xf32> to vector<1x32xf32>
    %c0_3 = arith.constant 0 : index
    %c0_4 = arith.constant 0 : index
    %13 = vector.load %arg15[%c0_3, %c0_4] : memref<32x32xf32, #tpu.memory_space<vmem>>, vector<32x32xf32>
    %cst = arith.constant dense<0.000000e+00> : vector<32xf32>
    %14 = vector.multi_reduction <add>, %13, %cst [1] : vector<32x32xf32> to vector<32xf32>
    %15 = vector.shape_cast %14 : vector<32xf32> to vector<32x1xf32>
    %cst_5 = arith.constant 3.200000e+01 : f32
    %16 = vector.broadcast %cst_5 : f32 to vector<32x1xf32>
    %17 = arith.divf %15, %16 : vector<32x1xf32>
    %18 = vector.broadcast %17 : vector<32x1xf32> to vector<32x32xf32>
    %19 = arith.subf %13, %18 : vector<32x32xf32>
    %20 = arith.mulf %19, %19 : vector<32x32xf32>
    %cst_6 = arith.constant dense<0.000000e+00> : vector<32xf32>
    %21 = vector.multi_reduction <add>, %20, %cst_6 [1] : vector<32x32xf32> to vector<32xf32>
    %22 = vector.shape_cast %21 : vector<32xf32> to vector<32x1xf32>
    %cst_7 = arith.constant 3.200000e+01 : f32
    %23 = vector.broadcast %cst_7 : f32 to vector<32x1xf32>
    %24 = arith.divf %22, %23 : vector<32x1xf32>
    %25 = vector.broadcast %17 : vector<32x1xf32> to vector<32x32xf32>
    %26 = arith.subf %13, %25 : vector<32x32xf32>
    %cst_8 = arith.constant 9.99999974E-6 : f32
    %27 = vector.broadcast %cst_8 : f32 to vector<32x1xf32>
    %28 = arith.addf %24, %27 : vector<32x1xf32>
    %29 = math.rsqrt %28 : vector<32x1xf32>
    %30 = vector.broadcast %29 : vector<32x1xf32> to vector<32x32xf32>
    %31 = arith.mulf %26, %30 : vector<32x32xf32>
    %32 = vector.broadcast %9 : vector<1x32xf32> to vector<32x32xf32>
    %33 = arith.mulf %31, %32 : vector<32x32xf32>
    %34 = vector.broadcast %10 : vector<1x32xf32> to vector<32x32xf32>
    %35 = arith.addf %33, %34 : vector<32x32xf32>
    %36 = arith.truncf %35 : vector<32x32xf32> to vector<32x32xbf16>
    %c0_9 = arith.constant 0 : index
    %c0_10 = arith.constant 0 : index
    %c0_11 = arith.constant 0 : index
    %37 = vector.load %arg6[%c0_9, %c0_10, %c0_11] : memref<1x32x96xbf16, #tpu.memory_space<vmem>>, vector<1x32x96xbf16>
    %38 = vector.shape_cast %37 : vector<1x32x96xbf16> to vector<32x96xbf16>
    %cst_12 = arith.constant dense<0.000000e+00> : vector<32x96xf32>
    %39 = tpu.matmul %36, %38, %cst_12 {dimension_numbers = #tpu.dot_dimension_numbers<[1], [0], [0], [1], [0, 0, 1, 1], [], []>} : vector<32x32xbf16>, vector<32x96xbf16>, vector<32x96xf32> -> vector<32x96xf32>
    %40 = vector.broadcast %5 : vector<1x96xf32> to vector<32x96xf32>
    %41 = arith.addf %39, %40 : vector<32x96xf32>
    %42 = vector.extract_strided_slice %41 {offsets = [0, 0], sizes = [32, 8], strides = [1, 1]} : vector<32x96xf32> to vector<32x8xf32>
    %43 = vector.shape_cast %42 : vector<32x8xf32> to vector<4x8x8xf32>
    %44 = vector.extract_strided_slice %41 {offsets = [0, 8], sizes = [32, 8], strides = [1, 1]} : vector<32x96xf32> to vector<32x8xf32>
    %45 = vector.shape_cast %44 : vector<32x8xf32> to vector<4x8x8xf32>
    %46 = vector.extract_strided_slice %41 {offsets = [0, 16], sizes = [32, 8], strides = [1, 1]} : vector<32x96xf32> to vector<32x8xf32>
    %47 = vector.shape_cast %46 : vector<32x8xf32> to vector<4x8x8xf32>
    %48 = vector.extract_strided_slice %41 {offsets = [0, 24], sizes = [32, 8], strides = [1, 1]} : vector<32x96xf32> to vector<32x8xf32>
    %49 = vector.shape_cast %48 : vector<32x8xf32> to vector<4x8x8xf32>
    %50 = tpu.concatenate %43, %45, %47, %49 in 0 : vector<4x8x8xf32>, vector<4x8x8xf32>, vector<4x8x8xf32>, vector<4x8x8xf32> -> vector<16x8x8xf32>
    %51 = arith.truncf %50 : vector<16x8x8xf32> to vector<16x8x8xbf16>
    %52 = vector.extract_strided_slice %41 {offsets = [0, 32], sizes = [32, 8], strides = [1, 1]} : vector<32x96xf32> to vector<32x8xf32>
    %53 = vector.shape_cast %52 : vector<32x8xf32> to vector<4x8x8xf32>
    %54 = vector.extract_strided_slice %41 {offsets = [0, 40], sizes = [32, 8], strides = [1, 1]} : vector<32x96xf32> to vector<32x8xf32>
    %55 = vector.shape_cast %54 : vector<32x8xf32> to vector<4x8x8xf32>
    %56 = vector.extract_strided_slice %41 {offsets = [0, 48], sizes = [32, 8], strides = [1, 1]} : vector<32x96xf32> to vector<32x8xf32>
    %57 = vector.shape_cast %56 : vector<32x8xf32> to vector<4x8x8xf32>
    %58 = vector.extract_strided_slice %41 {offsets = [0, 56], sizes = [32, 8], strides = [1, 1]} : vector<32x96xf32> to vector<32x8xf32>
    %59 = vector.shape_cast %58 : vector<32x8xf32> to vector<4x8x8xf32>
    %60 = tpu.concatenate %53, %55, %57, %59 in 0 : vector<4x8x8xf32>, vector<4x8x8xf32>, vector<4x8x8xf32>, vector<4x8x8xf32> -> vector<16x8x8xf32>
    %61 = arith.truncf %60 : vector<16x8x8xf32> to vector<16x8x8xbf16>
    %62 = vector.extract_strided_slice %41 {offsets = [0, 64], sizes = [32, 8], strides = [1, 1]} : vector<32x96xf32> to vector<32x8xf32>
    %63 = vector.shape_cast %62 : vector<32x8xf32> to vector<4x8x8xf32>
    %64 = vector.extract_strided_slice %41 {offsets = [0, 72], sizes = [32, 8], strides = [1, 1]} : vector<32x96xf32> to vector<32x8xf32>
    %65 = vector.shape_cast %64 : vector<32x8xf32> to vector<4x8x8xf32>
    %66 = vector.extract_strided_slice %41 {offsets = [0, 80], sizes = [32, 8], strides = [1, 1]} : vector<32x96xf32> to vector<32x8xf32>
    %67 = vector.shape_cast %66 : vector<32x8xf32> to vector<4x8x8xf32>
    %68 = vector.extract_strided_slice %41 {offsets = [0, 88], sizes = [32, 8], strides = [1, 1]} : vector<32x96xf32> to vector<32x8xf32>
    %69 = vector.shape_cast %68 : vector<32x8xf32> to vector<4x8x8xf32>
    %70 = tpu.concatenate %63, %65, %67, %69 in 0 : vector<4x8x8xf32>, vector<4x8x8xf32>, vector<4x8x8xf32>, vector<4x8x8xf32> -> vector<16x8x8xf32>
    %71 = arith.truncf %70 : vector<16x8x8xf32> to vector<16x8x8xbf16>
    "tpu.trace_start"() <{level = 10 : i32, message = "bqd,bkd->bqk"}> : () -> ()
    %cst_13 = arith.constant dense<0.000000e+00> : vector<16x8x8xf32>
    %72 = tpu.matmul %51, %61, %cst_13 {dimension_numbers = #tpu.dot_dimension_numbers<[2], [2], [1], [1], [0, 0, 0, 1, 1, 1], [0], [0]>} : vector<16x8x8xbf16>, vector<16x8x8xbf16>, vector<16x8x8xf32> -> vector<16x8x8xf32>
    "tpu.trace_stop"() : () -> ()
    %cst_14 = arith.constant dense<0xFF800000> : vector<16x8xf32>
    %73 = vector.multi_reduction <maximumf>, %72, %cst_14 [2] : vector<16x8x8xf32> to vector<16x8xf32>
    %74 = vector.shape_cast %73 : vector<16x8xf32> to vector<16x8x1xf32>
    %75 = vector.broadcast %74 : vector<16x8x1xf32> to vector<16x8x8xf32>
    %76 = arith.subf %72, %75 : vector<16x8x8xf32>
    %77 = math.exp %76 : vector<16x8x8xf32>
    %cst_15 = arith.constant dense<0.000000e+00> : vector<16x8xf32>
    %78 = vector.multi_reduction <add>, %77, %cst_15 [2] : vector<16x8x8xf32> to vector<16x8xf32>
    %79 = vector.shape_cast %78 : vector<16x8xf32> to vector<16x8x1xf32>
    %80 = tpu.reciprocal %79 {approx = true} : vector<16x8x1xf32> -> vector<16x8x1xf32>
    %81 = vector.broadcast %80 : vector<16x8x1xf32> to vector<16x8x8xf32>
    %82 = arith.mulf %77, %81 : vector<16x8x8xf32>
    %83 = arith.truncf %82 : vector<16x8x8xf32> to vector<16x8x8xbf16>
    "tpu.trace_start"() <{level = 10 : i32, message = "bqk,bkd->bqd"}> : () -> ()
    %cst_16 = arith.constant dense<0.000000e+00> : vector<16x8x8xf32>
    %84 = tpu.matmul %83, %71, %cst_16 {dimension_numbers = #tpu.dot_dimension_numbers<[2], [1], [1], [2], [0, 0, 0, 1, 1, 2], [0], [0]>} : vector<16x8x8xbf16>, vector<16x8x8xbf16>, vector<16x8x8xf32> -> vector<16x8x8xf32>
    "tpu.trace_stop"() : () -> ()
    %85 = vector.shape_cast %84 : vector<16x8x8xf32> to vector<4x32x8xf32>
    %86 = arith.truncf %85 : vector<4x32x8xf32> to vector<4x32x8xbf16>
    %c0_17 = arith.constant 0 : index
    %c0_18 = arith.constant 0 : index
    %c0_19 = arith.constant 0 : index
    %c0_20 = arith.constant 0 : index
    %87 = vector.load %arg7[%c0_17, %c0_18, %c0_19, %c0_20] : memref<1x4x8x32xbf16, #tpu.memory_space<vmem>>, vector<1x4x8x32xbf16>
    %88 = vector.shape_cast %87 : vector<1x4x8x32xbf16> to vector<4x8x32xbf16>
    "tpu.trace_start"() <{level = 10 : i32, message = "hrd,hdo->hro"}> : () -> ()
    %cst_21 = arith.constant dense<0.000000e+00> : vector<4x32x32xf32>
    %89 = tpu.matmul %86, %88, %cst_21 {dimension_numbers = #tpu.dot_dimension_numbers<[2], [1], [1], [2], [0, 0, 0, 1, 1, 2], [0], [0]>} : vector<4x32x8xbf16>, vector<4x8x32xbf16>, vector<4x32x32xf32> -> vector<4x32x32xf32>
    "tpu.trace_stop"() : () -> ()
    %cst_22 = arith.constant dense<0.000000e+00> : vector<32x32xf32>
    %90 = vector.multi_reduction <add>, %89, %cst_22 [0] : vector<4x32x32xf32> to vector<32x32xf32>
    %91 = arith.addf %13, %90 : vector<32x32xf32>
    %92 = vector.broadcast %6 : vector<1x32xf32> to vector<32x32xf32>
    %93 = arith.addf %91, %92 : vector<32x32xf32>
    %cst_23 = arith.constant dense<0.000000e+00> : vector<32xf32>
    %94 = vector.multi_reduction <add>, %93, %cst_23 [1] : vector<32x32xf32> to vector<32xf32>
    %95 = vector.shape_cast %94 : vector<32xf32> to vector<32x1xf32>
    %cst_24 = arith.constant 3.200000e+01 : f32
    %96 = vector.broadcast %cst_24 : f32 to vector<32x1xf32>
    %97 = arith.divf %95, %96 : vector<32x1xf32>
    %98 = vector.broadcast %97 : vector<32x1xf32> to vector<32x32xf32>
    %99 = arith.subf %93, %98 : vector<32x32xf32>
    %100 = arith.mulf %99, %99 : vector<32x32xf32>
    %cst_25 = arith.constant dense<0.000000e+00> : vector<32xf32>
    %101 = vector.multi_reduction <add>, %100, %cst_25 [1] : vector<32x32xf32> to vector<32xf32>
    %102 = vector.shape_cast %101 : vector<32xf32> to vector<32x1xf32>
    %cst_26 = arith.constant 3.200000e+01 : f32
    %103 = vector.broadcast %cst_26 : f32 to vector<32x1xf32>
    %104 = arith.divf %102, %103 : vector<32x1xf32>
    %105 = vector.broadcast %97 : vector<32x1xf32> to vector<32x32xf32>
    %106 = arith.subf %93, %105 : vector<32x32xf32>
    %cst_27 = arith.constant 9.99999974E-6 : f32
    %107 = vector.broadcast %cst_27 : f32 to vector<32x1xf32>
    %108 = arith.addf %104, %107 : vector<32x1xf32>
    %109 = math.rsqrt %108 : vector<32x1xf32>
    %110 = vector.broadcast %109 : vector<32x1xf32> to vector<32x32xf32>
    %111 = arith.mulf %106, %110 : vector<32x32xf32>
    %112 = vector.broadcast %11 : vector<1x32xf32> to vector<32x32xf32>
    %113 = arith.mulf %111, %112 : vector<32x32xf32>
    %114 = vector.broadcast %12 : vector<1x32xf32> to vector<32x32xf32>
    %115 = arith.addf %113, %114 : vector<32x32xf32>
    %116 = arith.truncf %115 : vector<32x32xf32> to vector<32x32xbf16>
    %c0_28 = arith.constant 0 : index
    %c0_29 = arith.constant 0 : index
    %c0_30 = arith.constant 0 : index
    %117 = vector.load %arg8[%c0_28, %c0_29, %c0_30] : memref<1x32x64xbf16, #tpu.memory_space<vmem>>, vector<1x32x64xbf16>
    %118 = vector.shape_cast %117 : vector<1x32x64xbf16> to vector<32x64xbf16>
    %cst_31 = arith.constant dense<0.000000e+00> : vector<32x64xf32>
    %119 = tpu.matmul %116, %118, %cst_31 {dimension_numbers = #tpu.dot_dimension_numbers<[1], [0], [0], [1], [0, 0, 1, 1], [], []>} : vector<32x32xbf16>, vector<32x64xbf16>, vector<32x64xf32> -> vector<32x64xf32>
    %120 = vector.broadcast %7 : vector<1x64xf32> to vector<32x64xf32>
    %121 = arith.addf %119, %120 : vector<32x64xf32>
    %cst_32 = arith.constant 5.000000e-01 : f32
    %122 = vector.broadcast %cst_32 : f32 to vector<32x64xf32>
    %123 = arith.mulf %122, %121 : vector<32x64xf32>
    %cst_33 = arith.constant 4.471500e-02 : f32
    %124 = vector.broadcast %cst_33 : f32 to vector<32x64xf32>
    %125 = arith.mulf %124, %121 : vector<32x64xf32>
    %126 = arith.mulf %125, %121 : vector<32x64xf32>
    %127 = arith.mulf %126, %121 : vector<32x64xf32>
    %128 = arith.addf %121, %127 : vector<32x64xf32>
    %cst_34 = arith.constant 0.797884583 : f32
    %129 = vector.broadcast %cst_34 : f32 to vector<32x64xf32>
    %130 = arith.mulf %129, %128 : vector<32x64xf32>
    %131 = math.tanh %130 : vector<32x64xf32>
    %cst_35 = arith.constant 1.000000e+00 : f32
    %132 = vector.broadcast %cst_35 : f32 to vector<32x64xf32>
    %133 = arith.addf %132, %131 : vector<32x64xf32>
    %134 = arith.mulf %123, %133 : vector<32x64xf32>
    %135 = arith.truncf %134 : vector<32x64xf32> to vector<32x64xbf16>
    %c0_36 = arith.constant 0 : index
    %c0_37 = arith.constant 0 : index
    %c0_38 = arith.constant 0 : index
    %136 = vector.load %arg9[%c0_36, %c0_37, %c0_38] : memref<1x64x32xbf16, #tpu.memory_space<vmem>>, vector<1x64x32xbf16>
    %137 = vector.shape_cast %136 : vector<1x64x32xbf16> to vector<64x32xbf16>
    %cst_39 = arith.constant dense<0.000000e+00> : vector<32x32xf32>
    %138 = tpu.matmul %135, %137, %cst_39 {dimension_numbers = #tpu.dot_dimension_numbers<[1], [0], [0], [1], [0, 0, 1, 1], [], []>} : vector<32x64xbf16>, vector<64x32xbf16>, vector<32x32xf32> -> vector<32x32xf32>
    %139 = arith.addf %93, %138 : vector<32x32xf32>
    %140 = vector.broadcast %8 : vector<1x32xf32> to vector<32x32xf32>
    %141 = arith.addf %139, %140 : vector<32x32xf32>
    %c0_40 = arith.constant 0 : index
    %c0_41 = arith.constant 0 : index
    %142 = vector.load %arg15[%c0_40, %c0_41] : memref<32x32xf32, #tpu.memory_space<vmem>>, vector<32x32xf32>
    tpu.vector_store %arg15[%c0_40, %c0_41], %141 {strides = array<i32>} : memref<32x32xf32, #tpu.memory_space<vmem>>, vector<32x32xf32>,
    %c1_i32 = arith.constant 1 : i32
    %143 = arith.cmpi eq, %arg1, %c1_i32 : i32
    %144 = arith.extui %143 : i1 to i32
    %c0_i32_42 = arith.constant 0 : i32
    %145 = arith.cmpi ne, %144, %c0_i32_42 : i32
    scf.if %145 {
      %c0_43 = arith.constant 0 : index
      %c0_44 = arith.constant 0 : index
      %146 = vector.load %arg13[%c0_43, %c0_44] : memref<4x128xf32, #tpu.memory_space<vmem>>, vector<4x128xf32>
      %147 = vector.shape_cast %141 : vector<32x32xf32> to vector<4x8x32xf32>
      %148 = vector.extract_strided_slice %147 {offsets = [0, 7, 0], sizes = [4, 1, 32], strides = [1, 1, 1]} : vector<4x8x32xf32> to vector<4x1x32xf32>
      %149 = vector.shape_cast %148 : vector<4x1x32xf32> to vector<4x32xf32>
      %150 = arith.truncf %149 : vector<4x32xf32> to vector<4x32xbf16>
      %c0_45 = arith.constant 0 : index
      %c0_46 = arith.constant 0 : index
      %151 = vector.load %arg11[%c0_45, %c0_46] : memref<32x16xbf16, #tpu.memory_space<vmem>>, vector<32x16xbf16>
      %cst_47 = arith.constant dense<0.000000e+00> : vector<4x16xf32>
      %152 = tpu.matmul %150, %151, %cst_47 {dimension_numbers = #tpu.dot_dimension_numbers<[1], [0], [0], [1], [0, 0, 1, 1], [], []>} : vector<4x32xbf16>, vector<32x16xbf16>, vector<4x16xf32> -> vector<4x16xf32>
      %153 = vector.extract_strided_slice %146 {offsets = [0, 0], sizes = [1, 16], strides = [1, 1]} : vector<4x128xf32> to vector<1x16xf32>
      %154 = vector.broadcast %153 : vector<1x16xf32> to vector<4x16xf32>
      %155 = arith.addf %152, %154 : vector<4x16xf32>
      %156 = vector.extract_strided_slice %146 {offsets = [1, 0], sizes = [1, 16], strides = [1, 1]} : vector<4x128xf32> to vector<1x16xf32>
      %157 = vector.extract_strided_slice %146 {offsets = [2, 0], sizes = [1, 16], strides = [1, 1]} : vector<4x128xf32> to vector<1x16xf32>
      %cst_48 = arith.constant dense<0.000000e+00> : vector<4xf32>
      %158 = vector.multi_reduction <add>, %155, %cst_48 [1] : vector<4x16xf32> to vector<4xf32>
      %159 = vector.shape_cast %158 : vector<4xf32> to vector<4x1xf32>
      %cst_49 = arith.constant 1.600000e+01 : f32
      %160 = vector.broadcast %cst_49 : f32 to vector<4x1xf32>
      %161 = arith.divf %159, %160 : vector<4x1xf32>
      %162 = vector.broadcast %161 : vector<4x1xf32> to vector<4x16xf32>
      %163 = arith.subf %155, %162 : vector<4x16xf32>
      %164 = arith.mulf %163, %163 : vector<4x16xf32>
      %cst_50 = arith.constant dense<0.000000e+00> : vector<4xf32>
      %165 = vector.multi_reduction <add>, %164, %cst_50 [1] : vector<4x16xf32> to vector<4xf32>
      %166 = vector.shape_cast %165 : vector<4xf32> to vector<4x1xf32>
      %cst_51 = arith.constant 1.600000e+01 : f32
      %167 = vector.broadcast %cst_51 : f32 to vector<4x1xf32>
      %168 = arith.divf %166, %167 : vector<4x1xf32>
      %169 = vector.broadcast %161 : vector<4x1xf32> to vector<4x16xf32>
      %170 = arith.subf %155, %169 : vector<4x16xf32>
      %cst_52 = arith.constant 9.99999974E-6 : f32
      %171 = vector.broadcast %cst_52 : f32 to vector<4x1xf32>
      %172 = arith.addf %168, %171 : vector<4x1xf32>
      %173 = math.rsqrt %172 : vector<4x1xf32>
      %174 = vector.broadcast %173 : vector<4x1xf32> to vector<4x16xf32>
      %175 = arith.mulf %170, %174 : vector<4x16xf32>
      %176 = vector.broadcast %156 : vector<1x16xf32> to vector<4x16xf32>
      %177 = arith.mulf %175, %176 : vector<4x16xf32>
      %178 = vector.broadcast %157 : vector<1x16xf32> to vector<4x16xf32>
      %179 = arith.addf %177, %178 : vector<4x16xf32>
      %cst_53 = arith.constant 0.000000e+00 : f32
      %180 = vector.broadcast %cst_53 : f32 to vector<4x16xf32>
      %181 = arith.maximumf %179, %180 : vector<4x16xf32>
      %182 = arith.truncf %181 : vector<4x16xf32> to vector<4x16xbf16>
      %c0_54 = arith.constant 0 : index
      %c0_55 = arith.constant 0 : index
      %183 = vector.load %arg12[%c0_54, %c0_55] : memref<16x128xbf16, #tpu.memory_space<vmem>>, vector<16x128xbf16>
      %cst_56 = arith.constant dense<0.000000e+00> : vector<4x128xf32>
      %184 = tpu.matmul %182, %183, %cst_56 {dimension_numbers = #tpu.dot_dimension_numbers<[1], [0], [0], [1], [0, 0, 1, 1], [], []>} : vector<4x16xbf16>, vector<16x128xbf16>, vector<4x128xf32> -> vector<4x128xf32>
      %185 = vector.extract_strided_slice %146 {offsets = [3, 0], sizes = [1, 128], strides = [1, 1]} : vector<4x128xf32> to vector<1x128xf32>
      %186 = vector.broadcast %185 : vector<1x128xf32> to vector<4x128xf32>
      %187 = arith.addf %184, %186 : vector<4x128xf32>
      %c0_57 = arith.constant 0 : index
      %c0_58 = arith.constant 0 : index
      %c0_59 = arith.constant 0 : index
      %188 = vector.load %arg14[%c0_57, %c0_58, %c0_59] : memref<1x4x128xf32, #tpu.memory_space<vmem>>, vector<1x4x128xf32>
      %189 = vector.shape_cast %188 : vector<1x4x128xf32> to vector<4x128xf32>
      %190 = vector.shape_cast %187 : vector<4x128xf32> to vector<1x4x128xf32>
      tpu.vector_store %arg14[%c0_57, %c0_58, %c0_59], %190 {strides = array<i32>} : memref<1x4x128xf32, #tpu.memory_space<vmem>>, vector<1x4x128xf32>,
    } else {
    }
    return
  }
  func.func @transform_0(%arg0: i32, %arg1: i32) -> (i32, i32) {
    %c0_i32 = arith.constant 0 : i32
    %c0_i32_0 = arith.constant 0 : i32
    return %arg0, %c0_i32 : i32, i32
  }
  func.func @transform_1(%arg0: i32, %arg1: i32) -> (i32, i32) {
    %c0_i32 = arith.constant 0 : i32
    %c0_i32_0 = arith.constant 0 : i32
    %c0_i32_1 = arith.constant 0 : i32
    return %c0_i32, %c0_i32_0 : i32, i32
  }
  func.func @transform_2(%arg0: i32, %arg1: i32) -> (i32, i32) {
    %c0_i32 = arith.constant 0 : i32
    %c0_i32_0 = arith.constant 0 : i32
    %c0_i32_1 = arith.constant 0 : i32
    return %c0_i32, %c0_i32_0 : i32, i32
  }
  func.func @transform_3(%arg0: i32, %arg1: i32) -> (i32, i32) {
    %c0_i32 = arith.constant 0 : i32
    %c0_i32_0 = arith.constant 0 : i32
    %c0_i32_1 = arith.constant 0 : i32
    return %c0_i32, %c0_i32_0 : i32, i32
  }
  func.func @transform_4(%arg0: i32, %arg1: i32) -> (i32, i32, i32) {
    %c0_i32 = arith.constant 0 : i32
    %c0_i32_0 = arith.constant 0 : i32
    %c0_i32_1 = arith.constant 0 : i32
    return %arg1, %c0_i32, %c0_i32_0 : i32, i32, i32
  }
  func.func @transform_5(%arg0: i32, %arg1: i32) -> (i32, i32, i32, i32) {
    %c0_i32 = arith.constant 0 : i32
    %c0_i32_0 = arith.constant 0 : i32
    %c0_i32_1 = arith.constant 0 : i32
    %c0_i32_2 = arith.constant 0 : i32
    return %arg1, %c0_i32, %c0_i32_0, %c0_i32_1 : i32, i32, i32, i32
  }
  func.func @transform_6(%arg0: i32, %arg1: i32) -> (i32, i32, i32) {
    %c0_i32 = arith.constant 0 : i32
    %c0_i32_0 = arith.constant 0 : i32
    %c0_i32_1 = arith.constant 0 : i32
    return %arg1, %c0_i32, %c0_i32_0 : i32, i32, i32
  }
  func.func @transform_7(%arg0: i32, %arg1: i32) -> (i32, i32, i32) {
    %c0_i32 = arith.constant 0 : i32
    %c0_i32_0 = arith.constant 0 : i32
    %c0_i32_1 = arith.constant 0 : i32
    return %arg1, %c0_i32, %c0_i32_0 : i32, i32, i32
  }
  func.func @transform_8(%arg0: i32, %arg1: i32) -> (i32, i32, i32) {
    %c0_i32 = arith.constant 0 : i32
    %c0_i32_0 = arith.constant 0 : i32
    %c0_i32_1 = arith.constant 0 : i32
    return %arg1, %c0_i32, %c0_i32_0 : i32, i32, i32
  }
  func.func @transform_9(%arg0: i32, %arg1: i32) -> (i32, i32) {
    %c0_i32 = arith.constant 0 : i32
    %c0_i32_0 = arith.constant 0 : i32
    %c0_i32_1 = arith.constant 0 : i32
    return %c0_i32, %c0_i32_0 : i32, i32
  }
  func.func @transform_10(%arg0: i32, %arg1: i32) -> (i32, i32) {
    %c0_i32 = arith.constant 0 : i32
    %c0_i32_0 = arith.constant 0 : i32
    %c0_i32_1 = arith.constant 0 : i32
    return %c0_i32, %c0_i32_0 : i32, i32
  }
  func.func @transform_11(%arg0: i32, %arg1: i32) -> (i32, i32) {
    %c0_i32 = arith.constant 0 : i32
    %c0_i32_0 = arith.constant 0 : i32
    %c0_i32_1 = arith.constant 0 : i32
    return %c0_i32, %c0_i32_0 : i32, i32
  }
  func.func @transform_12(%arg0: i32, %arg1: i32) -> (i32, i32, i32) {
    %c0_i32 = arith.constant 0 : i32
    %c0_i32_0 = arith.constant 0 : i32
    %c0_i32_1 = arith.constant 0 : i32
    return %arg0, %c0_i32, %c0_i32_0 : i32, i32, i32
  }
}

</mosaic_0001>

<llo_original>
// kernel: tpu_custom_call.1
$region0: #{tpu_custom_call.1}
  #allocation0 [shape = 'u32[]', space=smem, size = 0x4, offset = 0x4, fixed_abs, tag = 'smem constant byte address 0x4 - core index']
  #allocation1 [shape = 'u32[144,128]{1,0:T(1,128)}', space=vmem, size = 0x12000, scoped, tag = 'internal scratch']
  #allocation2 [shape = 'f32[32,32]{1,0:T(8,128)}', space=vmem, size = 0x4000, scoped, tag = 'scratch operand']
  %s0 = inlined_call_operand.vmem [shape: f32[32,16], index: 0, kind: input, shape index: {}]
  %s1 = inlined_call_operand.vmem [shape: f32[8,32], index: 1, kind: input, shape index: {}]
  %s2 = inlined_call_operand.vmem [shape: bf16[16,32], index: 2, kind: input, shape index: {}]
  %s3 = inlined_call_operand.vmem [shape: f32[3,32], index: 3, kind: input, shape index: {}]
  %s4 = inlined_call_operand.vmem [shape: bf16[2,32,96], index: 4, kind: input, shape index: {}]
  %s5 = inlined_call_operand.vmem [shape: bf16[2,4,8,32], index: 5, kind: input, shape index: {}]
  %s6 = inlined_call_operand.vmem [shape: bf16[2,32,64], index: 6, kind: input, shape index: {}]
  %s7 = inlined_call_operand.vmem [shape: bf16[2,64,32], index: 7, kind: input, shape index: {}]
  %s8 = inlined_call_operand.vmem [shape: f32[2,8,96], index: 8, kind: input, shape index: {}]
  %s9 = inlined_call_operand.vmem [shape: bf16[32,16], index: 9, kind: input, shape index: {}]
  %s10 = inlined_call_operand.vmem [shape: bf16[16,128], index: 10, kind: input, shape index: {}]
  %s11 = inlined_call_operand.vmem [shape: f32[4,128], index: 11, kind: input, shape index: {}]
  %s12 = inlined_call_operand.hbm [shape: f32[1,4,128], index: 12, kind: output, shape index: {}]
  %s13 = sld [smem:[#allocation0]]
  $region89: #{tpu_custom_call.1} parent=0
    _
  %s15 = ssub.s32 1, %s13
  %s16 = scalar_select 0, %s15, %s13
  $region1: #{tpu_custom_call.1} parent=0
    #allocation3 [shape = 'u8[2048]{0}', space=vmem, size = 0x800, scoped, tag = 'output window, operand 0, single buffered']
    #allocation4 [shape = 's32[2]{0}', space=sflag, size = 0x8, scoped, tag = 'scoped memory for tpu_custom_call.1']
    %17 = vsyncpa [#allocation4], 0
    loop: start=0, step=1, limit=4
    $region2: #{tpu_custom_call.1} parent=1 // loop_pre_header
      _
    $region3: #{tpu_custom_call.1} parent=1 // loop_header
      %s19 = sphi 0, %s23
      %p20 = scmp.ge.s32.totalorder %s19, 4
      %s26 = sphi 0, %s38
      %s27 = sphi 0, %s34
      %s28 = sphi 0, %s26
      %s29 = sphi 0, %s27
      %s30 = sphi 0, %s28
      %s31 = sphi 0, %s29
      %s41 = sphi 0, %s43
      %s44 = sphi 0, %s41
      %s45 = sphi 0, %s44
      %s61 = sphi 0, %s45
      %s65 = sphi 0, %s65
      %s67 = sphi 0, %s65
      %s68 = sphi 0, %s67
      %s82 = sphi 0, %s68
      %s86 = sphi 0, %s86
      %s88 = sphi 0, %s86
      %s89 = sphi 0, %s88
      %s103 = sphi 0, %s89
      %s107 = sphi 0, %s107
      %s109 = sphi 0, %s107
      %s110 = sphi 0, %s109
      %s124 = sphi 0, %s110
      %s130 = sphi 0, %s132
      %s133 = sphi 0, %s130
      %s134 = sphi 0, %s133
      %s150 = sphi 0, %s134
      %s156 = sphi 0, %s158
      %s159 = sphi 0, %s156
      %s160 = sphi 0, %s159
      %s176 = sphi 0, %s160
      %s182 = sphi 0, %s184
      %s185 = sphi 0, %s182
      %s186 = sphi 0, %s185
      %s202 = sphi 0, %s186
      %s208 = sphi 0, %s210
      %s211 = sphi 0, %s208
      %s212 = sphi 0, %s211
      %s228 = sphi 0, %s212
      %s234 = sphi 0, %s236
      %s237 = sphi 0, %s234
      %s238 = sphi 0, %s237
      %s254 = sphi 0, %s238
      %s258 = sphi 0, %s258
      %s260 = sphi 0, %s258
      %s261 = sphi 0, %s260
      %s275 = sphi 0, %s261
      %s279 = sphi 0, %s279
      %s281 = sphi 0, %s279
      %s282 = sphi 0, %s281
      %s296 = sphi 0, %s282
      %s300 = sphi 0, %s300
      %s302 = sphi 0, %s300
      %s303 = sphi 0, %s302
      %s317 = sphi 0, %s303
      %s323 = sphi 0, %s325
      %s326 = sphi 0, %s323
      %s327 = sphi 0, %s326
      %s343 = sphi 0, %s327
    $region4: #{tpu_custom_call.1} parent=1 // loop_header_branch
      %22 = sbr.rel (%p20) target = $region8
    $region5: #{tpu_custom_call.1} parent=1 // loop_body
      %s24 = ssub.s32 %s19, 1
      %s25 = ssub.s32 %s19, 2
      %s32 = sadd.s32 1, %s27
      %p33 = scmp.ge.s32.totalorder %s32, 2
      %s34 = scalar_select %p33, 0, %s32
      %s35 = sadd.s32 1, %s26
      %s36 = scalar_select %p33, %s35, %s26
      %p37 = scmp.ge.s32.totalorder %s36, 1
      %s38 = scalar_select %p37, 0, %s36
      %s39 = ssub.s32 %s26, %s38
      %p40 = scmp.eq.s32.totalorder %s39, 0
      %s42 = sadd.s32 %s41, 1
      %s43 = scalar_select %p40, %s41, %s42
      %p46 = pneg %p40
      %p47 = scmp.eq.s32.totalorder %s19, 1
      %p48 = por %p46, %p47
      %p49 = scmp.ne.s32.totalorder %s41, %s44
      %p50 = scmp.eq.s32.totalorder %s19, 0
      %p51 = por %p49, %p50
      %p52 = scmp.ne.s32.totalorder %s41, %s44
      %p53 = scmp.eq.s32.totalorder %s24, 1
      %p54 = por %p52, %p53
      %p55 = scmp.ne.s32.totalorder %s44, %s45
      %p56 = scmp.eq.s32.totalorder %s24, 0
      %p57 = por %p55, %p56
      %p58 = scmp.ne.s32.totalorder %s44, %s45
      %p59 = scmp.eq.s32.totalorder %s25, 1
      %p60 = por %p58, %p59
      %p62 = scmp.ne.s32.totalorder %s45, %s61
      %p63 = scmp.eq.s32.totalorder %s25, 0
      %p64 = por %p62, %p63
      %s66 = sadd.s32 %s65, 1
      %p69 = scmp.eq.s32.totalorder %s19, 1
      %p70 = scmp.ne.s32.totalorder %s65, %s67
      %p71 = scmp.eq.s32.totalorder %s19, 0
      %p72 = por %p70, %p71
      %p73 = scmp.ne.s32.totalorder %s65, %s67
      %p74 = scmp.eq.s32.totalorder %s24, 1
      %p75 = por %p73, %p74
      %p76 = scmp.ne.s32.totalorder %s67, %s68
      %p77 = scmp.eq.s32.totalorder %s24, 0
      %p78 = por %p76, %p77
      %p79 = scmp.ne.s32.totalorder %s67, %s68
      %p80 = scmp.eq.s32.totalorder %s25, 1
      %p81 = por %p79, %p80
      %p83 = scmp.ne.s32.totalorder %s68, %s82
      %p84 = scmp.eq.s32.totalorder %s25, 0
      %p85 = por %p83, %p84
      %s87 = sadd.s32 %s86, 1
      %p90 = scmp.eq.s32.totalorder %s19, 1
      %p91 = scmp.ne.s32.totalorder %s86, %s88
      %p92 = scmp.eq.s32.totalorder %s19, 0
      %p93 = por %p91, %p92
      %p94 = scmp.ne.s32.totalorder %s86, %s88
      %p95 = scmp.eq.s32.totalorder %s24, 1
      %p96 = por %p94, %p95
      %p97 = scmp.ne.s32.totalorder %s88, %s89
      %p98 = scmp.eq.s32.totalorder %s24, 0
      %p99 = por %p97, %p98
      %p100 = scmp.ne.s32.totalorder %s88, %s89
      %p101 = scmp.eq.s32.totalorder %s25, 1
      %p102 = por %p100, %p101
      %p104 = scmp.ne.s32.totalorder %s89, %s103
      %p105 = scmp.eq.s32.totalorder %s25, 0
      %p106 = por %p104, %p105
      %s108 = sadd.s32 %s107, 1
      %p111 = scmp.eq.s32.totalorder %s19, 1
      %p112 = scmp.ne.s32.totalorder %s107, %s109
      %p113 = scmp.eq.s32.totalorder %s19, 0
      %p114 = por %p112, %p113
      %p115 = scmp.ne.s32.totalorder %s107, %s109
      %p116 = scmp.eq.s32.totalorder %s24, 1
      %p117 = por %p115, %p116
      %p118 = scmp.ne.s32.totalorder %s109, %s110
      %p119 = scmp.eq.s32.totalorder %s24, 0
      %p120 = por %p118, %p119
      %p121 = scmp.ne.s32.totalorder %s109, %s110
      %p122 = scmp.eq.s32.totalorder %s25, 1
      %p123 = por %p121, %p122
      %p125 = scmp.ne.s32.totalorder %s110, %s124
      %p126 = scmp.eq.s32.totalorder %s25, 0
      %p127 = por %p125, %p126
      %s128 = ssub.s32 %s27, %s34
      %p129 = scmp.eq.s32.totalorder %s128, 0
      %s131 = sadd.s32 %s130, 1
      %s132 = scalar_select %p129, %s130, %s131
      %p135 = pneg %p129
      %p136 = scmp.eq.s32.totalorder %s19, 1
      %p137 = por %p135, %p136
      %p138 = scmp.ne.s32.totalorder %s130, %s133
      %p139 = scmp.eq.s32.totalorder %s19, 0
      %p140 = por %p138, %p139
      %p141 = scmp.ne.s32.totalorder %s130, %s133
      %p142 = scmp.eq.s32.totalorder %s24, 1
      %p143 = por %p141, %p142
      %p144 = scmp.ne.s32.totalorder %s133, %s134
      %p145 = scmp.eq.s32.totalorder %s24, 0
      %p146 = por %p144, %p145
      %p147 = scmp.ne.s32.totalorder %s133, %s134
      %p148 = scmp.eq.s32.totalorder %s25, 1
      %p149 = por %p147, %p148
      %p151 = scmp.ne.s32.totalorder %s134, %s150
      %p152 = scmp.eq.s32.totalorder %s25, 0
      %p153 = por %p151, %p152
      %s154 = ssub.s32 %s27, %s34
      %p155 = scmp.eq.s32.totalorder %s154, 0
      %s157 = sadd.s32 %s156, 1
      %s158 = scalar_select %p155, %s156, %s157
      %p161 = pneg %p155
      %p162 = scmp.eq.s32.totalorder %s19, 1
      %p163 = por %p161, %p162
      %p164 = scmp.ne.s32.totalorder %s156, %s159
      %p165 = scmp.eq.s32.totalorder %s19, 0
      %p166 = por %p164, %p165
      %p167 = scmp.ne.s32.totalorder %s156, %s159
      %p168 = scmp.eq.s32.totalorder %s24, 1
      %p169 = por %p167, %p168
      %p170 = scmp.ne.s32.totalorder %s159, %s160
      %p171 = scmp.eq.s32.totalorder %s24, 0
      %p172 = por %p170, %p171
      %p173 = scmp.ne.s32.totalorder %s159, %s160
      %p174 = scmp.eq.s32.totalorder %s25, 1
      %p175 = por %p173, %p174
      %p177 = scmp.ne.s32.totalorder %s160, %s176
      %p178 = scmp.eq.s32.totalorder %s25, 0
      %p179 = por %p177, %p178
      %s180 = ssub.s32 %s27, %s34
      %p181 = scmp.eq.s32.totalorder %s180, 0
      %s183 = sadd.s32 %s182, 1
      %s184 = scalar_select %p181, %s182, %s183
      %p187 = pneg %p181
      %p188 = scmp.eq.s32.totalorder %s19, 1
      %p189 = por %p187, %p188
      %p190 = scmp.ne.s32.totalorder %s182, %s185
      %p191 = scmp.eq.s32.totalorder %s19, 0
      %p192 = por %p190, %p191
      %p193 = scmp.ne.s32.totalorder %s182, %s185
      %p194 = scmp.eq.s32.totalorder %s24, 1
      %p195 = por %p193, %p194
      %p196 = scmp.ne.s32.totalorder %s185, %s186
      %p197 = scmp.eq.s32.totalorder %s24, 0
      %p198 = por %p196, %p197
      %p199 = scmp.ne.s32.totalorder %s185, %s186
      %p200 = scmp.eq.s32.totalorder %s25, 1
      %p201 = por %p199, %p200
      %p203 = scmp.ne.s32.totalorder %s186, %s202
      %p204 = scmp.eq.s32.totalorder %s25, 0
      %p205 = por %p203, %p204
      %s206 = ssub.s32 %s27, %s34
      %p207 = scmp.eq.s32.totalorder %s206, 0
      %s209 = sadd.s32 %s208, 1
      %s210 = scalar_select %p207, %s208, %s209
      %p213 = pneg %p207
      %p214 = scmp.eq.s32.totalorder %s19, 1
      %p215 = por %p213, %p214
      %p216 = scmp.ne.s32.totalorder %s208, %s211
      %p217 = scmp.eq.s32.totalorder %s19, 0
      %p218 = por %p216, %p217
      %p219 = scmp.ne.s32.totalorder %s208, %s211
      %p220 = scmp.eq.s32.totalorder %s24, 1
      %p221 = por %p219, %p220
      %p222 = scmp.ne.s32.totalorder %s211, %s212
      %p223 = scmp.eq.s32.totalorder %s24, 0
      %p224 = por %p222, %p223
      %p225 = scmp.ne.s32.totalorder %s211, %s212
      %p226 = scmp.eq.s32.totalorder %s25, 1
      %p227 = por %p225, %p226
      %p229 = scmp.ne.s32.totalorder %s212, %s228
      %p230 = scmp.eq.s32.totalorder %s25, 0
      %p231 = por %p229, %p230
      %s232 = ssub.s32 %s27, %s34
      %p233 = scmp.eq.s32.totalorder %s232, 0
      %s235 = sadd.s32 %s234, 1
      %s236 = scalar_select %p233, %s234, %s235
      %p239 = pneg %p233
      %p240 = scmp.eq.s32.totalorder %s19, 1
      %p241 = por %p239, %p240
      %p242 = scmp.ne.s32.totalorder %s234, %s237
      %p243 = scmp.eq.s32.totalorder %s19, 0
      %p244 = por %p242, %p243
      %p245 = scmp.ne.s32.totalorder %s234, %s237
      %p246 = scmp.eq.s32.totalorder %s24, 1
      %p247 = por %p245, %p246
      %p248 = scmp.ne.s32.totalorder %s237, %s238
      %p249 = scmp.eq.s32.totalorder %s24, 0
      %p250 = por %p248, %p249
      %p251 = scmp.ne.s32.totalorder %s237, %s238
      %p252 = scmp.eq.s32.totalorder %s25, 1
      %p253 = por %p251, %p252
      %p255 = scmp.ne.s32.totalorder %s238, %s254
      %p256 = scmp.eq.s32.totalorder %s25, 0
      %p257 = por %p255, %p256
      %s259 = sadd.s32 %s258, 1
      %p262 = scmp.eq.s32.totalorder %s19, 1
      %p263 = scmp.ne.s32.totalorder %s258, %s260
      %p264 = scmp.eq.s32.totalorder %s19, 0
      %p265 = por %p263, %p264
      %p266 = scmp.ne.s32.totalorder %s258, %s260
      %p267 = scmp.eq.s32.totalorder %s24, 1
      %p268 = por %p266, %p267
      %p269 = scmp.ne.s32.totalorder %s260, %s261
      %p270 = scmp.eq.s32.totalorder %s24, 0
      %p271 = por %p269, %p270
      %p272 = scmp.ne.s32.totalorder %s260, %s261
      %p273 = scmp.eq.s32.totalorder %s25, 1
      %p274 = por %p272, %p273
      %p276 = scmp.ne.s32.totalorder %s261, %s275
      %p277 = scmp.eq.s32.totalorder %s25, 0
      %p278 = por %p276, %p277
      %s280 = sadd.s32 %s279, 1
      %p283 = scmp.eq.s32.totalorder %s19, 1
      %p284 = scmp.ne.s32.totalorder %s279, %s281
      %p285 = scmp.eq.s32.totalorder %s19, 0
      %p286 = por %p284, %p285
      %p287 = scmp.ne.s32.totalorder %s279, %s281
      %p288 = scmp.eq.s32.totalorder %s24, 1
      %p289 = por %p287, %p288
      %p290 = scmp.ne.s32.totalorder %s281, %s282
      %p291 = scmp.eq.s32.totalorder %s24, 0
      %p292 = por %p290, %p291
      %p293 = scmp.ne.s32.totalorder %s281, %s282
      %p294 = scmp.eq.s32.totalorder %s25, 1
      %p295 = por %p293, %p294
      %p297 = scmp.ne.s32.totalorder %s282, %s296
      %p298 = scmp.eq.s32.totalorder %s25, 0
      %p299 = por %p297, %p298
      %s301 = sadd.s32 %s300, 1
      %p304 = scmp.eq.s32.totalorder %s19, 1
      %p305 = scmp.ne.s32.totalorder %s300, %s302
      %p306 = scmp.eq.s32.totalorder %s19, 0
      %p307 = por %p305, %p306
      %p308 = scmp.ne.s32.totalorder %s300, %s302
      %p309 = scmp.eq.s32.totalorder %s24, 1
      %p310 = por %p308, %p309
      %p311 = scmp.ne.s32.totalorder %s302, %s303
      %p312 = scmp.eq.s32.totalorder %s24, 0
      %p313 = por %p311, %p312
      %p314 = scmp.ne.s32.totalorder %s302, %s303
      %p315 = scmp.eq.s32.totalorder %s25, 1
      %p316 = por %p314, %p315
      %p318 = scmp.ne.s32.totalorder %s303, %s317
      %p319 = scmp.eq.s32.totalorder %s25, 0
      %p320 = por %p318, %p319
      %s321 = ssub.s32 %s26, %s38
      %p322 = scmp.eq.s32.totalorder %s321, 0
      %s324 = sadd.s32 %s323, 1
      %s325 = scalar_select %p322, %s323, %s324
      %p328 = pneg %p322
      %p329 = scmp.eq.s32.totalorder %s19, 1
      %p330 = por %p328, %p329
      %p331 = scmp.ne.s32.totalorder %s323, %s326
      %p332 = scmp.eq.s32.totalorder %s19, 0
      %p333 = por %p331, %p332
      %p334 = scmp.ne.s32.totalorder %s323, %s326
      %p335 = scmp.eq.s32.totalorder %s24, 1
      %p336 = por %p334, %p335
      %p337 = scmp.ne.s32.totalorder %s326, %s327
      %p338 = scmp.eq.s32.totalorder %s24, 0
      %p339 = por %p337, %p338
      %p340 = scmp.ne.s32.totalorder %s326, %s327
      %p341 = scmp.eq.s32.totalorder %s25, 1
      %p342 = por %p340, %p341
      %p344 = scmp.ne.s32.totalorder %s327, %s343
      %p345 = scmp.eq.s32.totalorder %s25, 0
      %p346 = por %p344, %p345
      %p347 = scmp.le.s32.totalorder 1, %s19
      %p348 = scmp.lt.s32.totalorder %s19, 3
      %p349 = pnand %p347, %p348
      %p350 = pneg %p349
      // Predicated region
      $region9: #{tpu_custom_call.1} parent=5 // pred_check
        _
      $region10: #{tpu_custom_call.1} parent=5 // pred_check_branch
        %352 = sbr.rel (%p349) target = $region12
      $region11: #{tpu_custom_call.1} parent=5 // pred_region
        %s353 = ssub.s32 %s19, 1
        // Predicated region
        $region13: #{tpu_custom_call.1} parent=11 // pred_check
          %p354 = pneg %p57
        $region14: #{tpu_custom_call.1} parent=11 // pred_check_branch
          %356 = sbr.rel (%p354) target = $region16
        $region15: #{tpu_custom_call.1} parent=11 // pred_region
          %s357 = smul.u32 4, %s28
          %p358 = scmp.lt.s32.totalorder %s357, 3
          %s359 = scalar_select %p358, %s357, 3
          %s360 = smul.addr %s359, 8
          %s361 = scalar_lea.vmem %s0, %s360
          %s362 = smul.u32 4, %s28
        $region16: #{tpu_custom_call.1} parent=11 // pred_fallthru
          _
        // Predicated region
        $region17: #{tpu_custom_call.1} parent=11 // pred_check
          %p363 = pneg %p78
        $region18: #{tpu_custom_call.1} parent=11 // pred_check_branch
          %365 = sbr.rel (%p363) target = $region20
        $region19: #{tpu_custom_call.1} parent=11 // pred_region
          _
        $region20: #{tpu_custom_call.1} parent=11 // pred_fallthru
          _
        // Predicated region
        $region21: #{tpu_custom_call.1} parent=11 // pred_check
          %p366 = pneg %p99
        $region22: #{tpu_custom_call.1} parent=11 // pred_check_branch
          %368 = sbr.rel (%p366) target = $region24
        $region23: #{tpu_custom_call.1} parent=11 // pred_region
          _
        $region24: #{tpu_custom_call.1} parent=11 // pred_fallthru
          _
        // Predicated region
        $region25: #{tpu_custom_call.1} parent=11 // pred_check
          %p369 = pneg %p120
        $region26: #{tpu_custom_call.1} parent=11 // pred_check_branch
          %371 = sbr.rel (%p369) target = $region28
        $region27: #{tpu_custom_call.1} parent=11 // pred_region
          _
        $region28: #{tpu_custom_call.1} parent=11 // pred_fallthru
          _
        // Predicated region
        $region29: #{tpu_custom_call.1} parent=11 // pred_check
          %p372 = pneg %p271
        $region30: #{tpu_custom_call.1} parent=11 // pred_check_branch
          %374 = sbr.rel (%p372) target = $region32
        $region31: #{tpu_custom_call.1} parent=11 // pred_region
          _
        $region32: #{tpu_custom_call.1} parent=11 // pred_fallthru
          _
        // Predicated region
        $region33: #{tpu_custom_call.1} parent=11 // pred_check
          %p375 = pneg %p292
        $region34: #{tpu_custom_call.1} parent=11 // pred_check_branch
          %377 = sbr.rel (%p375) target = $region36
        $region35: #{tpu_custom_call.1} parent=11 // pred_region
          _
        $region36: #{tpu_custom_call.1} parent=11 // pred_fallthru
          _
        // Predicated region
        $region37: #{tpu_custom_call.1} parent=11 // pred_check
          %p378 = pneg %p313
        $region38: #{tpu_custom_call.1} parent=11 // pred_check_branch
          %380 = sbr.rel (%p378) target = $region40
        $region39: #{tpu_custom_call.1} parent=11 // pred_region
          _
        $region40: #{tpu_custom_call.1} parent=11 // pred_fallthru
          _
      $region12: #{tpu_custom_call.1} parent=5 // pred_fallthru
        _
      %p381 = scmp.lt.s32.totalorder %s19, 2
      // Predicated region
      $region41: #{tpu_custom_call.1} parent=5 // pred_check
        %p382 = pneg %p381
      $region42: #{tpu_custom_call.1} parent=5 // pred_check_branch
        %384 = sbr.rel (%p382) target = $region44
      $region43: #{tpu_custom_call.1} parent=5 // pred_region
        // Predicated region
        $region45: #{tpu_custom_call.1} parent=43 // pred_check
          %p385 = pneg %p140
        $region46: #{tpu_custom_call.1} parent=43 // pred_check_branch
          %387 = sbr.rel (%p385) target = $region48
        $region47: #{tpu_custom_call.1} parent=43 // pred_region
          %p388 = scmp.lt.s32.totalorder %s27, 1
          %s389 = scalar_select %p388, %s27, 1
          %s390 = smul.addr %s389, 4
          %s391 = smul.addr %s390, 4
          %s392 = scalar_lea.vmem %s4, %s391
        $region48: #{tpu_custom_call.1} parent=43 // pred_fallthru
          _
        // Predicated region
        $region49: #{tpu_custom_call.1} parent=43 // pred_check
          %p393 = pneg %p166
        $region50: #{tpu_custom_call.1} parent=43 // pred_check_branch
          %395 = sbr.rel (%p393) target = $region52
        $region51: #{tpu_custom_call.1} parent=43 // pred_region
          %p396 = scmp.lt.s32.totalorder %s27, 1
          %s397 = scalar_select %p396, %s27, 1
          %s398 = smul.addr %s397, 4
          %s399 = smul.addr %s398, 4
          %s400 = scalar_lea.vmem %s5, %s399
        $region52: #{tpu_custom_call.1} parent=43 // pred_fallthru
          _
        // Predicated region
        $region53: #{tpu_custom_call.1} parent=43 // pred_check
          %p401 = pneg %p192
        $region54: #{tpu_custom_call.1} parent=43 // pred_check_branch
          %403 = sbr.rel (%p401) target = $region56
        $region55: #{tpu_custom_call.1} parent=43 // pred_region
          %p404 = scmp.lt.s32.totalorder %s27, 1
          %s405 = scalar_select %p404, %s27, 1
          %s406 = smul.addr %s405, 4
          %s407 = smul.addr %s406, 4
          %s408 = scalar_lea.vmem %s6, %s407
        $region56: #{tpu_custom_call.1} parent=43 // pred_fallthru
          _
        // Predicated region
        $region57: #{tpu_custom_call.1} parent=43 // pred_check
          %p409 = pneg %p218
        $region58: #{tpu_custom_call.1} parent=43 // pred_check_branch
          %411 = sbr.rel (%p409) target = $region60
        $region59: #{tpu_custom_call.1} parent=43 // pred_region
          %p412 = scmp.lt.s32.totalorder %s27, 1
          %s413 = scalar_select %p412, %s27, 1
          %s414 = smul.addr %s413, 8
          %s415 = smul.addr %s414, 4
          %s416 = scalar_lea.vmem %s7, %s415
        $region60: #{tpu_custom_call.1} parent=43 // pred_fallthru
          _
        // Predicated region
        $region61: #{tpu_custom_call.1} parent=43 // pred_check
          %p417 = pneg %p244
        $region62: #{tpu_custom_call.1} parent=43 // pred_check_branch
          %419 = sbr.rel (%p417) target = $region64
        $region63: #{tpu_custom_call.1} parent=43 // pred_region
          %p420 = scmp.lt.s32.totalorder %s27, 1
          %s421 = scalar_select %p420, %s27, 1
          %s422 = smul.addr %s421, 8
          %s423 = scalar_lea.vmem %s8, %s422
        $region64: #{tpu_custom_call.1} parent=43 // pred_fallthru
          _
      $region44: #{tpu_custom_call.1} parent=5 // pred_fallthru
        _
      %p424 = scmp.le.s32.totalorder 1, %s19
      %p425 = scmp.lt.s32.totalorder %s19, 3
      %p426 = pnand %p424, %p425
      %p427 = pneg %p426
      // Predicated region
      $region65: #{tpu_custom_call.1} parent=5 // pred_check
        _
      $region66: #{tpu_custom_call.1} parent=5 // pred_check_branch
        %429 = sbr.rel (%p426) target = $region68
      $region67: #{tpu_custom_call.1} parent=5 // pred_region
        %s430 = ssub.s32 %s19, 1
        %s431 = smul.u32 4, %s28
        %p432 = scmp.lt.s32.totalorder %s431, 3
        %s433 = scalar_select %p432, %s431, 3
        %s434 = smul.addr %s433, 8
        %s435 = scalar_lea.vmem %s0, %s434
        %p436 = pneg %p57
        %p437 = pneg %p54
        %p438 = pneg %p78
        %p439 = pneg %p75
        %p440 = pneg %p99
        %p441 = pneg %p96
        %p442 = pneg %p120
        %p443 = pneg %p117
        %p444 = scmp.lt.s32.totalorder %s29, 1
        %s445 = scalar_select %p444, %s29, 1
        %s446 = smul.addr %s445, 4
        %s447 = smul.addr %s446, 4
        %s448 = scalar_lea.vmem %s4, %s447
        %p449 = pneg %p146
        %p450 = pneg %p143
        %p451 = scmp.lt.s32.totalorder %s29, 1
        %s452 = scalar_select %p451, %s29, 1
        %s453 = smul.addr %s452, 4
        %s454 = smul.addr %s453, 4
        %s455 = scalar_lea.vmem %s5, %s454
        %p456 = pneg %p172
        %p457 = pneg %p169
        %p458 = scmp.lt.s32.totalorder %s29, 1
        %s459 = scalar_select %p458, %s29, 1
        %s460 = smul.addr %s459, 4
        %s461 = smul.addr %s460, 4
        %s462 = scalar_lea.vmem %s6, %s461
        %p463 = pneg %p198
        %p464 = pneg %p195
        %p465 = scmp.lt.s32.totalorder %s29, 1
        %s466 = scalar_select %p465, %s29, 1
        %s467 = smul.addr %s466, 8
        %s468 = smul.addr %s467, 4
        %s469 = scalar_lea.vmem %s7, %s468
        %p470 = pneg %p224
        %p471 = pneg %p221
        %p472 = scmp.lt.s32.totalorder %s29, 1
        %s473 = scalar_select %p472, %s29, 1
        %s474 = smul.addr %s473, 8
        %s475 = scalar_lea.vmem %s8, %s474
        %p476 = pneg %p250
        %p477 = pneg %p247
        %p478 = pneg %p271
        %p479 = pneg %p268
        %p480 = pneg %p292
        %p481 = pneg %p289
        %p482 = pneg %p313
        %p483 = pneg %p310
        %p484 = pneg %p339
        %p485 = pneg %p336
        %s486 = smul.u32 4, %s28
        %p487 = scmp.lt.s32.totalorder %s486, 3
        %s488 = scalar_select %p487, %s486, 3
        %s489 = smul.addr %s488, 8
        %s490 = scalar_lea.vmem %s0, %s489
        %s491 = smul.u32 4, %s28
        %p492 = scmp.lt.s32.totalorder %s29, 1
        %s493 = scalar_select %p492, %s29, 1
        %s494 = smul.addr %s493, 4
        %s495 = smul.addr %s494, 4
        %s496 = scalar_lea.vmem %s4, %s495
        %p497 = scmp.lt.s32.totalorder %s29, 1
        %s498 = scalar_select %p497, %s29, 1
        %s499 = smul.addr %s498, 4
        %s500 = smul.addr %s499, 4
        %s501 = scalar_lea.vmem %s5, %s500
        %p502 = scmp.lt.s32.totalorder %s29, 1
        %s503 = scalar_select %p502, %s29, 1
        %s504 = smul.addr %s503, 4
        %s505 = smul.addr %s504, 4
        %s506 = scalar_lea.vmem %s6, %s505
        %p507 = scmp.lt.s32.totalorder %s29, 1
        %s508 = scalar_select %p507, %s29, 1
        %s509 = smul.addr %s508, 8
        %s510 = smul.addr %s509, 4
        %s511 = scalar_lea.vmem %s7, %s510
        %p512 = scmp.lt.s32.totalorder %s29, 1
        %s513 = scalar_select %p512, %s29, 1
        %s514 = smul.addr %s513, 8
        %s515 = scalar_lea.vmem %s8, %s514
        %p517 = scmp.eq.s32.totalorder %s29, 0
        // Predicated region
        $region69: #{tpu_custom_call.1} parent=67 // pred_check
          %p518 = pneg %p517
        $region70: #{tpu_custom_call.1} parent=67 // pred_check_branch
          %520 = sbr.rel (%p518) target = $region72
        $region71: #{tpu_custom_call.1} parent=67 // pred_region
          %v521 = vld [vmem:[%s3] sm:$0x7]
          %v522 = vld [vmem:[%s490] sm:$0xff]
          %v523 = vld [vmem:[%s490 + $0x8] sm:$0xff]
          %v524 = vld [vmem:[%s490 + $0x10] sm:$0xff]
          %v525 = vld [vmem:[%s490 + $0x18] sm:$0xff]
          %v526 = vpack.c.bf16 %v523, %v522
          %v527 = vpack.c.bf16 %v525, %v524
          %v528 = vld [vmem:[%s2] sm:$0xf]
          %v529 = vld [vmem:[%s2 + $0x4] sm:$0xf]
          %v530 = vlaneseq
          %v531 = vshrl.u32 %v530, 7
          %v532 = vsub.s32 0, %v531
          %v533 = vrot.slane %v521, %v532
          %v536 = vunpack.c.l.b16 %v528
          %v537 = vunpack.c.l.b16 %v529
          %v538 = vpack.c.b16 %v537, %v536
          %vm540 = vcmask 130048
          %v542 = vsel %vm540, %v526, 0
          %v545 = vsel %vm540, %v527, 0
          %547 = vmatprep.subr.bf16.mxu0 0
          %548 = vmatpush1.bf16.msra.mxu0 %v538
          %549 = vmatprep.subr.bf16.mxu0 0
          %550 = vmatpush1.bf16.msra.mxu0 0
          %551 = vmatprep.subr.bf16.mxu0 0
          %552 = vmatpush1.bf16.msra.mxu0 0
          %553 = vmatprep.subr.bf16.mxu0 0
          %554 = vmatpush1.bf16.msra.mxu0 0
          %555 = vmatprep.subr.bf16.mxu0 0
          %556 = vmatpush1.bf16.msra.mxu0 0
          %557 = vmatprep.subr.bf16.mxu0 0
          %558 = vmatpush1.bf16.msra.mxu0 0
          %559 = vmatprep.subr.bf16.mxu0 0
          %560 = vmatpush1.bf16.msra.mxu0 0
          %561 = vmatprep.subr.bf16.mxu0 0
          %562 = vmatpush1.bf16.msra.mxu0 0
          %563 = vmatprep.subr.bf16.mxu0 0
          %564 = vmatpush1.bf16.msra.mxu0 0
          %565 = vmatprep.subr.bf16.mxu0 0
          %566 = vmatpush1.bf16.msra.mxu0 0
          %567 = vmatprep.subr.bf16.mxu0 0
          %568 = vmatpush1.bf16.msra.mxu0 0
          %569 = vmatprep.subr.bf16.mxu0 0
          %570 = vmatpush1.bf16.msra.mxu0 0
          %571 = vmatprep.subr.bf16.mxu0 0
          %572 = vmatpush1.bf16.msra.mxu0 0
          %573 = vmatprep.subr.bf16.mxu0 0
          %574 = vmatpush1.bf16.msra.mxu0 0
          %575 = vmatprep.subr.bf16.mxu0 0
          %576 = vmatpush1.bf16.msra.mxu0 0
          %577 = vmatprep.subr.bf16.mxu0 0
          %578 = vmatpush1.bf16.msra.mxu0 0
          %579 = vmatprep.mubr.bf16.mxu0 0
          %580 = vmatmul.mubr.bf16.gmra.mrb[0].mxu0 %v542
          %v581 = vpop.f32.mrb[0].mxu0
          %v582 = vadd.f32 %v533, %v581
          %v583 = vpop.f32.mrb[0].mxu0
          %v584 = vpop.f32.mrb[0].mxu0
          %v585 = vadd.f32 %v533, %v584
          %v586 = vpop.f32.mrb[0].mxu0
          %587 = vmatprep.mubr.bf16.mxu0 0
          %588 = vmatmul.mubr.bf16.gmra.mrb[0].mxu0 %v545
          %v589 = vpop.f32.mrb[0].mxu0
          %v590 = vadd.f32 %v533, %v589
          %v591 = vpop.f32.mrb[0].mxu0
          %v592 = vpop.f32.mrb[0].mxu0
          %v593 = vadd.f32 %v533, %v592
          %v594 = vpop.f32.mrb[0].mxu0
          %595 = vdwg.mxu0
          %vm596 = vcmask 261120
          %v597 = vsel %vm596, %v582, 0.0
          %598 = vadd.xlane.f32.xlu0 %v597
          %v599 = vpop.xlane.xlu0 %598
          %v600 = vsel %vm596, %v585, 0.0
          %601 = vadd.xlane.f32.xlu0 %v600
          %v602 = vpop.xlane.xlu0 %601
          %v603 = vsel %vm596, %v590, 0.0
          %604 = vadd.xlane.f32.xlu0 %v603
          %v605 = vpop.xlane.xlu0 %604
          %v606 = vsel %vm596, %v593, 0.0
          %607 = vadd.xlane.f32.xlu0 %v606
          %v608 = vpop.xlane.xlu0 %607
          %v609 = vrcp.pop 32.0
          %v610 = vmul.f32 %v599, %v609
          %v611 = vmul.f32 %v602, %v609
          %v612 = vmul.f32 %v605, %v609
          %v613 = vmul.f32 %v608, %v609
          %v614 = vsub.f32 %v582, %v610
          %v615 = vsub.f32 %v585, %v611
          %v616 = vsub.f32 %v590, %v612
          %v617 = vsub.f32 %v593, %v613
          %v618 = vmul.f32 %v614, %v614
          %v619 = vmul.f32 %v615, %v615
          %v620 = vmul.f32 %v616, %v616
          %v621 = vmul.f32 %v617, %v617
          %v622 = vsel %vm596, %v618, 0.0
          %623 = vadd.xlane.f32.xlu0 %v622
          %v624 = vpop.xlane.xlu0 %623
          %v625 = vsel %vm596, %v619, 0.0
          %626 = vadd.xlane.f32.xlu0 %v625
          %v627 = vpop.xlane.xlu0 %626
          %v628 = vsel %vm596, %v620, 0.0
          %629 = vadd.xlane.f32.xlu0 %v628
          %v630 = vpop.xlane.xlu0 %629
          %v631 = vsel %vm596, %v621, 0.0
          %632 = vadd.xlane.f32.xlu0 %v631
          %v633 = vpop.xlane.xlu0 %632
          %v634 = vmul.f32 %v624, %v609
          %v635 = vmul.f32 %v627, %v609
          %v636 = vmul.f32 %v630, %v609
          %v637 = vmul.f32 %v633, %v609
          %v638 = vadd.f32 %v634, 1e-05
          %v639 = vadd.f32 %v635, 1e-05
          %v640 = vadd.f32 %v636, 1e-05
          %v641 = vadd.f32 %v637, 1e-05
          %v642 = vrsqrt.pop %v638
          %v643 = vrsqrt.pop %v639
          %v644 = vrsqrt.pop %v640
          %v645 = vrsqrt.pop %v641
          %v646 = vmul.f32 %v614, %v642
          %v647 = vmul.f32 %v615, %v643
          %v648 = vmul.f32 %v616, %v644
          %v649 = vmul.f32 %v617, %v645
          %v650 = vlaneseq
          %v651 = vshrl.u32 %v650, 7
          %v652 = vsub.s32 1, %v651
          %v653 = vrot.slane %v521, %v652
          %v654 = vmul.f32 %v646, %v653
          %v655 = vmul.f32 %v647, %v653
          %v656 = vmul.f32 %v648, %v653
          %v657 = vmul.f32 %v649, %v653
          %v658 = vlaneseq
          %v659 = vshrl.u32 %v658, 7
          %v660 = vsub.s32 2, %v659
          %v661 = vrot.slane %v521, %v660
          %v662 = vadd.f32 %v654, %v661
          %v663 = vadd.f32 %v655, %v661
          %v664 = vadd.f32 %v656, %v661
          %v665 = vadd.f32 %v657, %v661
          %v666 = vmax.f32 %v662, 0.0
          %v667 = vmax.f32 %v663, 0.0
          %v668 = vmax.f32 %v664, 0.0
          %v669 = vmax.f32 %v665, 0.0
          %v670 = vld [vmem:[%s1] sm:$0xff]
          %v671 = vadd.f32 %v666, %v670
          %v672 = vadd.f32 %v667, %v670
          %v673 = vadd.f32 %v668, %v670
          %v674 = vadd.f32 %v669, %v670
          %675 = vst.msk [vmem:[#allocation2] sm:$0xff] %vm596, %v671
          %676 = vst.msk [vmem:[#allocation2 + $0x8] sm:$0xff] %vm596, %v672
          %677 = vst.msk [vmem:[#allocation2 + $0x10] sm:$0xff] %vm596, %v673
          %678 = vst.msk [vmem:[#allocation2 + $0x18] sm:$0xff] %vm596, %v674
        $region72: #{tpu_custom_call.1} parent=67 // pred_fallthru
          _
        %v679 = vld [vmem:[%s515] sm:$0xff]
        %v680 = vld [vmem:[#allocation2] sm:$0xff]
        %v681 = vld [vmem:[#allocation2 + $0x8] sm:$0xff]
        %v682 = vld [vmem:[#allocation2 + $0x10] sm:$0xff]
        %v683 = vld [vmem:[#allocation2 + $0x18] sm:$0xff]
        %vm684 = vcmask 261120
        %v685 = vsel %vm684, %v680, 0.0
        %686 = vadd.xlane.f32.xlu0 %v685
        %v687 = vpop.xlane.xlu0 %686
        %v688 = vsel %vm684, %v681, 0.0
        %689 = vadd.xlane.f32.xlu0 %v688
        %v690 = vpop.xlane.xlu0 %689
        %v691 = vsel %vm684, %v682, 0.0
        %692 = vadd.xlane.f32.xlu0 %v691
        %v693 = vpop.xlane.xlu0 %692
        %v694 = vsel %vm684, %v683, 0.0
        %695 = vadd.xlane.f32.xlu0 %v694
        %v696 = vpop.xlane.xlu0 %695
        %v697 = vrcp.pop 32.0
        %v698 = vmul.f32 %v687, %v697
        %v699 = vmul.f32 %v690, %v697
        %v700 = vmul.f32 %v693, %v697
        %v701 = vmul.f32 %v696, %v697
        %v702 = vsub.f32 %v680, %v698
        %v703 = vsub.f32 %v681, %v699
        %v704 = vsub.f32 %v682, %v700
        %v705 = vsub.f32 %v683, %v701
        %v706 = vmul.f32 %v702, %v702
        %v707 = vmul.f32 %v703, %v703
        %v708 = vmul.f32 %v704, %v704
        %v709 = vmul.f32 %v705, %v705
        %v710 = vsel %vm684, %v706, 0.0
        %711 = vadd.xlane.f32.xlu0 %v710
        %v712 = vpop.xlane.xlu0 %711
        %v713 = vsel %vm684, %v707, 0.0
        %714 = vadd.xlane.f32.xlu0 %v713
        %v715 = vpop.xlane.xlu0 %714
        %v716 = vsel %vm684, %v708, 0.0
        %717 = vadd.xlane.f32.xlu0 %v716
        %v718 = vpop.xlane.xlu0 %717
        %v719 = vsel %vm684, %v709, 0.0
        %720 = vadd.xlane.f32.xlu0 %v719
        %v721 = vpop.xlane.xlu0 %720
        %v722 = vmul.f32 %v712, %v697
        %v723 = vmul.f32 %v715, %v697
        %v724 = vmul.f32 %v718, %v697
        %v725 = vmul.f32 %v721, %v697
        %v726 = vadd.f32 %v722, 1e-05
        %v727 = vadd.f32 %v723, 1e-05
        %v728 = vadd.f32 %v724, 1e-05
        %v729 = vadd.f32 %v725, 1e-05
        %v730 = vrsqrt.pop %v726
        %v731 = vrsqrt.pop %v727
        %v732 = vrsqrt.pop %v728
        %v733 = vrsqrt.pop %v729
        %v734 = vmul.f32 %v702, %v730
        %v735 = vmul.f32 %v703, %v731
        %v736 = vmul.f32 %v704, %v732
        %v737 = vmul.f32 %v705, %v733
        %v738 = vlaneseq
        %v739 = vshrl.u32 %v738, 7
        %v740 = vsub.s32 4, %v739
        %v741 = vrot.slane %v679, %v740
        %v742 = vmul.f32 %v734, %v741
        %v743 = vmul.f32 %v735, %v741
        %v744 = vmul.f32 %v736, %v741
        %v745 = vmul.f32 %v737, %v741
        %v746 = vlaneseq
        %v747 = vshrl.u32 %v746, 7
        %v748 = vsub.s32 5, %v747
        %v749 = vrot.slane %v679, %v748
        %v750 = vadd.f32 %v742, %v749
        %v751 = vadd.f32 %v743, %v749
        %v752 = vadd.f32 %v744, %v749
        %v753 = vadd.f32 %v745, %v749
        %v754 = vpack.c.bf16 %v751, %v750
        %v755 = vpack.c.bf16 %v753, %v752
        %v756 = vld [vmem:[%s496] sm:$0xf]
        %v757 = vld [vmem:[%s496 + $0x4] sm:$0xf]
        %v758 = vld [vmem:[%s496 + $0x8] sm:$0xf]
        %v759 = vld [vmem:[%s496 + $0xc] sm:$0xf]
        %v760 = vlaneseq
        %v761 = vshrl.u32 %v760, 7
        %v762 = vsub.s32 0, %v761
        %v763 = vrot.slane %v679, %v762
        %v768 = vunpack.c.l.b16 %v756
        %v769 = vunpack.c.l.b16 %v757
        %v770 = vunpack.c.l.b16 %v758
        %v771 = vunpack.c.l.b16 %v759
        %v772 = vpack.c.b16 %v769, %v768
        %v773 = vpack.c.b16 %v771, %v770
        %v777 = vsel %vm684, %v754, 0
        %v780 = vsel %vm684, %v755, 0
        %782 = vmatprep.subr.bf16.mxu0 0
        %783 = vmatpush1.bf16.msra.mxu0 %v772
        %784 = vmatprep.subr.bf16.mxu0 0
        %785 = vmatpush1.bf16.msra.mxu0 %v773
        %786 = vmatprep.subr.bf16.mxu0 0
        %787 = vmatpush1.bf16.msra.mxu0 0
        %788 = vmatprep.subr.bf16.mxu0 0
        %789 = vmatpush1.bf16.msra.mxu0 0
        %790 = vmatprep.subr.bf16.mxu0 0
        %791 = vmatpush1.bf16.msra.mxu0 0
        %792 = vmatprep.subr.bf16.mxu0 0
        %793 = vmatpush1.bf16.msra.mxu0 0
        %794 = vmatprep.subr.bf16.mxu0 0
        %795 = vmatpush1.bf16.msra.mxu0 0
        %796 = vmatprep.subr.bf16.mxu0 0
        %797 = vmatpush1.bf16.msra.mxu0 0
        %798 = vmatprep.subr.bf16.mxu0 0
        %799 = vmatpush1.bf16.msra.mxu0 0
        %800 = vmatprep.subr.bf16.mxu0 0
        %801 = vmatpush1.bf16.msra.mxu0 0
        %802 = vmatprep.subr.bf16.mxu0 0
        %803 = vmatpush1.bf16.msra.mxu0 0
        %804 = vmatprep.subr.bf16.mxu0 0
        %805 = vmatpush1.bf16.msra.mxu0 0
        %806 = vmatprep.subr.bf16.mxu0 0
        %807 = vmatpush1.bf16.msra.mxu0 0
        %808 = vmatprep.subr.bf16.mxu0 0
        %809 = vmatpush1.bf16.msra.mxu0 0
        %810 = vmatprep.subr.bf16.mxu0 0
        %811 = vmatpush1.bf16.msra.mxu0 0
        %812 = vmatprep.subr.bf16.mxu0 0
        %813 = vmatpush1.bf16.msra.mxu0 0
        %814 = vmatprep.mubr.bf16.mxu0 0
        %815 = vmatmul.mubr.bf16.gmra.mrb[0].mxu0 %v777
        %v816 = vpop.f32.mrb[0].mxu0
        %v817 = vadd.f32 %v763, %v816
        %v818 = vpop.f32.mrb[0].mxu0
        %v819 = vpop.f32.mrb[0].mxu0
        %v820 = vadd.f32 %v763, %v819
        %v821 = vpop.f32.mrb[0].mxu0
        %822 = vmatprep.mubr.bf16.mxu0 0
        %823 = vmatmul.mubr.bf16.gmra.mrb[0].mxu0 %v780
        %v824 = vpop.f32.mrb[0].mxu0
        %v825 = vadd.f32 %v763, %v824
        %v826 = vpop.f32.mrb[0].mxu0
        %v827 = vpop.f32.mrb[0].mxu0
        %v828 = vadd.f32 %v763, %v827
        %v829 = vpop.f32.mrb[0].mxu0
        %830 = vdwg.mxu0
        %835 = vrot.lane.b32.xlu0 %v817, 120
        %v836 = vpop.permute.xlu0 %835
        %837 = vrot.lane.b32.xlu0 %v820, 120
        %v838 = vpop.permute.xlu0 %837
        %839 = vrot.lane.b32.xlu0 %v825, 120
        %v840 = vpop.permute.xlu0 %839
        %841 = vrot.lane.b32.xlu0 %v828, 120
        %v842 = vpop.permute.xlu0 %841
        %847 = vrot.lane.b32.xlu0 %v817, 112
        %v848 = vpop.permute.xlu0 %847
        %849 = vrot.lane.b32.xlu0 %v820, 112
        %v850 = vpop.permute.xlu0 %849
        %851 = vrot.lane.b32.xlu0 %v825, 112
        %v852 = vpop.permute.xlu0 %851
        %853 = vrot.lane.b32.xlu0 %v828, 112
        %v854 = vpop.permute.xlu0 %853
        %859 = vrot.lane.b32.xlu0 %v817, 104
        %v860 = vpop.permute.xlu0 %859
        %861 = vrot.lane.b32.xlu0 %v820, 104
        %v862 = vpop.permute.xlu0 %861
        %863 = vrot.lane.b32.xlu0 %v825, 104
        %v864 = vpop.permute.xlu0 %863
        %865 = vrot.lane.b32.xlu0 %v828, 104
        %v866 = vpop.permute.xlu0 %865
        %v871 = vpack.c.bf16 %v817, %v817
        %v872 = vpack.c.bf16 %v820, %v820
        %v873 = vpack.c.bf16 %v825, %v825
        %v874 = vpack.c.bf16 %v828, %v828
        %v875 = vpack.c.bf16 %v836, %v836
        %v876 = vpack.c.bf16 %v838, %v838
        %v877 = vpack.c.bf16 %v840, %v840
        %v878 = vpack.c.bf16 %v842, %v842
        %v879 = vpack.c.bf16 %v848, %v848
        %v880 = vpack.c.bf16 %v850, %v850
        %v881 = vpack.c.bf16 %v852, %v852
        %v882 = vpack.c.bf16 %v854, %v854
        %v883 = vpack.c.bf16 %v860, %v860
        %v884 = vpack.c.bf16 %v862, %v862
        %v885 = vpack.c.bf16 %v864, %v864
        %v886 = vpack.c.bf16 %v866, %v866
        %888 = vrot.lane.b32.xlu0 %v871, 96
        %v889 = vpop.permute.xlu0 %888
        %vm890 = vcmask 64512
        %v892 = vsel %vm890, %v871, 0
        %v895 = vsel %vm890, %v889, 0
        %897 = vmatprep.subr.bf16.mxu0 0
        %898 = vmatpush1.bf16.xpose.msra.mxu0 %v895
        %899 = vmatprep.subr.bf16.mxu0 0
        %900 = vmatpush1.bf16.xpose.msra.mxu0 0
        %901 = vmatprep.subr.bf16.mxu0 0
        %902 = vmatpush1.bf16.xpose.msra.mxu0 0
        %903 = vmatprep.subr.bf16.mxu0 0
        %904 = vmatpush1.bf16.xpose.msra.mxu0 0
        %905 = vmatprep.subr.bf16.mxu0 0
        %906 = vmatpush1.bf16.xpose.msra.mxu0 0
        %907 = vmatprep.subr.bf16.mxu0 0
        %908 = vmatpush1.bf16.xpose.msra.mxu0 0
        %909 = vmatprep.subr.bf16.mxu0 0
        %910 = vmatpush1.bf16.xpose.msra.mxu0 0
        %911 = vmatprep.subr.bf16.mxu0 0
        %912 = vmatpush1.bf16.xpose.msra.mxu0 0
        %913 = vmatprep.subr.bf16.mxu0 0
        %914 = vmatpush1.bf16.xpose.msra.mxu0 0
        %915 = vmatprep.subr.bf16.mxu0 0
        %916 = vmatpush1.bf16.xpose.msra.mxu0 0
        %917 = vmatprep.subr.bf16.mxu0 0
        %918 = vmatpush1.bf16.xpose.msra.mxu0 0
        %919 = vmatprep.subr.bf16.mxu0 0
        %920 = vmatpush1.bf16.xpose.msra.mxu0 0
        %921 = vmatprep.subr.bf16.mxu0 0
        %922 = vmatpush1.bf16.xpose.msra.mxu0 0
        %923 = vmatprep.subr.bf16.mxu0 0
        %924 = vmatpush1.bf16.xpose.msra.mxu0 0
        %925 = vmatprep.subr.bf16.mxu0 0
        %926 = vmatpush1.bf16.xpose.msra.mxu0 0
        %927 = vmatprep.subr.bf16.mxu0 0
        %928 = vmatpush1.bf16.xpose.msra.mxu0 0
        %929 = vmatprep.mubr.bf16.mxu0 0
        %930 = vmatmul.mubr.bf16.gmra.mrb[0].mxu0 %v892
        %v931 = vpop.f32.mrb[0].mxu0
        %v932 = vadd.f32 0.0, %v931
        %v933 = vpop.f32.mrb[0].mxu0
        %v934 = vpop.f32.mrb[0].mxu0
        %v935 = vpop.f32.mrb[0].mxu0
        %936 = vdwg.mxu0
        %938 = vrot.lane.b32.xlu0 %v872, 96
        %v939 = vpop.permute.xlu0 %938
        %v941 = vsel %vm890, %v872, 0
        %v944 = vsel %vm890, %v939, 0
        %946 = vmatprep.subr.bf16.mxu0 0
        %947 = vmatpush1.bf16.xpose.msra.mxu0 %v944
        %948 = vmatprep.subr.bf16.mxu0 0
        %949 = vmatpush1.bf16.xpose.msra.mxu0 0
        %950 = vmatprep.subr.bf16.mxu0 0
        %951 = vmatpush1.bf16.xpose.msra.mxu0 0
        %952 = vmatprep.subr.bf16.mxu0 0
        %953 = vmatpush1.bf16.xpose.msra.mxu0 0
        %954 = vmatprep.subr.bf16.mxu0 0
        %955 = vmatpush1.bf16.xpose.msra.mxu0 0
        %956 = vmatprep.subr.bf16.mxu0 0
        %957 = vmatpush1.bf16.xpose.msra.mxu0 0
        %958 = vmatprep.subr.bf16.mxu0 0
        %959 = vmatpush1.bf16.xpose.msra.mxu0 0
        %960 = vmatprep.subr.bf16.mxu0 0
        %961 = vmatpush1.bf16.xpose.msra.mxu0 0
        %962 = vmatprep.subr.bf16.mxu0 0
        %963 = vmatpush1.bf16.xpose.msra.mxu0 0
        %964 = vmatprep.subr.bf16.mxu0 0
        %965 = vmatpush1.bf16.xpose.msra.mxu0 0
        %966 = vmatprep.subr.bf16.mxu0 0
        %967 = vmatpush1.bf16.xpose.msra.mxu0 0
        %968 = vmatprep.subr.bf16.mxu0 0
        %969 = vmatpush1.bf16.xpose.msra.mxu0 0
        %970 = vmatprep.subr.bf16.mxu0 0
        %971 = vmatpush1.bf16.xpose.msra.mxu0 0
        %972 = vmatprep.subr.bf16.mxu0 0
        %973 = vmatpush1.bf16.xpose.msra.mxu0 0
        %974 = vmatprep.subr.bf16.mxu0 0
        %975 = vmatpush1.bf16.xpose.msra.mxu0 0
        %976 = vmatprep.subr.bf16.mxu0 0
        %977 = vmatpush1.bf16.xpose.msra.mxu0 0
        %978 = vmatprep.mubr.bf16.mxu0 0
        %979 = vmatmul.mubr.bf16.gmra.mrb[0].mxu0 %v941
        %v980 = vpop.f32.mrb[0].mxu0
        %v981 = vadd.f32 0.0, %v980
        %v982 = vpop.f32.mrb[0].mxu0
        %v983 = vpop.f32.mrb[0].mxu0
        %v984 = vpop.f32.mrb[0].mxu0
        %985 = vdwg.mxu0
        %987 = vrot.lane.b32.xlu0 %v873, 96
        %v988 = vpop.permute.xlu0 %987
        %v990 = vsel %vm890, %v873, 0
        %v993 = vsel %vm890, %v988, 0
        %995 = vmatprep.subr.bf16.mxu0 0
        %996 = vmatpush1.bf16.xpose.msra.mxu0 %v993
        %997 = vmatprep.subr.bf16.mxu0 0
        %998 = vmatpush1.bf16.xpose.msra.mxu0 0
        %999 = vmatprep.subr.bf16.mxu0 0
        %1000 = vmatpush1.bf16.xpose.msra.mxu0 0
        %1001 = vmatprep.subr.bf16.mxu0 0
        %1002 = vmatpush1.bf16.xpose.msra.mxu0 0
        %1003 = vmatprep.subr.bf16.mxu0 0
        %1004 = vmatpush1.bf16.xpose.msra.mxu0 0
        %1005 = vmatprep.subr.bf16.mxu0 0
        %1006 = vmatpush1.bf16.xpose.msra.mxu0 0
        %1007 = vmatprep.subr.bf16.mxu0 0
        %1008 = vmatpush1.bf16.xpose.msra.mxu0 0
        %1009 = vmatprep.subr.bf16.mxu0 0
        %1010 = vmatpush1.bf16.xpose.msra.mxu0 0
        %1011 = vmatprep.subr.bf16.mxu0 0
        %1012 = vmatpush1.bf16.xpose.msra.mxu0 0
        %1013 = vmatprep.subr.bf16.mxu0 0
        %1014 = vmatpush1.bf16.xpose.msra.mxu0 0
        %1015 = vmatprep.subr.bf16.mxu0 0
        %1016 = vmatpush1.bf16.xpose.msra.mxu0 0
        %1017 = vmatprep.subr.bf16.mxu0 0
        %1018 = vmatpush1.bf16.xpose.msra.mxu0 0
        %1019 = vmatprep.subr.bf16.mxu0 0
        %1020 = vmatpush1.bf16.xpose.msra.mxu0 0
        %1021 = vmatprep.subr.bf16.mxu0 0
        %1022 = vmatpush1.bf16.xpose.msra.mxu0 0
        %1023 = vmatprep.subr.bf16.mxu0 0
        %1024 = vmatpush1.bf16.xpose.msra.mxu0 0
        %1025 = vmatprep.subr.bf16.mxu0 0
        %1026 = vmatpush1.bf16.xpose.msra.mxu0 0
        %1027 = vmatprep.mubr.bf16.mxu0 0
        %1028 = vmatmul.mubr.bf16.gmra.mrb[0].mxu0 %v990
        %v1029 = vpop.f32.mrb[0].mxu0
        %v1030 = vadd.f32 0.0, %v1029
        %v1031 = vpop.f32.mrb[0].mxu0
        %v1032 = vpop.f32.mrb[0].mxu0
        %v1033 = vpop.f32.mrb[0].mxu0
        %1034 = vdwg.mxu0
        %1036 = vrot.lane.b32.xlu0 %v874, 96
        %v1037 = vpop.permute.xlu0 %1036
        %v1039 = vsel %vm890, %v874, 0
        %v1042 = vsel %vm890, %v1037, 0
        %1044 = vmatprep.subr.bf16.mxu0 0
        %1045 = vmatpush1.bf16.xpose.msra.mxu0 %v1042
        %1046 = vmatprep.subr.bf16.mxu0 0
        %1047 = vmatpush1.bf16.xpose.msra.mxu0 0
        %1048 = vmatprep.subr.bf16.mxu0 0
        %1049 = vmatpush1.bf16.xpose.msra.mxu0 0
        %1050 = vmatprep.subr.bf16.mxu0 0
        %1051 = vmatpush1.bf16.xpose.msra.mxu0 0
        %1052 = vmatprep.subr.bf16.mxu0 0
        %1053 = vmatpush1.bf16.xpose.msra.mxu0 0
        %1054 = vmatprep.subr.bf16.mxu0 0
        %1055 = vmatpush1.bf16.xpose.msra.mxu0 0
        %1056 = vmatprep.subr.bf16.mxu0 0
        %1057 = vmatpush1.bf16.xpose.msra.mxu0 0
        %1058 = vmatprep.subr.bf16.mxu0 0
        %1059 = vmatpush1.bf16.xpose.msra.mxu0 0
        %1060 = vmatprep.subr.bf16.mxu0 0
        %1061 = vmatpush1.bf16.xpose.msra.mxu0 0
        %1062 = vmatprep.subr.bf16.mxu0 0
        %1063 = vmatpush1.bf16.xpose.msra.mxu0 0
        %1064 = vmatprep.subr.bf16.mxu0 0
        %1065 = vmatpush1.bf16.xpose.msra.mxu0 0
        %1066 = vmatprep.subr.bf16.mxu0 0
        %1067 = vmatpush1.bf16.xpose.msra.mxu0 0
        %1068 = vmatprep.subr.bf16.mxu0 0
        %1069 = vmatpush1.bf16.xpose.msra.mxu0 0
        %1070 = vmatprep.subr.bf16.mxu0 0
        %1071 = vmatpush1.bf16.xpose.msra.mxu0 0
        %1072 = vmatprep.subr.bf16.mxu0 0
        %1073 = vmatpush1.bf16.xpose.msra.mxu0 0
        %1074 = vmatprep.subr.bf16.mxu0 0
        %1075 = vmatpush1.bf16.xpose.msra.mxu0 0
        %1076 = vmatprep.mubr.bf16.mxu0 0
        %1077 = vmatmul.mubr.bf16.gmra.mrb[0].mxu0 %v1039
        %v1078 = vpop.f32.mrb[0].mxu0
        %v1079 = vadd.f32 0.0, %v1078
        %v1080 = vpop.f32.mrb[0].mxu0
        %v1081 = vpop.f32.mrb[0].mxu0
        %v1082 = vpop.f32.mrb[0].mxu0
        %1083 = vdwg.mxu0
        %1085 = vrot.lane.b32.xlu0 %v875, 96
        %v1086 = vpop.permute.xlu0 %1085
        %v1088 = vsel %vm890, %v875, 0
        %v1091 = vsel %vm890, %v1086, 0
        %1093 = vmatprep.subr.bf16.mxu0 0
        %1094 = vmatpush1.bf16.xpose.msra.mxu0 %v1091
        %1095 = vmatprep.subr.bf16.mxu0 0
        %1096 = vmatpush1.bf16.xpose.msra.mxu0 0
        %1097 = vmatprep.subr.bf16.mxu0 0
        %1098 = vmatpush1.bf16.xpose.msra.mxu0 0
        %1099 = vmatprep.subr.bf16.mxu0 0
        %1100 = vmatpush1.bf16.xpose.msra.mxu0 0
        %1101 = vmatprep.subr.bf16.mxu0 0
        %1102 = vmatpush1.bf16.xpose.msra.mxu0 0
        %1103 = vmatprep.subr.bf16.mxu0 0
        %1104 = vmatpush1.bf16.xpose.msra.mxu0 0
        %1105 = vmatprep.subr.bf16.mxu0 0
        %1106 = vmatpush1.bf16.xpose.msra.mxu0 0
        %1107 = vmatprep.subr.bf16.mxu0 0
        %1108 = vmatpush1.bf16.xpose.msra.mxu0 0
        %1109 = vmatprep.subr.bf16.mxu0 0
        %1110 = vmatpush1.bf16.xpose.msra.mxu0 0
        %1111 = vmatprep.subr.bf16.mxu0 0
        %1112 = vmatpush1.bf16.xpose.msra.mxu0 0
        %1113 = vmatprep.subr.bf16.mxu0 0
        %1114 = vmatpush1.bf16.xpose.msra.mxu0 0
        %1115 = vmatprep.subr.bf16.mxu0 0
        %1116 = vmatpush1.bf16.xpose.msra.mxu0 0
        %1117 = vmatprep.subr.bf16.mxu0 0
        %1118 = vmatpush1.bf16.xpose.msra.mxu0 0
        %1119 = vmatprep.subr.bf16.mxu0 0
        %1120 = vmatpush1.bf16.xpose.msra.mxu0 0
        %1121 = vmatprep.subr.bf16.mxu0 0
        %1122 = vmatpush1.bf16.xpose.msra.mxu0 0
        %1123 = vmatprep.subr.bf16.mxu0 0
        %1124 = vmatpush1.bf16.xpose.msra.mxu0 0
        %1125 = vmatprep.mubr.bf16.mxu0 0
        %1126 = vmatmul.mubr.bf16.gmra.mrb[0].mxu0 %v1088
        %v1127 = vpop.f32.mrb[0].mxu0
        %v1128 = vadd.f32 0.0, %v1127
        %v1129 = vpop.f32.mrb[0].mxu0
        %v1130 = vpop.f32.mrb[0].mxu0
        %v1131 = vpop.f32.mrb[0].mxu0
        %1132 = vdwg.mxu0
        %1134 = vrot.lane.b32.xlu0 %v876, 96
        %v1135 = vpop.permute.xlu0 %1134
        %v1137 = vsel %vm890, %v876, 0
        %v1140 = vsel %vm890, %v1135, 0
        %1142 = vmatprep.subr.bf16.mxu0 0
        %1143 = vmatpush1.bf16.xpose.msra.mxu0 %v1140
        %1144 = vmatprep.subr.bf16.mxu0 0
        %1145 = vmatpush1.bf16.xpose.msra.mxu0 0
        %1146 = vmatprep.subr.bf16.mxu0 0
        %1147 = vmatpush1.bf16.xpose.msra.mxu0 0
        %1148 = vmatprep.subr.bf16.mxu0 0
        %1149 = vmatpush1.bf16.xpose.msra.mxu0 0
        %1150 = vmatprep.subr.bf16.mxu0 0
        %1151 = vmatpush1.bf16.xpose.msra.mxu0 0
        %1152 = vmatprep.subr.bf16.mxu0 0
        %1153 = vmatpush1.bf16.xpose.msra.mxu0 0
        %1154 = vmatprep.subr.bf16.mxu0 0
        %1155 = vmatpush1.bf16.xpose.msra.mxu0 0
        %1156 = vmatprep.subr.bf16.mxu0 0
        %1157 = vmatpush1.bf16.xpose.msra.mxu0 0
        %1158 = vmatprep.subr.bf16.mxu0 0
        %1159 = vmatpush1.bf16.xpose.msra.mxu0 0
        %1160 = vmatprep.subr.bf16.mxu0 0
        %1161 = vmatpush1.bf16.xpose.msra.mxu0 0
        %1162 = vmatprep.subr.bf16.mxu0 0
        %1163 = vmatpush1.bf16.xpose.msra.mxu0 0
        %1164 = vmatprep.subr.bf16.mxu0 0
        %1165 = vmatpush1.bf16.xpose.msra.mxu0 0
        %1166 = vmatprep.subr.bf16.mxu0 0
        %1167 = vmatpush1.bf16.xpose.msra.mxu0 0
        %1168 = vmatprep.subr.bf16.mxu0 0
        %1169 = vmatpush1.bf16.xpose.msra.mxu0 0
        %1170 = vmatprep.subr.bf16.mxu0 0
        %1171 = vmatpush1.bf16.xpose.msra.mxu0 0
        %1172 = vmatprep.subr.bf16.mxu0 0
        %1173 = vmatpush1.bf16.xpose.msra.mxu0 0
        %1174 = vmatprep.mubr.bf16.mxu0 0
        %1175 = vmatmul.mubr.bf16.gmra.mrb[0].mxu0 %v1137
        %v1176 = vpop.f32.mrb[0].mxu0
        %v1177 = vadd.f32 0.0, %v1176
        %v1178 = vpop.f32.mrb[0].mxu0
        %v1179 = vpop.f32.mrb[0].mxu0
        %v1180 = vpop.f32.mrb[0].mxu0
        %1181 = vdwg.mxu0
        %1183 = vrot.lane.b32.xlu0 %v877, 96
        %v1184 = vpop.permute.xlu0 %1183
        %v1186 = vsel %vm890, %v877, 0
        %v1189 = vsel %vm890, %v1184, 0
        %1191 = vmatprep.subr.bf16.mxu0 0
        %1192 = vmatpush1.bf16.xpose.msra.mxu0 %v1189
        %1193 = vmatprep.subr.bf16.mxu0 0
        %1194 = vmatpush1.bf16.xpose.msra.mxu0 0
        %1195 = vmatprep.subr.bf16.mxu0 0
        %1196 = vmatpush1.bf16.xpose.msra.mxu0 0
        %1197 = vmatprep.subr.bf16.mxu0 0
        %1198 = vmatpush1.bf16.xpose.msra.mxu0 0
        %1199 = vmatprep.subr.bf16.mxu0 0
        %1200 = vmatpush1.bf16.xpose.msra.mxu0 0
        %1201 = vmatprep.subr.bf16.mxu0 0
        %1202 = vmatpush1.bf16.xpose.msra.mxu0 0
        %1203 = vmatprep.subr.bf16.mxu0 0
        %1204 = vmatpush1.bf16.xpose.msra.mxu0 0
        %1205 = vmatprep.subr.bf16.mxu0 0
        %1206 = vmatpush1.bf16.xpose.msra.mxu0 0
        %1207 = vmatprep.subr.bf16.mxu0 0
        %1208 = vmatpush1.bf16.xpose.msra.mxu0 0
        %1209 = vmatprep.subr.bf16.mxu0 0
        %1210 = vmatpush1.bf16.xpose.msra.mxu0 0
        %1211 = vmatprep.subr.bf16.mxu0 0
        %1212 = vmatpush1.bf16.xpose.msra.mxu0 0
        %1213 = vmatprep.subr.bf16.mxu0 0
        %1214 = vmatpush1.bf16.xpose.msra.mxu0 0
        %1215 = vmatprep.subr.bf16.mxu0 0
        %1216 = vmatpush1.bf16.xpose.msra.mxu0 0
        %1217 = vmatprep.subr.bf16.mxu0 0
        %1218 = vmatpush1.bf16.xpose.msra.mxu0 0
        %1219 = vmatprep.subr.bf16.mxu0 0
        %1220 = vmatpush1.bf16.xpose.msra.mxu0 0
        %1221 = vmatprep.subr.bf16.mxu0 0
        %1222 = vmatpush1.bf16.xpose.msra.mxu0 0
        %1223 = vmatprep.mubr.bf16.mxu0 0
        %1224 = vmatmul.mubr.bf16.gmra.mrb[0].mxu0 %v1186
        %v1225 = vpop.f32.mrb[0].mxu0
        %v1226 = vadd.f32 0.0, %v1225
        %v1227 = vpop.f32.mrb[0].mxu0
        %v1228 = vpop.f32.mrb[0].mxu0
        %v1229 = vpop.f32.mrb[0].mxu0
        %1230 = vdwg.mxu0
        %1232 = vrot.lane.b32.xlu0 %v878, 96
        %v1233 = vpop.permute.xlu0 %1232
        %v1235 = vsel %vm890, %v878, 0
        %v1238 = vsel %vm890, %v1233, 0
        %1240 = vmatprep.subr.bf16.mxu0 0
        %1241 = vmatpush1.bf16.xpose.msra.mxu0 %v1238
        %1242 = vmatprep.subr.bf16.mxu0 0
        %1243 = vmatpush1.bf16.xpose.msra.mxu0 0
        %1244 = vmatprep.subr.bf16.mxu0 0
        %1245 = vmatpush1.bf16.xpose.msra.mxu0 0
        %1246 = vmatprep.subr.bf16.mxu0 0
        %1247 = vmatpush1.bf16.xpose.msra.mxu0 0
        %1248 = vmatprep.subr.bf16.mxu0 0
        %1249 = vmatpush1.bf16.xpose.msra.mxu0 0
        %1250 = vmatprep.subr.bf16.mxu0 0
        %1251 = vmatpush1.bf16.xpose.msra.mxu0 0
        %1252 = vmatprep.subr.bf16.mxu0 0
        %1253 = vmatpush1.bf16.xpose.msra.mxu0 0
        %1254 = vmatprep.subr.bf16.mxu0 0
        %1255 = vmatpush1.bf16.xpose.msra.mxu0 0
        %1256 = vmatprep.subr.bf16.mxu0 0
        %1257 = vmatpush1.bf16.xpose.msra.mxu0 0
        %1258 = vmatprep.subr.bf16.mxu0 0
        %1259 = vmatpush1.bf16.xpose.msra.mxu0 0
        %1260 = vmatprep.subr.bf16.mxu0 0
        %1261 = vmatpush1.bf16.xpose.msra.mxu0 0
        %1262 = vmatprep.subr.bf16.mxu0 0
        %1263 = vmatpush1.bf16.xpose.msra.mxu0 0
        %1264 = vmatprep.subr.bf16.mxu0 0
        %1265 = vmatpush1.bf16.xpose.msra.mxu0 0
        %1266 = vmatprep.subr.bf16.mxu0 0
        %1267 = vmatpush1.bf16.xpose.msra.mxu0 0
        %1268 = vmatprep.subr.bf16.mxu0 0
        %1269 = vmatpush1.bf16.xpose.msra.mxu0 0
        %1270 = vmatprep.subr.bf16.mxu0 0
        %1271 = vmatpush1.bf16.xpose.msra.mxu0 0
        %1272 = vmatprep.mubr.bf16.mxu0 0
        %1273 = vmatmul.mubr.bf16.gmra.mrb[0].mxu0 %v1235
        %v1274 = vpop.f32.mrb[0].mxu0
        %v1275 = vadd.f32 0.0, %v1274
        %v1276 = vpop.f32.mrb[0].mxu0
        %v1277 = vpop.f32.mrb[0].mxu0
        %v1278 = vpop.f32.mrb[0].mxu0
        %1279 = vdwg.mxu0
        %1281 = vrot.lane.b32.xlu0 %v879, 96
        %v1282 = vpop.permute.xlu0 %1281
        %v1284 = vsel %vm890, %v879, 0
        %v1287 = vsel %vm890, %v1282, 0
        %1289 = vmatprep.subr.bf16.mxu0 0
        %1290 = vmatpush1.bf16.xpose.msra.mxu0 %v1287
        %1291 = vmatprep.subr.bf16.mxu0 0
        %1292 = vmatpush1.bf16.xpose.msra.mxu0 0
        %1293 = vmatprep.subr.bf16.mxu0 0
        %1294 = vmatpush1.bf16.xpose.msra.mxu0 0
        %1295 = vmatprep.subr.bf16.mxu0 0
        %1296 = vmatpush1.bf16.xpose.msra.mxu0 0
        %1297 = vmatprep.subr.bf16.mxu0 0
        %1298 = vmatpush1.bf16.xpose.msra.mxu0 0
        %1299 = vmatprep.subr.bf16.mxu0 0
        %1300 = vmatpush1.bf16.xpose.msra.mxu0 0
        %1301 = vmatprep.subr.bf16.mxu0 0
        %1302 = vmatpush1.bf16.xpose.msra.mxu0 0
        %1303 = vmatprep.subr.bf16.mxu0 0
        %1304 = vmatpush1.bf16.xpose.msra.mxu0 0
        %1305 = vmatprep.subr.bf16.mxu0 0
        %1306 = vmatpush1.bf16.xpose.msra.mxu0 0
        %1307 = vmatprep.subr.bf16.mxu0 0
        %1308 = vmatpush1.bf16.xpose.msra.mxu0 0
        %1309 = vmatprep.subr.bf16.mxu0 0
        %1310 = vmatpush1.bf16.xpose.msra.mxu0 0
        %1311 = vmatprep.subr.bf16.mxu0 0
        %1312 = vmatpush1.bf16.xpose.msra.mxu0 0
        %1313 = vmatprep.subr.bf16.mxu0 0
        %1314 = vmatpush1.bf16.xpose.msra.mxu0 0
        %1315 = vmatprep.subr.bf16.mxu0 0
        %1316 = vmatpush1.bf16.xpose.msra.mxu0 0
        %1317 = vmatprep.subr.bf16.mxu0 0
        %1318 = vmatpush1.bf16.xpose.msra.mxu0 0
        %1319 = vmatprep.subr.bf16.mxu0 0
        %1320 = vmatpush1.bf16.xpose.msra.mxu0 0
        %1321 = vmatprep.mubr.bf16.mxu0 0
        %1322 = vmatmul.mubr.bf16.gmra.mrb[0].mxu0 %v1284
        %v1323 = vpop.f32.mrb[0].mxu0
        %v1324 = vadd.f32 0.0, %v1323
        %v1325 = vpop.f32.mrb[0].mxu0
        %v1326 = vpop.f32.mrb[0].mxu0
        %v1327 = vpop.f32.mrb[0].mxu0
        %1328 = vdwg.mxu0
        %1330 = vrot.lane.b32.xlu0 %v880, 96
        %v1331 = vpop.permute.xlu0 %1330
        %v1333 = vsel %vm890, %v880, 0
        %v1336 = vsel %vm890, %v1331, 0
        %1338 = vmatprep.subr.bf16.mxu0 0
        %1339 = vmatpush1.bf16.xpose.msra.mxu0 %v1336
        %1340 = vmatprep.subr.bf16.mxu0 0
        %1341 = vmatpush1.bf16.xpose.msra.mxu0 0
        %1342 = vmatprep.subr.bf16.mxu0 0
        %1343 = vmatpush1.bf16.xpose.msra.mxu0 0
        %1344 = vmatprep.subr.bf16.mxu0 0
        %1345 = vmatpush1.bf16.xpose.msra.mxu0 0
        %1346 = vmatprep.subr.bf16.mxu0 0
        %1347 = vmatpush1.bf16.xpose.msra.mxu0 0
        %1348 = vmatprep.subr.bf16.mxu0 0
        %1349 = vmatpush1.bf16.xpose.msra.mxu0 0
        %1350 = vmatprep.subr.bf16.mxu0 0
        %1351 = vmatpush1.bf16.xpose.msra.mxu0 0
        %1352 = vmatprep.subr.bf16.mxu0 0
        %1353 = vmatpush1.bf16.xpose.msra.mxu0 0
        %1354 = vmatprep.subr.bf16.mxu0 0
        %1355 = vmatpush1.bf16.xpose.msra.mxu0 0
        %1356 = vmatprep.subr.bf16.mxu0 0
        %1357 = vmatpush1.bf16.xpose.msra.mxu0 0
        %1358 = vmatprep.subr.bf16.mxu0 0
        %1359 = vmatpush1.bf16.xpose.msra.mxu0 0
        %1360 = vmatprep.subr.bf16.mxu0 0
        %1361 = vmatpush1.bf16.xpose.msra.mxu0 0
        %1362 = vmatprep.subr.bf16.mxu0 0
        %1363 = vmatpush1.bf16.xpose.msra.mxu0 0
        %1364 = vmatprep.subr.bf16.mxu0 0
        %1365 = vmatpush1.bf16.xpose.msra.mxu0 0
        %1366 = vmatprep.subr.bf16.mxu0 0
        %1367 = vmatpush1.bf16.xpose.msra.mxu0 0
        %1368 = vmatprep.subr.bf16.mxu0 0
        %1369 = vmatpush1.bf16.xpose.msra.mxu0 0
        %1370 = vmatprep.mubr.bf16.mxu0 0
        %1371 = vmatmul.mubr.bf16.gmra.mrb[0].mxu0 %v1333
        %v1372 = vpop.f32.mrb[0].mxu0
        %v1373 = vadd.f32 0.0, %v1372
        %v1374 = vpop.f32.mrb[0].mxu0
        %v1375 = vpop.f32.mrb[0].mxu0
        %v1376 = vpop.f32.mrb[0].mxu0
        %1377 = vdwg.mxu0
        %1379 = vrot.lane.b32.xlu0 %v881, 96
        %v1380 = vpop.permute.xlu0 %1379
        %v1382 = vsel %vm890, %v881, 0
        %v1385 = vsel %vm890, %v1380, 0
        %1387 = vmatprep.subr.bf16.mxu0 0
        %1388 = vmatpush1.bf16.xpose.msra.mxu0 %v1385
        %1389 = vmatprep.subr.bf16.mxu0 0
        %1390 = vmatpush1.bf16.xpose.msra.mxu0 0
        %1391 = vmatprep.subr.bf16.mxu0 0
        %1392 = vmatpush1.bf16.xpose.msra.mxu0 0
        %1393 = vmatprep.subr.bf16.mxu0 0
        %1394 = vmatpush1.bf16.xpose.msra.mxu0 0
        %1395 = vmatprep.subr.bf16.mxu0 0
        %1396 = vmatpush1.bf16.xpose.msra.mxu0 0
        %1397 = vmatprep.subr.bf16.mxu0 0
        %1398 = vmatpush1.bf16.xpose.msra.mxu0 0
        %1399 = vmatprep.subr.bf16.mxu0 0
        %1400 = vmatpush1.bf16.xpose.msra.mxu0 0
        %1401 = vmatprep.subr.bf16.mxu0 0
        %1402 = vmatpush1.bf16.xpose.msra.mxu0 0
        %1403 = vmatprep.subr.bf16.mxu0 0
        %1404 = vmatpush1.bf16.xpose.msra.mxu0 0
        %1405 = vmatprep.subr.bf16.mxu0 0
        %1406 = vmatpush1.bf16.xpose.msra.mxu0 0
        %1407 = vmatprep.subr.bf16.mxu0 0
        %1408 = vmatpush1.bf16.xpose.msra.mxu0 0
        %1409 = vmatprep.subr.bf16.mxu0 0
        %1410 = vmatpush1.bf16.xpose.msra.mxu0 0
        %1411 = vmatprep.subr.bf16.mxu0 0
        %1412 = vmatpush1.bf16.xpose.msra.mxu0 0
        %1413 = vmatprep.subr.bf16.mxu0 0
        %1414 = vmatpush1.bf16.xpose.msra.mxu0 0
        %1415 = vmatprep.subr.bf16.mxu0 0
        %1416 = vmatpush1.bf16.xpose.msra.mxu0 0
        %1417 = vmatprep.subr.bf16.mxu0 0
        %1418 = vmatpush1.bf16.xpose.msra.mxu0 0
        %1419 = vmatprep.mubr.bf16.mxu0 0
        %1420 = vmatmul.mubr.bf16.gmra.mrb[0].mxu0 %v1382
        %v1421 = vpop.f32.mrb[0].mxu0
        %v1422 = vadd.f32 0.0, %v1421
        %v1423 = vpop.f32.mrb[0].mxu0
        %v1424 = vpop.f32.mrb[0].mxu0
        %v1425 = vpop.f32.mrb[0].mxu0
        %1426 = vdwg.mxu0
        %1428 = vrot.lane.b32.xlu0 %v882, 96
        %v1429 = vpop.permute.xlu0 %1428
        %v1431 = vsel %vm890, %v882, 0
        %v1434 = vsel %vm890, %v1429, 0
        %1436 = vmatprep.subr.bf16.mxu0 0
        %1437 = vmatpush1.bf16.xpose.msra.mxu0 %v1434
        %1438 = vmatprep.subr.bf16.mxu0 0
        %1439 = vmatpush1.bf16.xpose.msra.mxu0 0
        %1440 = vmatprep.subr.bf16.mxu0 0
        %1441 = vmatpush1.bf16.xpose.msra.mxu0 0
        %1442 = vmatprep.subr.bf16.mxu0 0
        %1443 = vmatpush1.bf16.xpose.msra.mxu0 0
        %1444 = vmatprep.subr.bf16.mxu0 0
        %1445 = vmatpush1.bf16.xpose.msra.mxu0 0
        %1446 = vmatprep.subr.bf16.mxu0 0
        %1447 = vmatpush1.bf16.xpose.msra.mxu0 0
        %1448 = vmatprep.subr.bf16.mxu0 0
        %1449 = vmatpush1.bf16.xpose.msra.mxu0 0
        %1450 = vmatprep.subr.bf16.mxu0 0
        %1451 = vmatpush1.bf16.xpose.msra.mxu0 0
        %1452 = vmatprep.subr.bf16.mxu0 0
        %1453 = vmatpush1.bf16.xpose.msra.mxu0 0
        %1454 = vmatprep.subr.bf16.mxu0 0
        %1455 = vmatpush1.bf16.xpose.msra.mxu0 0
        %1456 = vmatprep.subr.bf16.mxu0 0
        %1457 = vmatpush1.bf16.xpose.msra.mxu0 0
        %1458 = vmatprep.subr.bf16.mxu0 0
        %1459 = vmatpush1.bf16.xpose.msra.mxu0 0
        %1460 = vmatprep.subr.bf16.mxu0 0
        %1461 = vmatpush1.bf16.xpose.msra.mxu0 0
        %1462 = vmatprep.subr.bf16.mxu0 0
        %1463 = vmatpush1.bf16.xpose.msra.mxu0 0
        %1464 = vmatprep.subr.bf16.mxu0 0
        %1465 = vmatpush1.bf16.xpose.msra.mxu0 0
        %1466 = vmatprep.subr.bf16.mxu0 0
        %1467 = vmatpush1.bf16.xpose.msra.mxu0 0
        %1468 = vmatprep.mubr.bf16.mxu0 0
        %1469 = vmatmul.mubr.bf16.gmra.mrb[0].mxu0 %v1431
        %v1470 = vpop.f32.mrb[0].mxu0
        %v1471 = vadd.f32 0.0, %v1470
        %v1472 = vpop.f32.mrb[0].mxu0
        %v1473 = vpop.f32.mrb[0].mxu0
        %v1474 = vpop.f32.mrb[0].mxu0
        %1475 = vdwg.mxu0
        %1477 = vrot.lane.b32.xlu0 %v883, 96
        %v1478 = vpop.permute.xlu0 %1477
        %v1480 = vsel %vm890, %v883, 0
        %v1483 = vsel %vm890, %v1478, 0
        %1485 = vmatprep.subr.bf16.mxu0 0
        %1486 = vmatpush1.bf16.xpose.msra.mxu0 %v1483
        %1487 = vmatprep.subr.bf16.mxu0 0
        %1488 = vmatpush1.bf16.xpose.msra.mxu0 0
        %1489 = vmatprep.subr.bf16.mxu0 0
        %1490 = vmatpush1.bf16.xpose.msra.mxu0 0
        %1491 = vmatprep.subr.bf16.mxu0 0
        %1492 = vmatpush1.bf16.xpose.msra.mxu0 0
        %1493 = vmatprep.subr.bf16.mxu0 0
        %1494 = vmatpush1.bf16.xpose.msra.mxu0 0
        %1495 = vmatprep.subr.bf16.mxu0 0
        %1496 = vmatpush1.bf16.xpose.msra.mxu0 0
        %1497 = vmatprep.subr.bf16.mxu0 0
        %1498 = vmatpush1.bf16.xpose.msra.mxu0 0
        %1499 = vmatprep.subr.bf16.mxu0 0
        %1500 = vmatpush1.bf16.xpose.msra.mxu0 0
        %1501 = vmatprep.subr.bf16.mxu0 0
        %1502 = vmatpush1.bf16.xpose.msra.mxu0 0
        %1503 = vmatprep.subr.bf16.mxu0 0
        %1504 = vmatpush1.bf16.xpose.msra.mxu0 0
        %1505 = vmatprep.subr.bf16.mxu0 0
        %1506 = vmatpush1.bf16.xpose.msra.mxu0 0
        %1507 = vmatprep.subr.bf16.mxu0 0
        %1508 = vmatpush1.bf16.xpose.msra.mxu0 0
        %1509 = vmatprep.subr.bf16.mxu0 0
        %1510 = vmatpush1.bf16.xpose.msra.mxu0 0
        %1511 = vmatprep.subr.bf16.mxu0 0
        %1512 = vmatpush1.bf16.xpose.msra.mxu0 0
        %1513 = vmatprep.subr.bf16.mxu0 0
        %1514 = vmatpush1.bf16.xpose.msra.mxu0 0
        %1515 = vmatprep.subr.bf16.mxu0 0
        %1516 = vmatpush1.bf16.xpose.msra.mxu0 0
        %1517 = vmatprep.mubr.bf16.mxu0 0
        %1518 = vmatmul.mubr.bf16.gmra.mrb[0].mxu0 %v1480
        %v1519 = vpop.f32.mrb[0].mxu0
        %v1520 = vadd.f32 0.0, %v1519
        %v1521 = vpop.f32.mrb[0].mxu0
        %v1522 = vpop.f32.mrb[0].mxu0
        %v1523 = vpop.f32.mrb[0].mxu0
        %1524 = vdwg.mxu0
        %1526 = vrot.lane.b32.xlu0 %v884, 96
        %v1527 = vpop.permute.xlu0 %1526
        %v1529 = vsel %vm890, %v884, 0
        %v1532 = vsel %vm890, %v1527, 0
        %1534 = vmatprep.subr.bf16.mxu0 0
        %1535 = vmatpush1.bf16.xpose.msra.mxu0 %v1532
        %1536 = vmatprep.subr.bf16.mxu0 0
        %1537 = vmatpush1.bf16.xpose.msra.mxu0 0
        %1538 = vmatprep.subr.bf16.mxu0 0
        %1539 = vmatpush1.bf16.xpose.msra.mxu0 0
        %1540 = vmatprep.subr.bf16.mxu0 0
        %1541 = vmatpush1.bf16.xpose.msra.mxu0 0
        %1542 = vmatprep.subr.bf16.mxu0 0
        %1543 = vmatpush1.bf16.xpose.msra.mxu0 0
        %1544 = vmatprep.subr.bf16.mxu0 0
        %1545 = vmatpush1.bf16.xpose.msra.mxu0 0
        %1546 = vmatprep.subr.bf16.mxu0 0
        %1547 = vmatpush1.bf16.xpose.msra.mxu0 0
        %1548 = vmatprep.subr.bf16.mxu0 0
        %1549 = vmatpush1.bf16.xpose.msra.mxu0 0
        %1550 = vmatprep.subr.bf16.mxu0 0
        %1551 = vmatpush1.bf16.xpose.msra.mxu0 0
        %1552 = vmatprep.subr.bf16.mxu0 0
        %1553 = vmatpush1.bf16.xpose.msra.mxu0 0
        %1554 = vmatprep.subr.bf16.mxu0 0
        %1555 = vmatpush1.bf16.xpose.msra.mxu0 0
        %1556 = vmatprep.subr.bf16.mxu0 0
        %1557 = vmatpush1.bf16.xpose.msra.mxu0 0
        %1558 = vmatprep.subr.bf16.mxu0 0
        %1559 = vmatpush1.bf16.xpose.msra.mxu0 0
        %1560 = vmatprep.subr.bf16.mxu0 0
        %1561 = vmatpush1.bf16.xpose.msra.mxu0 0
        %1562 = vmatprep.subr.bf16.mxu0 0
        %1563 = vmatpush1.bf16.xpose.msra.mxu0 0
        %1564 = vmatprep.subr.bf16.mxu0 0
        %1565 = vmatpush1.bf16.xpose.msra.mxu0 0
        %1566 = vmatprep.mubr.bf16.mxu0 0
        %1567 = vmatmul.mubr.bf16.gmra.mrb[0].mxu0 %v1529
        %v1568 = vpop.f32.mrb[0].mxu0
        %v1569 = vadd.f32 0.0, %v1568
        %v1570 = vpop.f32.mrb[0].mxu0
        %v1571 = vpop.f32.mrb[0].mxu0
        %v1572 = vpop.f32.mrb[0].mxu0
        %1573 = vdwg.mxu0
        %1575 = vrot.lane.b32.xlu0 %v885, 96
        %v1576 = vpop.permute.xlu0 %1575
        %v1578 = vsel %vm890, %v885, 0
        %v1581 = vsel %vm890, %v1576, 0
        %1583 = vmatprep.subr.bf16.mxu0 0
        %1584 = vmatpush1.bf16.xpose.msra.mxu0 %v1581
        %1585 = vmatprep.subr.bf16.mxu0 0
        %1586 = vmatpush1.bf16.xpose.msra.mxu0 0
        %1587 = vmatprep.subr.bf16.mxu0 0
        %1588 = vmatpush1.bf16.xpose.msra.mxu0 0
        %1589 = vmatprep.subr.bf16.mxu0 0
        %1590 = vmatpush1.bf16.xpose.msra.mxu0 0
        %1591 = vmatprep.subr.bf16.mxu0 0
        %1592 = vmatpush1.bf16.xpose.msra.mxu0 0
        %1593 = vmatprep.subr.bf16.mxu0 0
        %1594 = vmatpush1.bf16.xpose.msra.mxu0 0
        %1595 = vmatprep.subr.bf16.mxu0 0
        %1596 = vmatpush1.bf16.xpose.msra.mxu0 0
        %1597 = vmatprep.subr.bf16.mxu0 0
        %1598 = vmatpush1.bf16.xpose.msra.mxu0 0
        %1599 = vmatprep.subr.bf16.mxu0 0
        %1600 = vmatpush1.bf16.xpose.msra.mxu0 0
        %1601 = vmatprep.subr.bf16.mxu0 0
        %1602 = vmatpush1.bf16.xpose.msra.mxu0 0
        %1603 = vmatprep.subr.bf16.mxu0 0
        %1604 = vmatpush1.bf16.xpose.msra.mxu0 0
        %1605 = vmatprep.subr.bf16.mxu0 0
        %1606 = vmatpush1.bf16.xpose.msra.mxu0 0
        %1607 = vmatprep.subr.bf16.mxu0 0
        %1608 = vmatpush1.bf16.xpose.msra.mxu0 0
        %1609 = vmatprep.subr.bf16.mxu0 0
        %1610 = vmatpush1.bf16.xpose.msra.mxu0 0
        %1611 = vmatprep.subr.bf16.mxu0 0
        %1612 = vmatpush1.bf16.xpose.msra.mxu0 0
        %1613 = vmatprep.subr.bf16.mxu0 0
        %1614 = vmatpush1.bf16.xpose.msra.mxu0 0
        %1615 = vmatprep.mubr.bf16.mxu0 0
        %1616 = vmatmul.mubr.bf16.gmra.mrb[0].mxu0 %v1578
        %v1617 = vpop.f32.mrb[0].mxu0
        %v1618 = vadd.f32 0.0, %v1617
        %v1619 = vpop.f32.mrb[0].mxu0
        %v1620 = vpop.f32.mrb[0].mxu0
        %v1621 = vpop.f32.mrb[0].mxu0
        %1622 = vdwg.mxu0
        %1624 = vrot.lane.b32.xlu0 %v886, 96
        %v1625 = vpop.permute.xlu0 %1624
        %v1627 = vsel %vm890, %v886, 0
        %v1630 = vsel %vm890, %v1625, 0
        %1632 = vmatprep.subr.bf16.mxu0 0
        %1633 = vmatpush1.bf16.xpose.msra.mxu0 %v1630
        %1634 = vmatprep.subr.bf16.mxu0 0
        %1635 = vmatpush1.bf16.xpose.msra.mxu0 0
        %1636 = vmatprep.subr.bf16.mxu0 0
        %1637 = vmatpush1.bf16.xpose.msra.mxu0 0
        %1638 = vmatprep.subr.bf16.mxu0 0
        %1639 = vmatpush1.bf16.xpose.msra.mxu0 0
        %1640 = vmatprep.subr.bf16.mxu0 0
        %1641 = vmatpush1.bf16.xpose.msra.mxu0 0
        %1642 = vmatprep.subr.bf16.mxu0 0
        %1643 = vmatpush1.bf16.xpose.msra.mxu0 0
        %1644 = vmatprep.subr.bf16.mxu0 0
        %1645 = vmatpush1.bf16.xpose.msra.mxu0 0
        %1646 = vmatprep.subr.bf16.mxu0 0
        %1647 = vmatpush1.bf16.xpose.msra.mxu0 0
        %1648 = vmatprep.subr.bf16.mxu0 0
        %1649 = vmatpush1.bf16.xpose.msra.mxu0 0
        %1650 = vmatprep.subr.bf16.mxu0 0
        %1651 = vmatpush1.bf16.xpose.msra.mxu0 0
        %1652 = vmatprep.subr.bf16.mxu0 0
        %1653 = vmatpush1.bf16.xpose.msra.mxu0 0
        %1654 = vmatprep.subr.bf16.mxu0 0
        %1655 = vmatpush1.bf16.xpose.msra.mxu0 0
        %1656 = vmatprep.subr.bf16.mxu0 0
        %1657 = vmatpush1.bf16.xpose.msra.mxu0 0
        %1658 = vmatprep.subr.bf16.mxu0 0
        %1659 = vmatpush1.bf16.xpose.msra.mxu0 0
        %1660 = vmatprep.subr.bf16.mxu0 0
        %1661 = vmatpush1.bf16.xpose.msra.mxu0 0
        %1662 = vmatprep.subr.bf16.mxu0 0
        %1663 = vmatpush1.bf16.xpose.msra.mxu0 0
        %1664 = vmatprep.mubr.bf16.mxu0 0
        %1665 = vmatmul.mubr.bf16.gmra.mrb[0].mxu0 %v1627
        %v1666 = vpop.f32.mrb[0].mxu0
        %v1667 = vadd.f32 0.0, %v1666
        %v1668 = vpop.f32.mrb[0].mxu0
        %v1669 = vpop.f32.mrb[0].mxu0
        %v1670 = vpop.f32.mrb[0].mxu0
        %1671 = vdwg.mxu0
        %v1672 = vsel %vm890, %v932, -inf
        %1673 = vmax.xlane.f32.xlu0 %v1672
        %v1674 = vpop.xlane.xlu0 %1673
        %v1675 = vsel %vm890, %v981, -inf
        %1676 = vmax.xlane.f32.xlu0 %v1675
        %v1677 = vpop.xlane.xlu0 %1676
        %v1678 = vsel %vm890, %v1030, -inf
        %1679 = vmax.xlane.f32.xlu0 %v1678
        %v1680 = vpop.xlane.xlu0 %1679
        %v1681 = vsel %vm890, %v1079, -inf
        %1682 = vmax.xlane.f32.xlu0 %v1681
        %v1683 = vpop.xlane.xlu0 %1682
        %v1684 = vsel %vm890, %v1128, -inf
        %1685 = vmax.xlane.f32.xlu0 %v1684
        %v1686 = vpop.xlane.xlu0 %1685
        %v1687 = vsel %vm890, %v1177, -inf
        %1688 = vmax.xlane.f32.xlu0 %v1687
        %v1689 = vpop.xlane.xlu0 %1688
        %v1690 = vsel %vm890, %v1226, -inf
        %1691 = vmax.xlane.f32.xlu0 %v1690
        %v1692 = vpop.xlane.xlu0 %1691
        %v1693 = vsel %vm890, %v1275, -inf
        %1694 = vmax.xlane.f32.xlu0 %v1693
        %v1695 = vpop.xlane.xlu0 %1694
        %v1696 = vsel %vm890, %v1324, -inf
        %1697 = vmax.xlane.f32.xlu0 %v1696
        %v1698 = vpop.xlane.xlu0 %1697
        %v1699 = vsel %vm890, %v1373, -inf
        %1700 = vmax.xlane.f32.xlu0 %v1699
        %v1701 = vpop.xlane.xlu0 %1700
        %v1702 = vsel %vm890, %v1422, -inf
        %1703 = vmax.xlane.f32.xlu0 %v1702
        %v1704 = vpop.xlane.xlu0 %1703
        %v1705 = vsel %vm890, %v1471, -inf
        %1706 = vmax.xlane.f32.xlu0 %v1705
        %v1707 = vpop.xlane.xlu0 %1706
        %v1708 = vsel %vm890, %v1520, -inf
        %1709 = vmax.xlane.f32.xlu0 %v1708
        %v1710 = vpop.xlane.xlu0 %1709
        %v1711 = vsel %vm890, %v1569, -inf
        %1712 = vmax.xlane.f32.xlu0 %v1711
        %v1713 = vpop.xlane.xlu0 %1712
        %v1714 = vsel %vm890, %v1618, -inf
        %1715 = vmax.xlane.f32.xlu0 %v1714
        %v1716 = vpop.xlane.xlu0 %1715
        %v1717 = vsel %vm890, %v1667, -inf
        %1718 = vmax.xlane.f32.xlu0 %v1717
        %v1719 = vpop.xlane.xlu0 %1718
        %v1720 = vsub.f32 %v932, %v1674
        %v1721 = vsub.f32 %v981, %v1677
        %v1722 = vsub.f32 %v1030, %v1680
        %v1723 = vsub.f32 %v1079, %v1683
        %v1724 = vsub.f32 %v1128, %v1686
        %v1725 = vsub.f32 %v1177, %v1689
        %v1726 = vsub.f32 %v1226, %v1692
        %v1727 = vsub.f32 %v1275, %v1695
        %v1728 = vsub.f32 %v1324, %v1698
        %v1729 = vsub.f32 %v1373, %v1701
        %v1730 = vsub.f32 %v1422, %v1704
        %v1731 = vsub.f32 %v1471, %v1707
        %v1732 = vsub.f32 %v1520, %v1710
        %v1733 = vsub.f32 %v1569, %v1713
        %v1734 = vsub.f32 %v1618, %v1716
        %v1735 = vsub.f32 %v1667, %v1719
        %v1736 = vmul.f32 %v1720, 1.442695
        %v1737 = vpow.pop %v1736
        %v1738 = vmul.f32 %v1721, 1.442695
        %v1739 = vpow.pop %v1738
        %v1740 = vmul.f32 %v1722, 1.442695
        %v1741 = vpow.pop %v1740
        %v1742 = vmul.f32 %v1723, 1.442695
        %v1743 = vpow.pop %v1742
        %v1744 = vmul.f32 %v1724, 1.442695
        %v1745 = vpow.pop %v1744
        %v1746 = vmul.f32 %v1725, 1.442695
        %v1747 = vpow.pop %v1746
        %v1748 = vmul.f32 %v1726, 1.442695
        %v1749 = vpow.pop %v1748
        %v1750 = vmul.f32 %v1727, 1.442695
        %v1751 = vpow.pop %v1750
        %v1752 = vmul.f32 %v1728, 1.442695
        %v1753 = vpow.pop %v1752
        %v1754 = vmul.f32 %v1729, 1.442695
        %v1755 = vpow.pop %v1754
        %v1756 = vmul.f32 %v1730, 1.442695
        %v1757 = vpow.pop %v1756
        %v1758 = vmul.f32 %v1731, 1.442695
        %v1759 = vpow.pop %v1758
        %v1760 = vmul.f32 %v1732, 1.442695
        %v1761 = vpow.pop %v1760
        %v1762 = vmul.f32 %v1733, 1.442695
        %v1763 = vpow.pop %v1762
        %v1764 = vmul.f32 %v1734, 1.442695
        %v1765 = vpow.pop %v1764
        %v1766 = vmul.f32 %v1735, 1.442695
        %v1767 = vpow.pop %v1766
        %v1768 = vsel %vm890, %v1737, 0.0
        %1769 = vadd.xlane.f32.xlu0 %v1768
        %v1770 = vpop.xlane.xlu0 %1769
        %v1771 = vsel %vm890, %v1739, 0.0
        %1772 = vadd.xlane.f32.xlu0 %v1771
        %v1773 = vpop.xlane.xlu0 %1772
        %v1774 = vsel %vm890, %v1741, 0.0
        %1775 = vadd.xlane.f32.xlu0 %v1774
        %v1776 = vpop.xlane.xlu0 %1775
        %v1777 = vsel %vm890, %v1743, 0.0
        %1778 = vadd.xlane.f32.xlu0 %v1777
        %v1779 = vpop.xlane.xlu0 %1778
        %v1780 = vsel %vm890, %v1745, 0.0
        %1781 = vadd.xlane.f32.xlu0 %v1780
        %v1782 = vpop.xlane.xlu0 %1781
        %v1783 = vsel %vm890, %v1747, 0.0
        %1784 = vadd.xlane.f32.xlu0 %v1783
        %v1785 = vpop.xlane.xlu0 %1784
        %v1786 = vsel %vm890, %v1749, 0.0
        %1787 = vadd.xlane.f32.xlu0 %v1786
        %v1788 = vpop.xlane.xlu0 %1787
        %v1789 = vsel %vm890, %v1751, 0.0
        %1790 = vadd.xlane.f32.xlu0 %v1789
        %v1791 = vpop.xlane.xlu0 %1790
        %v1792 = vsel %vm890, %v1753, 0.0
        %1793 = vadd.xlane.f32.xlu0 %v1792
        %v1794 = vpop.xlane.xlu0 %1793
        %v1795 = vsel %vm890, %v1755, 0.0
        %1796 = vadd.xlane.f32.xlu0 %v1795
        %v1797 = vpop.xlane.xlu0 %1796
        %v1798 = vsel %vm890, %v1757, 0.0
        %1799 = vadd.xlane.f32.xlu0 %v1798
        %v1800 = vpop.xlane.xlu0 %1799
        %v1801 = vsel %vm890, %v1759, 0.0
        %1802 = vadd.xlane.f32.xlu0 %v1801
        %v1803 = vpop.xlane.xlu0 %1802
        %v1804 = vsel %vm890, %v1761, 0.0
        %1805 = vadd.xlane.f32.xlu0 %v1804
        %v1806 = vpop.xlane.xlu0 %1805
        %v1807 = vsel %vm890, %v1763, 0.0
        %1808 = vadd.xlane.f32.xlu0 %v1807
        %v1809 = vpop.xlane.xlu0 %1808
        %v1810 = vsel %vm890, %v1765, 0.0
        %1811 = vadd.xlane.f32.xlu0 %v1810
        %v1812 = vpop.xlane.xlu0 %1811
        %v1813 = vsel %vm890, %v1767, 0.0
        %1814 = vadd.xlane.f32.xlu0 %v1813
        %v1815 = vpop.xlane.xlu0 %1814
        %v1816 = vrcp.pop %v1770
        %v1817 = vrcp.pop %v1773
        %v1818 = vrcp.pop %v1776
        %v1819 = vrcp.pop %v1779
        %v1820 = vrcp.pop %v1782
        %v1821 = vrcp.pop %v1785
        %v1822 = vrcp.pop %v1788
        %v1823 = vrcp.pop %v1791
        %v1824 = vrcp.pop %v1794
        %v1825 = vrcp.pop %v1797
        %v1826 = vrcp.pop %v1800
        %v1827 = vrcp.pop %v1803
        %v1828 = vrcp.pop %v1806
        %v1829 = vrcp.pop %v1809
        %v1830 = vrcp.pop %v1812
        %v1831 = vrcp.pop %v1815
        %v1832 = vmul.f32 %v1737, %v1816
        %v1833 = vmul.f32 %v1739, %v1817
        %v1834 = vmul.f32 %v1741, %v1818
        %v1835 = vmul.f32 %v1743, %v1819
        %v1836 = vmul.f32 %v1745, %v1820
        %v1837 = vmul.f32 %v1747, %v1821
        %v1838 = vmul.f32 %v1749, %v1822
        %v1839 = vmul.f32 %v1751, %v1823
        %v1840 = vmul.f32 %v1753, %v1824
        %v1841 = vmul.f32 %v1755, %v1825
        %v1842 = vmul.f32 %v1757, %v1826
        %v1843 = vmul.f32 %v1759, %v1827
        %v1844 = vmul.f32 %v1761, %v1828
        %v1845 = vmul.f32 %v1763, %v1829
        %v1846 = vmul.f32 %v1765, %v1830
        %v1847 = vmul.f32 %v1767, %v1831
        %v1848 = vpack.c.bf16 %v1832, %v1832
        %v1849 = vpack.c.bf16 %v1833, %v1833
        %v1850 = vpack.c.bf16 %v1834, %v1834
        %v1851 = vpack.c.bf16 %v1835, %v1835
        %v1852 = vpack.c.bf16 %v1836, %v1836
        %v1853 = vpack.c.bf16 %v1837, %v1837
        %v1854 = vpack.c.bf16 %v1838, %v1838
        %v1855 = vpack.c.bf16 %v1839, %v1839
        %v1856 = vpack.c.bf16 %v1840, %v1840
        %v1857 = vpack.c.bf16 %v1841, %v1841
        %v1858 = vpack.c.bf16 %v1842, %v1842
        %v1859 = vpack.c.bf16 %v1843, %v1843
        %v1860 = vpack.c.bf16 %v1844, %v1844
        %v1861 = vpack.c.bf16 %v1845, %v1845
        %v1862 = vpack.c.bf16 %v1846, %v1846
        %v1863 = vpack.c.bf16 %v1847, %v1847
        %1864 = vrot.lane.b32.xlu0 %v871, 64
        %v1865 = vpop.permute.xlu0 %1864
        %v1867 = vsel %vm890, %v1848, 0
        %vm1869 = vcmask 1043456
        %v1871 = vsel %vm1869, %v1865, 0
        %1873 = vmatprep.subr.bf16.mxu0 0
        %1874 = vmatpush1.bf16.msra.mxu0 %v1871
        %1875 = vmatprep.subr.bf16.mxu0 0
        %1876 = vmatpush1.bf16.msra.mxu0 0
        %1877 = vmatprep.subr.bf16.mxu0 0
        %1878 = vmatpush1.bf16.msra.mxu0 0
        %1879 = vmatprep.subr.bf16.mxu0 0
        %1880 = vmatpush1.bf16.msra.mxu0 0
        %1881 = vmatprep.subr.bf16.mxu0 0
        %1882 = vmatpush1.bf16.msra.mxu0 0
        %1883 = vmatprep.subr.bf16.mxu0 0
        %1884 = vmatpush1.bf16.msra.mxu0 0
        %1885 = vmatprep.subr.bf16.mxu0 0
        %1886 = vmatpush1.bf16.msra.mxu0 0
        %1887 = vmatprep.subr.bf16.mxu0 0
        %1888 = vmatpush1.bf16.msra.mxu0 0
        %1889 = vmatprep.subr.bf16.mxu0 0
        %1890 = vmatpush1.bf16.msra.mxu0 0
        %1891 = vmatprep.subr.bf16.mxu0 0
        %1892 = vmatpush1.bf16.msra.mxu0 0
        %1893 = vmatprep.subr.bf16.mxu0 0
        %1894 = vmatpush1.bf16.msra.mxu0 0
        %1895 = vmatprep.subr.bf16.mxu0 0
        %1896 = vmatpush1.bf16.msra.mxu0 0
        %1897 = vmatprep.subr.bf16.mxu0 0
        %1898 = vmatpush1.bf16.msra.mxu0 0
        %1899 = vmatprep.subr.bf16.mxu0 0
        %1900 = vmatpush1.bf16.msra.mxu0 0
        %1901 = vmatprep.subr.bf16.mxu0 0
        %1902 = vmatpush1.bf16.msra.mxu0 0
        %1903 = vmatprep.subr.bf16.mxu0 0
        %1904 = vmatpush1.bf16.msra.mxu0 0
        %1905 = vmatprep.mubr.bf16.mxu0 0
        %1906 = vmatmul.mubr.bf16.gmra.mrb[0].mxu0 %v1867
        %v1907 = vpop.f32.mrb[0].mxu0
        %v1908 = vadd.f32 0.0, %v1907
        %v1909 = vpop.f32.mrb[0].mxu0
        %v1910 = vpop.f32.mrb[0].mxu0
        %v1911 = vpop.f32.mrb[0].mxu0
        %1912 = vdwg.mxu0
        %1913 = vrot.lane.b32.xlu0 %v872, 64
        %v1914 = vpop.permute.xlu0 %1913
        %v1916 = vsel %vm890, %v1849, 0
        %v1919 = vsel %vm1869, %v1914, 0
        %1921 = vmatprep.subr.bf16.mxu0 0
        %1922 = vmatpush1.bf16.msra.mxu0 %v1919
        %1923 = vmatprep.subr.bf16.mxu0 0
        %1924 = vmatpush1.bf16.msra.mxu0 0
        %1925 = vmatprep.subr.bf16.mxu0 0
        %1926 = vmatpush1.bf16.msra.mxu0 0
        %1927 = vmatprep.subr.bf16.mxu0 0
        %1928 = vmatpush1.bf16.msra.mxu0 0
        %1929 = vmatprep.subr.bf16.mxu0 0
        %1930 = vmatpush1.bf16.msra.mxu0 0
        %1931 = vmatprep.subr.bf16.mxu0 0
        %1932 = vmatpush1.bf16.msra.mxu0 0
        %1933 = vmatprep.subr.bf16.mxu0 0
        %1934 = vmatpush1.bf16.msra.mxu0 0
        %1935 = vmatprep.subr.bf16.mxu0 0
        %1936 = vmatpush1.bf16.msra.mxu0 0
        %1937 = vmatprep.subr.bf16.mxu0 0
        %1938 = vmatpush1.bf16.msra.mxu0 0
        %1939 = vmatprep.subr.bf16.mxu0 0
        %1940 = vmatpush1.bf16.msra.mxu0 0
        %1941 = vmatprep.subr.bf16.mxu0 0
        %1942 = vmatpush1.bf16.msra.mxu0 0
        %1943 = vmatprep.subr.bf16.mxu0 0
        %1944 = vmatpush1.bf16.msra.mxu0 0
        %1945 = vmatprep.subr.bf16.mxu0 0
        %1946 = vmatpush1.bf16.msra.mxu0 0
        %1947 = vmatprep.subr.bf16.mxu0 0
        %1948 = vmatpush1.bf16.msra.mxu0 0
        %1949 = vmatprep.subr.bf16.mxu0 0
        %1950 = vmatpush1.bf16.msra.mxu0 0
        %1951 = vmatprep.subr.bf16.mxu0 0
        %1952 = vmatpush1.bf16.msra.mxu0 0
        %1953 = vmatprep.mubr.bf16.mxu0 0
        %1954 = vmatmul.mubr.bf16.gmra.mrb[0].mxu0 %v1916
        %v1955 = vpop.f32.mrb[0].mxu0
        %v1956 = vadd.f32 0.0, %v1955
        %v1957 = vpop.f32.mrb[0].mxu0
        %v1958 = vpop.f32.mrb[0].mxu0
        %v1959 = vpop.f32.mrb[0].mxu0
        %1960 = vdwg.mxu0
        %1961 = vrot.lane.b32.xlu0 %v873, 64
        %v1962 = vpop.permute.xlu0 %1961
        %v1964 = vsel %vm890, %v1850, 0
        %v1967 = vsel %vm1869, %v1962, 0
        %1969 = vmatprep.subr.bf16.mxu0 0
        %1970 = vmatpush1.bf16.msra.mxu0 %v1967
        %1971 = vmatprep.subr.bf16.mxu0 0
        %1972 = vmatpush1.bf16.msra.mxu0 0
        %1973 = vmatprep.subr.bf16.mxu0 0
        %1974 = vmatpush1.bf16.msra.mxu0 0
        %1975 = vmatprep.subr.bf16.mxu0 0
        %1976 = vmatpush1.bf16.msra.mxu0 0
        %1977 = vmatprep.subr.bf16.mxu0 0
        %1978 = vmatpush1.bf16.msra.mxu0 0
        %1979 = vmatprep.subr.bf16.mxu0 0
        %1980 = vmatpush1.bf16.msra.mxu0 0
        %1981 = vmatprep.subr.bf16.mxu0 0
        %1982 = vmatpush1.bf16.msra.mxu0 0
        %1983 = vmatprep.subr.bf16.mxu0 0
        %1984 = vmatpush1.bf16.msra.mxu0 0
        %1985 = vmatprep.subr.bf16.mxu0 0
        %1986 = vmatpush1.bf16.msra.mxu0 0
        %1987 = vmatprep.subr.bf16.mxu0 0
        %1988 = vmatpush1.bf16.msra.mxu0 0
        %1989 = vmatprep.subr.bf16.mxu0 0
        %1990 = vmatpush1.bf16.msra.mxu0 0
        %1991 = vmatprep.subr.bf16.mxu0 0
        %1992 = vmatpush1.bf16.msra.mxu0 0
        %1993 = vmatprep.subr.bf16.mxu0 0
        %1994 = vmatpush1.bf16.msra.mxu0 0
        %1995 = vmatprep.subr.bf16.mxu0 0
        %1996 = vmatpush1.bf16.msra.mxu0 0
        %1997 = vmatprep.subr.bf16.mxu0 0
        %1998 = vmatpush1.bf16.msra.mxu0 0
        %1999 = vmatprep.subr.bf16.mxu0 0
        %2000 = vmatpush1.bf16.msra.mxu0 0
        %2001 = vmatprep.mubr.bf16.mxu0 0
        %2002 = vmatmul.mubr.bf16.gmra.mrb[0].mxu0 %v1964
        %v2003 = vpop.f32.mrb[0].mxu0
        %v2004 = vadd.f32 0.0, %v2003
        %v2005 = vpop.f32.mrb[0].mxu0
        %v2006 = vpop.f32.mrb[0].mxu0
        %v2007 = vpop.f32.mrb[0].mxu0
        %2008 = vdwg.mxu0
        %2009 = vrot.lane.b32.xlu0 %v874, 64
        %v2010 = vpop.permute.xlu0 %2009
        %v2012 = vsel %vm890, %v1851, 0
        %v2015 = vsel %vm1869, %v2010, 0
        %2017 = vmatprep.subr.bf16.mxu0 0
        %2018 = vmatpush1.bf16.msra.mxu0 %v2015
        %2019 = vmatprep.subr.bf16.mxu0 0
        %2020 = vmatpush1.bf16.msra.mxu0 0
        %2021 = vmatprep.subr.bf16.mxu0 0
        %2022 = vmatpush1.bf16.msra.mxu0 0
        %2023 = vmatprep.subr.bf16.mxu0 0
        %2024 = vmatpush1.bf16.msra.mxu0 0
        %2025 = vmatprep.subr.bf16.mxu0 0
        %2026 = vmatpush1.bf16.msra.mxu0 0
        %2027 = vmatprep.subr.bf16.mxu0 0
        %2028 = vmatpush1.bf16.msra.mxu0 0
        %2029 = vmatprep.subr.bf16.mxu0 0
        %2030 = vmatpush1.bf16.msra.mxu0 0
        %2031 = vmatprep.subr.bf16.mxu0 0
        %2032 = vmatpush1.bf16.msra.mxu0 0
        %2033 = vmatprep.subr.bf16.mxu0 0
        %2034 = vmatpush1.bf16.msra.mxu0 0
        %2035 = vmatprep.subr.bf16.mxu0 0
        %2036 = vmatpush1.bf16.msra.mxu0 0
        %2037 = vmatprep.subr.bf16.mxu0 0
        %2038 = vmatpush1.bf16.msra.mxu0 0
        %2039 = vmatprep.subr.bf16.mxu0 0
        %2040 = vmatpush1.bf16.msra.mxu0 0
        %2041 = vmatprep.subr.bf16.mxu0 0
        %2042 = vmatpush1.bf16.msra.mxu0 0
        %2043 = vmatprep.subr.bf16.mxu0 0
        %2044 = vmatpush1.bf16.msra.mxu0 0
        %2045 = vmatprep.subr.bf16.mxu0 0
        %2046 = vmatpush1.bf16.msra.mxu0 0
        %2047 = vmatprep.subr.bf16.mxu0 0
        %2048 = vmatpush1.bf16.msra.mxu0 0
        %2049 = vmatprep.mubr.bf16.mxu0 0
        %2050 = vmatmul.mubr.bf16.gmra.mrb[0].mxu0 %v2012
        %v2051 = vpop.f32.mrb[0].mxu0
        %v2052 = vadd.f32 0.0, %v2051
        %v2053 = vpop.f32.mrb[0].mxu0
        %v2054 = vpop.f32.mrb[0].mxu0
        %v2055 = vpop.f32.mrb[0].mxu0
        %2056 = vdwg.mxu0
        %2057 = vrot.lane.b32.xlu0 %v875, 64
        %v2058 = vpop.permute.xlu0 %2057
        %v2060 = vsel %vm890, %v1852, 0
        %v2063 = vsel %vm1869, %v2058, 0
        %2065 = vmatprep.subr.bf16.mxu0 0
        %2066 = vmatpush1.bf16.msra.mxu0 %v2063
        %2067 = vmatprep.subr.bf16.mxu0 0
        %2068 = vmatpush1.bf16.msra.mxu0 0
        %2069 = vmatprep.subr.bf16.mxu0 0
        %2070 = vmatpush1.bf16.msra.mxu0 0
        %2071 = vmatprep.subr.bf16.mxu0 0
        %2072 = vmatpush1.bf16.msra.mxu0 0
        %2073 = vmatprep.subr.bf16.mxu0 0
        %2074 = vmatpush1.bf16.msra.mxu0 0
        %2075 = vmatprep.subr.bf16.mxu0 0
        %2076 = vmatpush1.bf16.msra.mxu0 0
        %2077 = vmatprep.subr.bf16.mxu0 0
        %2078 = vmatpush1.bf16.msra.mxu0 0
        %2079 = vmatprep.subr.bf16.mxu0 0
        %2080 = vmatpush1.bf16.msra.mxu0 0
        %2081 = vmatprep.subr.bf16.mxu0 0
        %2082 = vmatpush1.bf16.msra.mxu0 0
        %2083 = vmatprep.subr.bf16.mxu0 0
        %2084 = vmatpush1.bf16.msra.mxu0 0
        %2085 = vmatprep.subr.bf16.mxu0 0
        %2086 = vmatpush1.bf16.msra.mxu0 0
        %2087 = vmatprep.subr.bf16.mxu0 0
        %2088 = vmatpush1.bf16.msra.mxu0 0
        %2089 = vmatprep.subr.bf16.mxu0 0
        %2090 = vmatpush1.bf16.msra.mxu0 0
        %2091 = vmatprep.subr.bf16.mxu0 0
        %2092 = vmatpush1.bf16.msra.mxu0 0
        %2093 = vmatprep.subr.bf16.mxu0 0
        %2094 = vmatpush1.bf16.msra.mxu0 0
        %2095 = vmatprep.subr.bf16.mxu0 0
        %2096 = vmatpush1.bf16.msra.mxu0 0
        %2097 = vmatprep.mubr.bf16.mxu0 0
        %2098 = vmatmul.mubr.bf16.gmra.mrb[0].mxu0 %v2060
        %v2099 = vpop.f32.mrb[0].mxu0
        %v2100 = vadd.f32 0.0, %v2099
        %v2101 = vpop.f32.mrb[0].mxu0
        %v2102 = vpop.f32.mrb[0].mxu0
        %v2103 = vpop.f32.mrb[0].mxu0
        %2104 = vdwg.mxu0
        %2105 = vrot.lane.b32.xlu0 %v876, 64
        %v2106 = vpop.permute.xlu0 %2105
        %v2108 = vsel %vm890, %v1853, 0
        %v2111 = vsel %vm1869, %v2106, 0
        %2113 = vmatprep.subr.bf16.mxu0 0
        %2114 = vmatpush1.bf16.msra.mxu0 %v2111
        %2115 = vmatprep.subr.bf16.mxu0 0
        %2116 = vmatpush1.bf16.msra.mxu0 0
        %2117 = vmatprep.subr.bf16.mxu0 0
        %2118 = vmatpush1.bf16.msra.mxu0 0
        %2119 = vmatprep.subr.bf16.mxu0 0
        %2120 = vmatpush1.bf16.msra.mxu0 0
        %2121 = vmatprep.subr.bf16.mxu0 0
        %2122 = vmatpush1.bf16.msra.mxu0 0
        %2123 = vmatprep.subr.bf16.mxu0 0
        %2124 = vmatpush1.bf16.msra.mxu0 0
        %2125 = vmatprep.subr.bf16.mxu0 0
        %2126 = vmatpush1.bf16.msra.mxu0 0
        %2127 = vmatprep.subr.bf16.mxu0 0
        %2128 = vmatpush1.bf16.msra.mxu0 0
        %2129 = vmatprep.subr.bf16.mxu0 0
        %2130 = vmatpush1.bf16.msra.mxu0 0
        %2131 = vmatprep.subr.bf16.mxu0 0
        %2132 = vmatpush1.bf16.msra.mxu0 0
        %2133 = vmatprep.subr.bf16.mxu0 0
        %2134 = vmatpush1.bf16.msra.mxu0 0
        %2135 = vmatprep.subr.bf16.mxu0 0
        %2136 = vmatpush1.bf16.msra.mxu0 0
        %2137 = vmatprep.subr.bf16.mxu0 0
        %2138 = vmatpush1.bf16.msra.mxu0 0
        %2139 = vmatprep.subr.bf16.mxu0 0
        %2140 = vmatpush1.bf16.msra.mxu0 0
        %2141 = vmatprep.subr.bf16.mxu0 0
        %2142 = vmatpush1.bf16.msra.mxu0 0
        %2143 = vmatprep.subr.bf16.mxu0 0
        %2144 = vmatpush1.bf16.msra.mxu0 0
        %2145 = vmatprep.mubr.bf16.mxu0 0
        %2146 = vmatmul.mubr.bf16.gmra.mrb[0].mxu0 %v2108
        %v2147 = vpop.f32.mrb[0].mxu0
        %v2148 = vadd.f32 0.0, %v2147
        %v2149 = vpop.f32.mrb[0].mxu0
        %v2150 = vpop.f32.mrb[0].mxu0
        %v2151 = vpop.f32.mrb[0].mxu0
        %2152 = vdwg.mxu0
        %2153 = vrot.lane.b32.xlu0 %v877, 64
        %v2154 = vpop.permute.xlu0 %2153
        %v2156 = vsel %vm890, %v1854, 0
        %v2159 = vsel %vm1869, %v2154, 0
        %2161 = vmatprep.subr.bf16.mxu0 0
        %2162 = vmatpush1.bf16.msra.mxu0 %v2159
        %2163 = vmatprep.subr.bf16.mxu0 0
        %2164 = vmatpush1.bf16.msra.mxu0 0
        %2165 = vmatprep.subr.bf16.mxu0 0
        %2166 = vmatpush1.bf16.msra.mxu0 0
        %2167 = vmatprep.subr.bf16.mxu0 0
        %2168 = vmatpush1.bf16.msra.mxu0 0
        %2169 = vmatprep.subr.bf16.mxu0 0
        %2170 = vmatpush1.bf16.msra.mxu0 0
        %2171 = vmatprep.subr.bf16.mxu0 0
        %2172 = vmatpush1.bf16.msra.mxu0 0
        %2173 = vmatprep.subr.bf16.mxu0 0
        %2174 = vmatpush1.bf16.msra.mxu0 0
        %2175 = vmatprep.subr.bf16.mxu0 0
        %2176 = vmatpush1.bf16.msra.mxu0 0
        %2177 = vmatprep.subr.bf16.mxu0 0
        %2178 = vmatpush1.bf16.msra.mxu0 0
        %2179 = vmatprep.subr.bf16.mxu0 0
        %2180 = vmatpush1.bf16.msra.mxu0 0
        %2181 = vmatprep.subr.bf16.mxu0 0
        %2182 = vmatpush1.bf16.msra.mxu0 0
        %2183 = vmatprep.subr.bf16.mxu0 0
        %2184 = vmatpush1.bf16.msra.mxu0 0
        %2185 = vmatprep.subr.bf16.mxu0 0
        %2186 = vmatpush1.bf16.msra.mxu0 0
        %2187 = vmatprep.subr.bf16.mxu0 0
        %2188 = vmatpush1.bf16.msra.mxu0 0
        %2189 = vmatprep.subr.bf16.mxu0 0
        %2190 = vmatpush1.bf16.msra.mxu0 0
        %2191 = vmatprep.subr.bf16.mxu0 0
        %2192 = vmatpush1.bf16.msra.mxu0 0
        %2193 = vmatprep.mubr.bf16.mxu0 0
        %2194 = vmatmul.mubr.bf16.gmra.mrb[0].mxu0 %v2156
        %v2195 = vpop.f32.mrb[0].mxu0
        %v2196 = vadd.f32 0.0, %v2195
        %v2197 = vpop.f32.mrb[0].mxu0
        %v2198 = vpop.f32.mrb[0].mxu0
        %v2199 = vpop.f32.mrb[0].mxu0
        %2200 = vdwg.mxu0
        %2201 = vrot.lane.b32.xlu0 %v878, 64
        %v2202 = vpop.permute.xlu0 %2201
        %v2204 = vsel %vm890, %v1855, 0
        %v2207 = vsel %vm1869, %v2202, 0
        %2209 = vmatprep.subr.bf16.mxu0 0
        %2210 = vmatpush1.bf16.msra.mxu0 %v2207
        %2211 = vmatprep.subr.bf16.mxu0 0
        %2212 = vmatpush1.bf16.msra.mxu0 0
        %2213 = vmatprep.subr.bf16.mxu0 0
        %2214 = vmatpush1.bf16.msra.mxu0 0
        %2215 = vmatprep.subr.bf16.mxu0 0
        %2216 = vmatpush1.bf16.msra.mxu0 0
        %2217 = vmatprep.subr.bf16.mxu0 0
        %2218 = vmatpush1.bf16.msra.mxu0 0
        %2219 = vmatprep.subr.bf16.mxu0 0
        %2220 = vmatpush1.bf16.msra.mxu0 0
        %2221 = vmatprep.subr.bf16.mxu0 0
        %2222 = vmatpush1.bf16.msra.mxu0 0
        %2223 = vmatprep.subr.bf16.mxu0 0
        %2224 = vmatpush1.bf16.msra.mxu0 0
        %2225 = vmatprep.subr.bf16.mxu0 0
        %2226 = vmatpush1.bf16.msra.mxu0 0
        %2227 = vmatprep.subr.bf16.mxu0 0
        %2228 = vmatpush1.bf16.msra.mxu0 0
        %2229 = vmatprep.subr.bf16.mxu0 0
        %2230 = vmatpush1.bf16.msra.mxu0 0
        %2231 = vmatprep.subr.bf16.mxu0 0
        %2232 = vmatpush1.bf16.msra.mxu0 0
        %2233 = vmatprep.subr.bf16.mxu0 0
        %2234 = vmatpush1.bf16.msra.mxu0 0
        %2235 = vmatprep.subr.bf16.mxu0 0
        %2236 = vmatpush1.bf16.msra.mxu0 0
        %2237 = vmatprep.subr.bf16.mxu0 0
        %2238 = vmatpush1.bf16.msra.mxu0 0
        %2239 = vmatprep.subr.bf16.mxu0 0
        %2240 = vmatpush1.bf16.msra.mxu0 0
        %2241 = vmatprep.mubr.bf16.mxu0 0
        %2242 = vmatmul.mubr.bf16.gmra.mrb[0].mxu0 %v2204
        %v2243 = vpop.f32.mrb[0].mxu0
        %v2244 = vadd.f32 0.0, %v2243
        %v2245 = vpop.f32.mrb[0].mxu0
        %v2246 = vpop.f32.mrb[0].mxu0
        %v2247 = vpop.f32.mrb[0].mxu0
        %2248 = vdwg.mxu0
        %2249 = vrot.lane.b32.xlu0 %v879, 64
        %v2250 = vpop.permute.xlu0 %2249
        %v2252 = vsel %vm890, %v1856, 0
        %v2255 = vsel %vm1869, %v2250, 0
        %2257 = vmatprep.subr.bf16.mxu0 0
        %2258 = vmatpush1.bf16.msra.mxu0 %v2255
        %2259 = vmatprep.subr.bf16.mxu0 0
        %2260 = vmatpush1.bf16.msra.mxu0 0
        %2261 = vmatprep.subr.bf16.mxu0 0
        %2262 = vmatpush1.bf16.msra.mxu0 0
        %2263 = vmatprep.subr.bf16.mxu0 0
        %2264 = vmatpush1.bf16.msra.mxu0 0
        %2265 = vmatprep.subr.bf16.mxu0 0
        %2266 = vmatpush1.bf16.msra.mxu0 0
        %2267 = vmatprep.subr.bf16.mxu0 0
        %2268 = vmatpush1.bf16.msra.mxu0 0
        %2269 = vmatprep.subr.bf16.mxu0 0
        %2270 = vmatpush1.bf16.msra.mxu0 0
        %2271 = vmatprep.subr.bf16.mxu0 0
        %2272 = vmatpush1.bf16.msra.mxu0 0
        %2273 = vmatprep.subr.bf16.mxu0 0
        %2274 = vmatpush1.bf16.msra.mxu0 0
        %2275 = vmatprep.subr.bf16.mxu0 0
        %2276 = vmatpush1.bf16.msra.mxu0 0
        %2277 = vmatprep.subr.bf16.mxu0 0
        %2278 = vmatpush1.bf16.msra.mxu0 0
        %2279 = vmatprep.subr.bf16.mxu0 0
        %2280 = vmatpush1.bf16.msra.mxu0 0
        %2281 = vmatprep.subr.bf16.mxu0 0
        %2282 = vmatpush1.bf16.msra.mxu0 0
        %2283 = vmatprep.subr.bf16.mxu0 0
        %2284 = vmatpush1.bf16.msra.mxu0 0
        %2285 = vmatprep.subr.bf16.mxu0 0
        %2286 = vmatpush1.bf16.msra.mxu0 0
        %2287 = vmatprep.subr.bf16.mxu0 0
        %2288 = vmatpush1.bf16.msra.mxu0 0
        %2289 = vmatprep.mubr.bf16.mxu0 0
        %2290 = vmatmul.mubr.bf16.gmra.mrb[0].mxu0 %v2252
        %v2291 = vpop.f32.mrb[0].mxu0
        %v2292 = vadd.f32 0.0, %v2291
        %v2293 = vpop.f32.mrb[0].mxu0
        %v2294 = vpop.f32.mrb[0].mxu0
        %v2295 = vpop.f32.mrb[0].mxu0
        %2296 = vdwg.mxu0
        %2297 = vrot.lane.b32.xlu0 %v880, 64
        %v2298 = vpop.permute.xlu0 %2297
        %v2300 = vsel %vm890, %v1857, 0
        %v2303 = vsel %vm1869, %v2298, 0
        %2305 = vmatprep.subr.bf16.mxu0 0
        %2306 = vmatpush1.bf16.msra.mxu0 %v2303
        %2307 = vmatprep.subr.bf16.mxu0 0
        %2308 = vmatpush1.bf16.msra.mxu0 0
        %2309 = vmatprep.subr.bf16.mxu0 0
        %2310 = vmatpush1.bf16.msra.mxu0 0
        %2311 = vmatprep.subr.bf16.mxu0 0
        %2312 = vmatpush1.bf16.msra.mxu0 0
        %2313 = vmatprep.subr.bf16.mxu0 0
        %2314 = vmatpush1.bf16.msra.mxu0 0
        %2315 = vmatprep.subr.bf16.mxu0 0
        %2316 = vmatpush1.bf16.msra.mxu0 0
        %2317 = vmatprep.subr.bf16.mxu0 0
        %2318 = vmatpush1.bf16.msra.mxu0 0
        %2319 = vmatprep.subr.bf16.mxu0 0
        %2320 = vmatpush1.bf16.msra.mxu0 0
        %2321 = vmatprep.subr.bf16.mxu0 0
        %2322 = vmatpush1.bf16.msra.mxu0 0
        %2323 = vmatprep.subr.bf16.mxu0 0
        %2324 = vmatpush1.bf16.msra.mxu0 0
        %2325 = vmatprep.subr.bf16.mxu0 0
        %2326 = vmatpush1.bf16.msra.mxu0 0
        %2327 = vmatprep.subr.bf16.mxu0 0
        %2328 = vmatpush1.bf16.msra.mxu0 0
        %2329 = vmatprep.subr.bf16.mxu0 0
        %2330 = vmatpush1.bf16.msra.mxu0 0
        %2331 = vmatprep.subr.bf16.mxu0 0
        %2332 = vmatpush1.bf16.msra.mxu0 0
        %2333 = vmatprep.subr.bf16.mxu0 0
        %2334 = vmatpush1.bf16.msra.mxu0 0
        %2335 = vmatprep.subr.bf16.mxu0 0
        %2336 = vmatpush1.bf16.msra.mxu0 0
        %2337 = vmatprep.mubr.bf16.mxu0 0
        %2338 = vmatmul.mubr.bf16.gmra.mrb[0].mxu0 %v2300
        %v2339 = vpop.f32.mrb[0].mxu0
        %v2340 = vadd.f32 0.0, %v2339
        %v2341 = vpop.f32.mrb[0].mxu0
        %v2342 = vpop.f32.mrb[0].mxu0
        %v2343 = vpop.f32.mrb[0].mxu0
        %2344 = vdwg.mxu0
        %2345 = vrot.lane.b32.xlu0 %v881, 64
        %v2346 = vpop.permute.xlu0 %2345
        %v2348 = vsel %vm890, %v1858, 0
        %v2351 = vsel %vm1869, %v2346, 0
        %2353 = vmatprep.subr.bf16.mxu0 0
        %2354 = vmatpush1.bf16.msra.mxu0 %v2351
        %2355 = vmatprep.subr.bf16.mxu0 0
        %2356 = vmatpush1.bf16.msra.mxu0 0
        %2357 = vmatprep.subr.bf16.mxu0 0
        %2358 = vmatpush1.bf16.msra.mxu0 0
        %2359 = vmatprep.subr.bf16.mxu0 0
        %2360 = vmatpush1.bf16.msra.mxu0 0
        %2361 = vmatprep.subr.bf16.mxu0 0
        %2362 = vmatpush1.bf16.msra.mxu0 0
        %2363 = vmatprep.subr.bf16.mxu0 0
        %2364 = vmatpush1.bf16.msra.mxu0 0
        %2365 = vmatprep.subr.bf16.mxu0 0
        %2366 = vmatpush1.bf16.msra.mxu0 0
        %2367 = vmatprep.subr.bf16.mxu0 0
        %2368 = vmatpush1.bf16.msra.mxu0 0
        %2369 = vmatprep.subr.bf16.mxu0 0
        %2370 = vmatpush1.bf16.msra.mxu0 0
        %2371 = vmatprep.subr.bf16.mxu0 0
        %2372 = vmatpush1.bf16.msra.mxu0 0
        %2373 = vmatprep.subr.bf16.mxu0 0
        %2374 = vmatpush1.bf16.msra.mxu0 0
        %2375 = vmatprep.subr.bf16.mxu0 0
        %2376 = vmatpush1.bf16.msra.mxu0 0
        %2377 = vmatprep.subr.bf16.mxu0 0
        %2378 = vmatpush1.bf16.msra.mxu0 0
        %2379 = vmatprep.subr.bf16.mxu0 0
        %2380 = vmatpush1.bf16.msra.mxu0 0
        %2381 = vmatprep.subr.bf16.mxu0 0
        %2382 = vmatpush1.bf16.msra.mxu0 0
        %2383 = vmatprep.subr.bf16.mxu0 0
        %2384 = vmatpush1.bf16.msra.mxu0 0
        %2385 = vmatprep.mubr.bf16.mxu0 0
        %2386 = vmatmul.mubr.bf16.gmra.mrb[0].mxu0 %v2348
        %v2387 = vpop.f32.mrb[0].mxu0
        %v2388 = vadd.f32 0.0, %v2387
        %v2389 = vpop.f32.mrb[0].mxu0
        %v2390 = vpop.f32.mrb[0].mxu0
        %v2391 = vpop.f32.mrb[0].mxu0
        %2392 = vdwg.mxu0
        %2393 = vrot.lane.b32.xlu0 %v882, 64
        %v2394 = vpop.permute.xlu0 %2393
        %v2396 = vsel %vm890, %v1859, 0
        %v2399 = vsel %vm1869, %v2394, 0
        %2401 = vmatprep.subr.bf16.mxu0 0
        %2402 = vmatpush1.bf16.msra.mxu0 %v2399
        %2403 = vmatprep.subr.bf16.mxu0 0
        %2404 = vmatpush1.bf16.msra.mxu0 0
        %2405 = vmatprep.subr.bf16.mxu0 0
        %2406 = vmatpush1.bf16.msra.mxu0 0
        %2407 = vmatprep.subr.bf16.mxu0 0
        %2408 = vmatpush1.bf16.msra.mxu0 0
        %2409 = vmatprep.subr.bf16.mxu0 0
        %2410 = vmatpush1.bf16.msra.mxu0 0
        %2411 = vmatprep.subr.bf16.mxu0 0
        %2412 = vmatpush1.bf16.msra.mxu0 0
        %2413 = vmatprep.subr.bf16.mxu0 0
        %2414 = vmatpush1.bf16.msra.mxu0 0
        %2415 = vmatprep.subr.bf16.mxu0 0
        %2416 = vmatpush1.bf16.msra.mxu0 0
        %2417 = vmatprep.subr.bf16.mxu0 0
        %2418 = vmatpush1.bf16.msra.mxu0 0
        %2419 = vmatprep.subr.bf16.mxu0 0
        %2420 = vmatpush1.bf16.msra.mxu0 0
        %2421 = vmatprep.subr.bf16.mxu0 0
        %2422 = vmatpush1.bf16.msra.mxu0 0
        %2423 = vmatprep.subr.bf16.mxu0 0
        %2424 = vmatpush1.bf16.msra.mxu0 0
        %2425 = vmatprep.subr.bf16.mxu0 0
        %2426 = vmatpush1.bf16.msra.mxu0 0
        %2427 = vmatprep.subr.bf16.mxu0 0
        %2428 = vmatpush1.bf16.msra.mxu0 0
        %2429 = vmatprep.subr.bf16.mxu0 0
        %2430 = vmatpush1.bf16.msra.mxu0 0
        %2431 = vmatprep.subr.bf16.mxu0 0
        %2432 = vmatpush1.bf16.msra.mxu0 0
        %2433 = vmatprep.mubr.bf16.mxu0 0
        %2434 = vmatmul.mubr.bf16.gmra.mrb[0].mxu0 %v2396
        %v2435 = vpop.f32.mrb[0].mxu0
        %v2436 = vadd.f32 0.0, %v2435
        %v2437 = vpop.f32.mrb[0].mxu0
        %v2438 = vpop.f32.mrb[0].mxu0
        %v2439 = vpop.f32.mrb[0].mxu0
        %2440 = vdwg.mxu0
        %2441 = vrot.lane.b32.xlu0 %v883, 64
        %v2442 = vpop.permute.xlu0 %2441
        %v2444 = vsel %vm890, %v1860, 0
        %v2447 = vsel %vm1869, %v2442, 0
        %2449 = vmatprep.subr.bf16.mxu0 0
        %2450 = vmatpush1.bf16.msra.mxu0 %v2447
        %2451 = vmatprep.subr.bf16.mxu0 0
        %2452 = vmatpush1.bf16.msra.mxu0 0
        %2453 = vmatprep.subr.bf16.mxu0 0
        %2454 = vmatpush1.bf16.msra.mxu0 0
        %2455 = vmatprep.subr.bf16.mxu0 0
        %2456 = vmatpush1.bf16.msra.mxu0 0
        %2457 = vmatprep.subr.bf16.mxu0 0
        %2458 = vmatpush1.bf16.msra.mxu0 0
        %2459 = vmatprep.subr.bf16.mxu0 0
        %2460 = vmatpush1.bf16.msra.mxu0 0
        %2461 = vmatprep.subr.bf16.mxu0 0
        %2462 = vmatpush1.bf16.msra.mxu0 0
        %2463 = vmatprep.subr.bf16.mxu0 0
        %2464 = vmatpush1.bf16.msra.mxu0 0
        %2465 = vmatprep.subr.bf16.mxu0 0
        %2466 = vmatpush1.bf16.msra.mxu0 0
        %2467 = vmatprep.subr.bf16.mxu0 0
        %2468 = vmatpush1.bf16.msra.mxu0 0
        %2469 = vmatprep.subr.bf16.mxu0 0
        %2470 = vmatpush1.bf16.msra.mxu0 0
        %2471 = vmatprep.subr.bf16.mxu0 0
        %2472 = vmatpush1.bf16.msra.mxu0 0
        %2473 = vmatprep.subr.bf16.mxu0 0
        %2474 = vmatpush1.bf16.msra.mxu0 0
        %2475 = vmatprep.subr.bf16.mxu0 0
        %2476 = vmatpush1.bf16.msra.mxu0 0
        %2477 = vmatprep.subr.bf16.mxu0 0
        %2478 = vmatpush1.bf16.msra.mxu0 0
        %2479 = vmatprep.subr.bf16.mxu0 0
        %2480 = vmatpush1.bf16.msra.mxu0 0
        %2481 = vmatprep.mubr.bf16.mxu0 0
        %2482 = vmatmul.mubr.bf16.gmra.mrb[0].mxu0 %v2444
        %v2483 = vpop.f32.mrb[0].mxu0
        %v2484 = vadd.f32 0.0, %v2483
        %v2485 = vpop.f32.mrb[0].mxu0
        %v2486 = vpop.f32.mrb[0].mxu0
        %v2487 = vpop.f32.mrb[0].mxu0
        %2488 = vdwg.mxu0
        %2489 = vrot.lane.b32.xlu0 %v884, 64
        %v2490 = vpop.permute.xlu0 %2489
        %v2492 = vsel %vm890, %v1861, 0
        %v2495 = vsel %vm1869, %v2490, 0
        %2497 = vmatprep.subr.bf16.mxu0 0
        %2498 = vmatpush1.bf16.msra.mxu0 %v2495
        %2499 = vmatprep.subr.bf16.mxu0 0
        %2500 = vmatpush1.bf16.msra.mxu0 0
        %2501 = vmatprep.subr.bf16.mxu0 0
        %2502 = vmatpush1.bf16.msra.mxu0 0
        %2503 = vmatprep.subr.bf16.mxu0 0
        %2504 = vmatpush1.bf16.msra.mxu0 0
        %2505 = vmatprep.subr.bf16.mxu0 0
        %2506 = vmatpush1.bf16.msra.mxu0 0
        %2507 = vmatprep.subr.bf16.mxu0 0
        %2508 = vmatpush1.bf16.msra.mxu0 0
        %2509 = vmatprep.subr.bf16.mxu0 0
        %2510 = vmatpush1.bf16.msra.mxu0 0
        %2511 = vmatprep.subr.bf16.mxu0 0
        %2512 = vmatpush1.bf16.msra.mxu0 0
        %2513 = vmatprep.subr.bf16.mxu0 0
        %2514 = vmatpush1.bf16.msra.mxu0 0
        %2515 = vmatprep.subr.bf16.mxu0 0
        %2516 = vmatpush1.bf16.msra.mxu0 0
        %2517 = vmatprep.subr.bf16.mxu0 0
        %2518 = vmatpush1.bf16.msra.mxu0 0
        %2519 = vmatprep.subr.bf16.mxu0 0
        %2520 = vmatpush1.bf16.msra.mxu0 0
        %2521 = vmatprep.subr.bf16.mxu0 0
        %2522 = vmatpush1.bf16.msra.mxu0 0
        %2523 = vmatprep.subr.bf16.mxu0 0
        %2524 = vmatpush1.bf16.msra.mxu0 0
        %2525 = vmatprep.subr.bf16.mxu0 0
        %2526 = vmatpush1.bf16.msra.mxu0 0
        %2527 = vmatprep.subr.bf16.mxu0 0
        %2528 = vmatpush1.bf16.msra.mxu0 0
        %2529 = vmatprep.mubr.bf16.mxu0 0
        %2530 = vmatmul.mubr.bf16.gmra.mrb[0].mxu0 %v2492
        %v2531 = vpop.f32.mrb[0].mxu0
        %v2532 = vadd.f32 0.0, %v2531
        %v2533 = vpop.f32.mrb[0].mxu0
        %v2534 = vpop.f32.mrb[0].mxu0
        %v2535 = vpop.f32.mrb[0].mxu0
        %2536 = vdwg.mxu0
        %2537 = vrot.lane.b32.xlu0 %v885, 64
        %v2538 = vpop.permute.xlu0 %2537
        %v2540 = vsel %vm890, %v1862, 0
        %v2543 = vsel %vm1869, %v2538, 0
        %2545 = vmatprep.subr.bf16.mxu0 0
        %2546 = vmatpush1.bf16.msra.mxu0 %v2543
        %2547 = vmatprep.subr.bf16.mxu0 0
        %2548 = vmatpush1.bf16.msra.mxu0 0
        %2549 = vmatprep.subr.bf16.mxu0 0
        %2550 = vmatpush1.bf16.msra.mxu0 0
        %2551 = vmatprep.subr.bf16.mxu0 0
        %2552 = vmatpush1.bf16.msra.mxu0 0
        %2553 = vmatprep.subr.bf16.mxu0 0
        %2554 = vmatpush1.bf16.msra.mxu0 0
        %2555 = vmatprep.subr.bf16.mxu0 0
        %2556 = vmatpush1.bf16.msra.mxu0 0
        %2557 = vmatprep.subr.bf16.mxu0 0
        %2558 = vmatpush1.bf16.msra.mxu0 0
        %2559 = vmatprep.subr.bf16.mxu0 0
        %2560 = vmatpush1.bf16.msra.mxu0 0
        %2561 = vmatprep.subr.bf16.mxu0 0
        %2562 = vmatpush1.bf16.msra.mxu0 0
        %2563 = vmatprep.subr.bf16.mxu0 0
        %2564 = vmatpush1.bf16.msra.mxu0 0
        %2565 = vmatprep.subr.bf16.mxu0 0
        %2566 = vmatpush1.bf16.msra.mxu0 0
        %2567 = vmatprep.subr.bf16.mxu0 0
        %2568 = vmatpush1.bf16.msra.mxu0 0
        %2569 = vmatprep.subr.bf16.mxu0 0
        %2570 = vmatpush1.bf16.msra.mxu0 0
        %2571 = vmatprep.subr.bf16.mxu0 0
        %2572 = vmatpush1.bf16.msra.mxu0 0
        %2573 = vmatprep.subr.bf16.mxu0 0
        %2574 = vmatpush1.bf16.msra.mxu0 0
        %2575 = vmatprep.subr.bf16.mxu0 0
        %2576 = vmatpush1.bf16.msra.mxu0 0
        %2577 = vmatprep.mubr.bf16.mxu0 0
        %2578 = vmatmul.mubr.bf16.gmra.mrb[0].mxu0 %v2540
        %v2579 = vpop.f32.mrb[0].mxu0
        %v2580 = vadd.f32 0.0, %v2579
        %v2581 = vpop.f32.mrb[0].mxu0
        %v2582 = vpop.f32.mrb[0].mxu0
        %v2583 = vpop.f32.mrb[0].mxu0
        %2584 = vdwg.mxu0
        %2585 = vrot.lane.b32.xlu0 %v886, 64
        %v2586 = vpop.permute.xlu0 %2585
        %v2588 = vsel %vm890, %v1863, 0
        %v2591 = vsel %vm1869, %v2586, 0
        %2593 = vmatprep.subr.bf16.mxu0 0
        %2594 = vmatpush1.bf16.msra.mxu0 %v2591
        %2595 = vmatprep.subr.bf16.mxu0 0
        %2596 = vmatpush1.bf16.msra.mxu0 0
        %2597 = vmatprep.subr.bf16.mxu0 0
        %2598 = vmatpush1.bf16.msra.mxu0 0
        %2599 = vmatprep.subr.bf16.mxu0 0
        %2600 = vmatpush1.bf16.msra.mxu0 0
        %2601 = vmatprep.subr.bf16.mxu0 0
        %2602 = vmatpush1.bf16.msra.mxu0 0
        %2603 = vmatprep.subr.bf16.mxu0 0
        %2604 = vmatpush1.bf16.msra.mxu0 0
        %2605 = vmatprep.subr.bf16.mxu0 0
        %2606 = vmatpush1.bf16.msra.mxu0 0
        %2607 = vmatprep.subr.bf16.mxu0 0
        %2608 = vmatpush1.bf16.msra.mxu0 0
        %2609 = vmatprep.subr.bf16.mxu0 0
        %2610 = vmatpush1.bf16.msra.mxu0 0
        %2611 = vmatprep.subr.bf16.mxu0 0
        %2612 = vmatpush1.bf16.msra.mxu0 0
        %2613 = vmatprep.subr.bf16.mxu0 0
        %2614 = vmatpush1.bf16.msra.mxu0 0
        %2615 = vmatprep.subr.bf16.mxu0 0
        %2616 = vmatpush1.bf16.msra.mxu0 0
        %2617 = vmatprep.subr.bf16.mxu0 0
        %2618 = vmatpush1.bf16.msra.mxu0 0
        %2619 = vmatprep.subr.bf16.mxu0 0
        %2620 = vmatpush1.bf16.msra.mxu0 0
        %2621 = vmatprep.subr.bf16.mxu0 0
        %2622 = vmatpush1.bf16.msra.mxu0 0
        %2623 = vmatprep.subr.bf16.mxu0 0
        %2624 = vmatpush1.bf16.msra.mxu0 0
        %2625 = vmatprep.mubr.bf16.mxu0 0
        %2626 = vmatmul.mubr.bf16.gmra.mrb[0].mxu0 %v2588
        %v2627 = vpop.f32.mrb[0].mxu0
        %v2628 = vadd.f32 0.0, %v2627
        %v2629 = vpop.f32.mrb[0].mxu0
        %v2630 = vpop.f32.mrb[0].mxu0
        %v2631 = vpop.f32.mrb[0].mxu0
        %2632 = vdwg.mxu0
        %v2633 = vpack.c.bf16 %v1956, %v1908
        %v2634 = vpack.c.bf16 %v2052, %v2004
        %v2635 = vpack.c.bf16 %v2148, %v2100
        %v2636 = vpack.c.bf16 %v2244, %v2196
        %v2637 = vpack.c.bf16 %v2340, %v2292
        %v2638 = vpack.c.bf16 %v2436, %v2388
        %v2639 = vpack.c.bf16 %v2532, %v2484
        %v2640 = vpack.c.bf16 %v2628, %v2580
        %v2641 = vld [vmem:[%s501] sm:$0xf]
        %v2642 = vld [vmem:[%s501 + $0x4] sm:$0xf]
        %v2643 = vld [vmem:[%s501 + $0x8] sm:$0xf]
        %v2644 = vld [vmem:[%s501 + $0xc] sm:$0xf]
        %v2646 = vsel %vm890, %v2633, 0
        %v2649 = vsel %vm890, %v2634, 0
        %v2652 = vsel %vm1869, %v2641, 0
        %2654 = vmatprep.subr.bf16.mxu0 0
        %2655 = vmatpush1.bf16.msra.mxu0 %v2652
        %2656 = vmatprep.subr.bf16.mxu0 0
        %2657 = vmatpush1.bf16.msra.mxu0 0
        %2658 = vmatprep.subr.bf16.mxu0 0
        %2659 = vmatpush1.bf16.msra.mxu0 0
        %2660 = vmatprep.subr.bf16.mxu0 0
        %2661 = vmatpush1.bf16.msra.mxu0 0
        %2662 = vmatprep.subr.bf16.mxu0 0
        %2663 = vmatpush1.bf16.msra.mxu0 0
        %2664 = vmatprep.subr.bf16.mxu0 0
        %2665 = vmatpush1.bf16.msra.mxu0 0
        %2666 = vmatprep.subr.bf16.mxu0 0
        %2667 = vmatpush1.bf16.msra.mxu0 0
        %2668 = vmatprep.subr.bf16.mxu0 0
        %2669 = vmatpush1.bf16.msra.mxu0 0
        %2670 = vmatprep.subr.bf16.mxu0 0
        %2671 = vmatpush1.bf16.msra.mxu0 0
        %2672 = vmatprep.subr.bf16.mxu0 0
        %2673 = vmatpush1.bf16.msra.mxu0 0
        %2674 = vmatprep.subr.bf16.mxu0 0
        %2675 = vmatpush1.bf16.msra.mxu0 0
        %2676 = vmatprep.subr.bf16.mxu0 0
        %2677 = vmatpush1.bf16.msra.mxu0 0
        %2678 = vmatprep.subr.bf16.mxu0 0
        %2679 = vmatpush1.bf16.msra.mxu0 0
        %2680 = vmatprep.subr.bf16.mxu0 0
        %2681 = vmatpush1.bf16.msra.mxu0 0
        %2682 = vmatprep.subr.bf16.mxu0 0
        %2683 = vmatpush1.bf16.msra.mxu0 0
        %2684 = vmatprep.subr.bf16.mxu0 0
        %2685 = vmatpush1.bf16.msra.mxu0 0
        %2686 = vmatprep.mubr.bf16.mxu0 0
        %2687 = vmatmul.mubr.bf16.gmra.mrb[0].mxu0 %v2646
        %v2688 = vpop.f32.mrb[0].mxu0
        %v2689 = vadd.f32 0.0, %v2688
        %v2690 = vpop.f32.mrb[0].mxu0
        %v2691 = vpop.f32.mrb[0].mxu0
        %v2692 = vadd.f32 0.0, %v2691
        %v2693 = vpop.f32.mrb[0].mxu0
        %2694 = vmatprep.mubr.bf16.mxu0 0
        %2695 = vmatmul.mubr.bf16.gmra.mrb[0].mxu0 %v2649
        %v2696 = vpop.f32.mrb[0].mxu0
        %v2697 = vadd.f32 0.0, %v2696
        %v2698 = vpop.f32.mrb[0].mxu0
        %v2699 = vpop.f32.mrb[0].mxu0
        %v2700 = vadd.f32 0.0, %v2699
        %v2701 = vpop.f32.mrb[0].mxu0
        %2702 = vdwg.mxu0
        %v2704 = vsel %vm890, %v2635, 0
        %v2707 = vsel %vm890, %v2636, 0
        %v2710 = vsel %vm1869, %v2642, 0
        %2712 = vmatprep.subr.bf16.mxu0 0
        %2713 = vmatpush1.bf16.msra.mxu0 %v2710
        %2714 = vmatprep.subr.bf16.mxu0 0
        %2715 = vmatpush1.bf16.msra.mxu0 0
        %2716 = vmatprep.subr.bf16.mxu0 0
        %2717 = vmatpush1.bf16.msra.mxu0 0
        %2718 = vmatprep.subr.bf16.mxu0 0
        %2719 = vmatpush1.bf16.msra.mxu0 0
        %2720 = vmatprep.subr.bf16.mxu0 0
        %2721 = vmatpush1.bf16.msra.mxu0 0
        %2722 = vmatprep.subr.bf16.mxu0 0
        %2723 = vmatpush1.bf16.msra.mxu0 0
        %2724 = vmatprep.subr.bf16.mxu0 0
        %2725 = vmatpush1.bf16.msra.mxu0 0
        %2726 = vmatprep.subr.bf16.mxu0 0
        %2727 = vmatpush1.bf16.msra.mxu0 0
        %2728 = vmatprep.subr.bf16.mxu0 0
        %2729 = vmatpush1.bf16.msra.mxu0 0
        %2730 = vmatprep.subr.bf16.mxu0 0
        %2731 = vmatpush1.bf16.msra.mxu0 0
        %2732 = vmatprep.subr.bf16.mxu0 0
        %2733 = vmatpush1.bf16.msra.mxu0 0
        %2734 = vmatprep.subr.bf16.mxu0 0
        %2735 = vmatpush1.bf16.msra.mxu0 0
        %2736 = vmatprep.subr.bf16.mxu0 0
        %2737 = vmatpush1.bf16.msra.mxu0 0
        %2738 = vmatprep.subr.bf16.mxu0 0
        %2739 = vmatpush1.bf16.msra.mxu0 0
        %2740 = vmatprep.subr.bf16.mxu0 0
        %2741 = vmatpush1.bf16.msra.mxu0 0
        %2742 = vmatprep.subr.bf16.mxu0 0
        %2743 = vmatpush1.bf16.msra.mxu0 0
        %2744 = vmatprep.mubr.bf16.mxu0 0
        %2745 = vmatmul.mubr.bf16.gmra.mrb[0].mxu0 %v2704
        %v2746 = vpop.f32.mrb[0].mxu0
        %v2747 = vadd.f32 0.0, %v2746
        %v2748 = vpop.f32.mrb[0].mxu0
        %v2749 = vpop.f32.mrb[0].mxu0
        %v2750 = vadd.f32 0.0, %v2749
        %v2751 = vpop.f32.mrb[0].mxu0
        %2752 = vmatprep.mubr.bf16.mxu0 0
        %2753 = vmatmul.mubr.bf16.gmra.mrb[0].mxu0 %v2707
        %v2754 = vpop.f32.mrb[0].mxu0
        %v2755 = vadd.f32 0.0, %v2754
        %v2756 = vpop.f32.mrb[0].mxu0
        %v2757 = vpop.f32.mrb[0].mxu0
        %v2758 = vadd.f32 0.0, %v2757
        %v2759 = vpop.f32.mrb[0].mxu0
        %2760 = vdwg.mxu0
        %v2762 = vsel %vm890, %v2637, 0
        %v2765 = vsel %vm890, %v2638, 0
        %v2768 = vsel %vm1869, %v2643, 0
        %2770 = vmatprep.subr.bf16.mxu0 0
        %2771 = vmatpush1.bf16.msra.mxu0 %v2768
        %2772 = vmatprep.subr.bf16.mxu0 0
        %2773 = vmatpush1.bf16.msra.mxu0 0
        %2774 = vmatprep.subr.bf16.mxu0 0
        %2775 = vmatpush1.bf16.msra.mxu0 0
        %2776 = vmatprep.subr.bf16.mxu0 0
        %2777 = vmatpush1.bf16.msra.mxu0 0
        %2778 = vmatprep.subr.bf16.mxu0 0
        %2779 = vmatpush1.bf16.msra.mxu0 0
        %2780 = vmatprep.subr.bf16.mxu0 0
        %2781 = vmatpush1.bf16.msra.mxu0 0
        %2782 = vmatprep.subr.bf16.mxu0 0
        %2783 = vmatpush1.bf16.msra.mxu0 0
        %2784 = vmatprep.subr.bf16.mxu0 0
        %2785 = vmatpush1.bf16.msra.mxu0 0
        %2786 = vmatprep.subr.bf16.mxu0 0
        %2787 = vmatpush1.bf16.msra.mxu0 0
        %2788 = vmatprep.subr.bf16.mxu0 0
        %2789 = vmatpush1.bf16.msra.mxu0 0
        %2790 = vmatprep.subr.bf16.mxu0 0
        %2791 = vmatpush1.bf16.msra.mxu0 0
        %2792 = vmatprep.subr.bf16.mxu0 0
        %2793 = vmatpush1.bf16.msra.mxu0 0
        %2794 = vmatprep.subr.bf16.mxu0 0
        %2795 = vmatpush1.bf16.msra.mxu0 0
        %2796 = vmatprep.subr.bf16.mxu0 0
        %2797 = vmatpush1.bf16.msra.mxu0 0
        %2798 = vmatprep.subr.bf16.mxu0 0
        %2799 = vmatpush1.bf16.msra.mxu0 0
        %2800 = vmatprep.subr.bf16.mxu0 0
        %2801 = vmatpush1.bf16.msra.mxu0 0
        %2802 = vmatprep.mubr.bf16.mxu0 0
        %2803 = vmatmul.mubr.bf16.gmra.mrb[0].mxu0 %v2762
        %v2804 = vpop.f32.mrb[0].mxu0
        %v2805 = vadd.f32 0.0, %v2804
        %v2806 = vpop.f32.mrb[0].mxu0
        %v2807 = vpop.f32.mrb[0].mxu0
        %v2808 = vadd.f32 0.0, %v2807
        %v2809 = vpop.f32.mrb[0].mxu0
        %2810 = vmatprep.mubr.bf16.mxu0 0
        %2811 = vmatmul.mubr.bf16.gmra.mrb[0].mxu0 %v2765
        %v2812 = vpop.f32.mrb[0].mxu0
        %v2813 = vadd.f32 0.0, %v2812
        %v2814 = vpop.f32.mrb[0].mxu0
        %v2815 = vpop.f32.mrb[0].mxu0
        %v2816 = vadd.f32 0.0, %v2815
        %v2817 = vpop.f32.mrb[0].mxu0
        %2818 = vdwg.mxu0
        %v2820 = vsel %vm890, %v2639, 0
        %v2823 = vsel %vm890, %v2640, 0
        %v2826 = vsel %vm1869, %v2644, 0
        %2828 = vmatprep.subr.bf16.mxu0 0
        %2829 = vmatpush1.bf16.msra.mxu0 %v2826
        %2830 = vmatprep.subr.bf16.mxu0 0
        %2831 = vmatpush1.bf16.msra.mxu0 0
        %2832 = vmatprep.subr.bf16.mxu0 0
        %2833 = vmatpush1.bf16.msra.mxu0 0
        %2834 = vmatprep.subr.bf16.mxu0 0
        %2835 = vmatpush1.bf16.msra.mxu0 0
        %2836 = vmatprep.subr.bf16.mxu0 0
        %2837 = vmatpush1.bf16.msra.mxu0 0
        %2838 = vmatprep.subr.bf16.mxu0 0
        %2839 = vmatpush1.bf16.msra.mxu0 0
        %2840 = vmatprep.subr.bf16.mxu0 0
        %2841 = vmatpush1.bf16.msra.mxu0 0
        %2842 = vmatprep.subr.bf16.mxu0 0
        %2843 = vmatpush1.bf16.msra.mxu0 0
        %2844 = vmatprep.subr.bf16.mxu0 0
        %2845 = vmatpush1.bf16.msra.mxu0 0
        %2846 = vmatprep.subr.bf16.mxu0 0
        %2847 = vmatpush1.bf16.msra.mxu0 0
        %2848 = vmatprep.subr.bf16.mxu0 0
        %2849 = vmatpush1.bf16.msra.mxu0 0
        %2850 = vmatprep.subr.bf16.mxu0 0
        %2851 = vmatpush1.bf16.msra.mxu0 0
        %2852 = vmatprep.subr.bf16.mxu0 0
        %2853 = vmatpush1.bf16.msra.mxu0 0
        %2854 = vmatprep.subr.bf16.mxu0 0
        %2855 = vmatpush1.bf16.msra.mxu0 0
        %2856 = vmatprep.subr.bf16.mxu0 0
        %2857 = vmatpush1.bf16.msra.mxu0 0
        %2858 = vmatprep.subr.bf16.mxu0 0
        %2859 = vmatpush1.bf16.msra.mxu0 0
        %2860 = vmatprep.mubr.bf16.mxu0 0
        %2861 = vmatmul.mubr.bf16.gmra.mrb[0].mxu0 %v2820
        %v2862 = vpop.f32.mrb[0].mxu0
        %v2863 = vadd.f32 0.0, %v2862
        %v2864 = vpop.f32.mrb[0].mxu0
        %v2865 = vpop.f32.mrb[0].mxu0
        %v2866 = vadd.f32 0.0, %v2865
        %v2867 = vpop.f32.mrb[0].mxu0
        %2868 = vmatprep.mubr.bf16.mxu0 0
        %2869 = vmatmul.mubr.bf16.gmra.mrb[0].mxu0 %v2823
        %v2870 = vpop.f32.mrb[0].mxu0
        %v2871 = vadd.f32 0.0, %v2870
        %v2872 = vpop.f32.mrb[0].mxu0
        %v2873 = vpop.f32.mrb[0].mxu0
        %v2874 = vadd.f32 0.0, %v2873
        %v2875 = vpop.f32.mrb[0].mxu0
        %2876 = vdwg.mxu0
        %v2877 = vsel %vm684, %v2689, 0.0
        %v2878 = vsel %vm684, %v2747, 0.0
        %v2879 = vadd.f32 %v2877, %v2878
        %v2880 = vsel %vm684, %v2805, 0.0
        %v2881 = vadd.f32 %v2879, %v2880
        %v2882 = vsel %vm684, %v2863, 0.0
        %v2883 = vadd.f32 %v2881, %v2882
        %v2884 = vsel %vm684, %v2692, 0.0
        %v2885 = vsel %vm684, %v2750, 0.0
        %v2886 = vadd.f32 %v2884, %v2885
        %v2887 = vsel %vm684, %v2808, 0.0
        %v2888 = vadd.f32 %v2886, %v2887
        %v2889 = vsel %vm684, %v2866, 0.0
        %v2890 = vadd.f32 %v2888, %v2889
        %v2891 = vsel %vm684, %v2697, 0.0
        %v2892 = vsel %vm684, %v2755, 0.0
        %v2893 = vadd.f32 %v2891, %v2892
        %v2894 = vsel %vm684, %v2813, 0.0
        %v2895 = vadd.f32 %v2893, %v2894
        %v2896 = vsel %vm684, %v2871, 0.0
        %v2897 = vadd.f32 %v2895, %v2896
        %v2898 = vsel %vm684, %v2700, 0.0
        %v2899 = vsel %vm684, %v2758, 0.0
        %v2900 = vadd.f32 %v2898, %v2899
        %v2901 = vsel %vm684, %v2816, 0.0
        %v2902 = vadd.f32 %v2900, %v2901
        %v2903 = vsel %vm684, %v2874, 0.0
        %v2904 = vadd.f32 %v2902, %v2903
        %v2905 = vadd.f32 %v680, %v2883
        %v2906 = vadd.f32 %v681, %v2890
        %v2907 = vadd.f32 %v682, %v2897
        %v2908 = vadd.f32 %v683, %v2904
        %v2909 = vlaneseq
        %v2910 = vshrl.u32 %v2909, 7
        %v2911 = vsub.s32 1, %v2910
        %v2912 = vrot.slane %v679, %v2911
        %v2913 = vadd.f32 %v2905, %v2912
        %v2914 = vadd.f32 %v2906, %v2912
        %v2915 = vadd.f32 %v2907, %v2912
        %v2916 = vadd.f32 %v2908, %v2912
        %v2917 = vsel %vm684, %v2913, 0.0
        %2918 = vadd.xlane.f32.xlu0 %v2917
        %v2919 = vpop.xlane.xlu0 %2918
        %v2920 = vsel %vm684, %v2914, 0.0
        %2921 = vadd.xlane.f32.xlu0 %v2920
        %v2922 = vpop.xlane.xlu0 %2921
        %v2923 = vsel %vm684, %v2915, 0.0
        %2924 = vadd.xlane.f32.xlu0 %v2923
        %v2925 = vpop.xlane.xlu0 %2924
        %v2926 = vsel %vm684, %v2916, 0.0
        %2927 = vadd.xlane.f32.xlu0 %v2926
        %v2928 = vpop.xlane.xlu0 %2927
        %v2929 = vmul.f32 %v2919, %v697
        %v2930 = vmul.f32 %v2922, %v697
        %v2931 = vmul.f32 %v2925, %v697
        %v2932 = vmul.f32 %v2928, %v697
        %v2933 = vsub.f32 %v2913, %v2929
        %v2934 = vsub.f32 %v2914, %v2930
        %v2935 = vsub.f32 %v2915, %v2931
        %v2936 = vsub.f32 %v2916, %v2932
        %v2937 = vmul.f32 %v2933, %v2933
        %v2938 = vmul.f32 %v2934, %v2934
        %v2939 = vmul.f32 %v2935, %v2935
        %v2940 = vmul.f32 %v2936, %v2936
        %v2941 = vsel %vm684, %v2937, 0.0
        %2942 = vadd.xlane.f32.xlu0 %v2941
        %v2943 = vpop.xlane.xlu0 %2942
        %v2944 = vsel %vm684, %v2938, 0.0
        %2945 = vadd.xlane.f32.xlu0 %v2944
        %v2946 = vpop.xlane.xlu0 %2945
        %v2947 = vsel %vm684, %v2939, 0.0
        %2948 = vadd.xlane.f32.xlu0 %v2947
        %v2949 = vpop.xlane.xlu0 %2948
        %v2950 = vsel %vm684, %v2940, 0.0
        %2951 = vadd.xlane.f32.xlu0 %v2950
        %v2952 = vpop.xlane.xlu0 %2951
        %v2953 = vmul.f32 %v2943, %v697
        %v2954 = vmul.f32 %v2946, %v697
        %v2955 = vmul.f32 %v2949, %v697
        %v2956 = vmul.f32 %v2952, %v697
        %v2957 = vadd.f32 %v2953, 1e-05
        %v2958 = vadd.f32 %v2954, 1e-05
        %v2959 = vadd.f32 %v2955, 1e-05
        %v2960 = vadd.f32 %v2956, 1e-05
        %v2961 = vrsqrt.pop %v2957
        %v2962 = vrsqrt.pop %v2958
        %v2963 = vrsqrt.pop %v2959
        %v2964 = vrsqrt.pop %v2960
        %v2965 = vmul.f32 %v2933, %v2961
        %v2966 = vmul.f32 %v2934, %v2962
        %v2967 = vmul.f32 %v2935, %v2963
        %v2968 = vmul.f32 %v2936, %v2964
        %v2969 = vlaneseq
        %v2970 = vshrl.u32 %v2969, 7
        %v2971 = vsub.s32 6, %v2970
        %v2972 = vrot.slane %v679, %v2971
        %v2973 = vmul.f32 %v2965, %v2972
        %v2974 = vmul.f32 %v2966, %v2972
        %v2975 = vmul.f32 %v2967, %v2972
        %v2976 = vmul.f32 %v2968, %v2972
        %v2977 = vlaneseq
        %v2978 = vshrl.u32 %v2977, 7
        %v2979 = vsub.s32 7, %v2978
        %v2980 = vrot.slane %v679, %v2979
        %v2981 = vadd.f32 %v2973, %v2980
        %v2982 = vadd.f32 %v2974, %v2980
        %v2983 = vadd.f32 %v2975, %v2980
        %v2984 = vadd.f32 %v2976, %v2980
        %v2985 = vpack.c.bf16 %v2982, %v2981
        %v2986 = vpack.c.bf16 %v2984, %v2983
        %v2987 = vld [vmem:[%s506] sm:$0xf]
        %v2988 = vld [vmem:[%s506 + $0x4] sm:$0xf]
        %v2989 = vld [vmem:[%s506 + $0x8] sm:$0xf]
        %v2990 = vld [vmem:[%s506 + $0xc] sm:$0xf]
        %v2991 = vlaneseq
        %v2992 = vshrl.u32 %v2991, 7
        %v2993 = vsub.s32 2, %v2992
        %v2994 = vrot.slane %v679, %v2993
        %v2999 = vunpack.c.l.b16 %v2987
        %v3000 = vunpack.c.l.b16 %v2988
        %v3001 = vunpack.c.l.b16 %v2989
        %v3002 = vunpack.c.l.b16 %v2990
        %v3003 = vpack.c.b16 %v3000, %v2999
        %v3004 = vpack.c.b16 %v3002, %v3001
        %v3008 = vsel %vm684, %v2985, 0
        %v3011 = vsel %vm684, %v2986, 0
        %3013 = vmatprep.subr.bf16.mxu0 0
        %3014 = vmatpush1.bf16.msra.mxu0 %v3003
        %3015 = vmatprep.subr.bf16.mxu0 0
        %3016 = vmatpush1.bf16.msra.mxu0 %v3004
        %3017 = vmatprep.subr.bf16.mxu0 0
        %3018 = vmatpush1.bf16.msra.mxu0 0
        %3019 = vmatprep.subr.bf16.mxu0 0
        %3020 = vmatpush1.bf16.msra.mxu0 0
        %3021 = vmatprep.subr.bf16.mxu0 0
        %3022 = vmatpush1.bf16.msra.mxu0 0
        %3023 = vmatprep.subr.bf16.mxu0 0
        %3024 = vmatpush1.bf16.msra.mxu0 0
        %3025 = vmatprep.subr.bf16.mxu0 0
        %3026 = vmatpush1.bf16.msra.mxu0 0
        %3027 = vmatprep.subr.bf16.mxu0 0
        %3028 = vmatpush1.bf16.msra.mxu0 0
        %3029 = vmatprep.subr.bf16.mxu0 0
        %3030 = vmatpush1.bf16.msra.mxu0 0
        %3031 = vmatprep.subr.bf16.mxu0 0
        %3032 = vmatpush1.bf16.msra.mxu0 0
        %3033 = vmatprep.subr.bf16.mxu0 0
        %3034 = vmatpush1.bf16.msra.mxu0 0
        %3035 = vmatprep.subr.bf16.mxu0 0
        %3036 = vmatpush1.bf16.msra.mxu0 0
        %3037 = vmatprep.subr.bf16.mxu0 0
        %3038 = vmatpush1.bf16.msra.mxu0 0
        %3039 = vmatprep.subr.bf16.mxu0 0
        %3040 = vmatpush1.bf16.msra.mxu0 0
        %3041 = vmatprep.subr.bf16.mxu0 0
        %3042 = vmatpush1.bf16.msra.mxu0 0
        %3043 = vmatprep.subr.bf16.mxu0 0
        %3044 = vmatpush1.bf16.msra.mxu0 0
        %3045 = vmatprep.mubr.bf16.mxu0 0
        %3046 = vmatmul.mubr.bf16.gmra.mrb[0].mxu0 %v3008
        %v3047 = vpop.f32.mrb[0].mxu0
        %v3048 = vadd.f32 %v2994, %v3047
        %v3049 = vpop.f32.mrb[0].mxu0
        %v3050 = vpop.f32.mrb[0].mxu0
        %v3051 = vadd.f32 %v2994, %v3050
        %v3052 = vpop.f32.mrb[0].mxu0
        %3053 = vmatprep.mubr.bf16.mxu0 0
        %3054 = vmatmul.mubr.bf16.gmra.mrb[0].mxu0 %v3011
        %v3055 = vpop.f32.mrb[0].mxu0
        %v3056 = vadd.f32 %v2994, %v3055
        %v3057 = vpop.f32.mrb[0].mxu0
        %v3058 = vpop.f32.mrb[0].mxu0
        %v3059 = vadd.f32 %v2994, %v3058
        %v3060 = vpop.f32.mrb[0].mxu0
        %3061 = vdwg.mxu0
        %v3062 = vmul.f32 %v3048, 0.5
        %v3063 = vmul.f32 %v3051, 0.5
        %v3064 = vmul.f32 %v3056, 0.5
        %v3065 = vmul.f32 %v3059, 0.5
        %v3066 = vmul.f32 %v3048, 0.044715
        %v3067 = vmul.f32 %v3051, 0.044715
        %v3068 = vmul.f32 %v3056, 0.044715
        %v3069 = vmul.f32 %v3059, 0.044715
        %v3070 = vmul.f32 %v3066, %v3048
        %v3071 = vmul.f32 %v3067, %v3051
        %v3072 = vmul.f32 %v3068, %v3056
        %v3073 = vmul.f32 %v3069, %v3059
        %v3074 = vmul.f32 %v3070, %v3048
        %v3075 = vmul.f32 %v3071, %v3051
        %v3076 = vmul.f32 %v3072, %v3056
        %v3077 = vmul.f32 %v3073, %v3059
        %v3078 = vadd.f32 %v3048, %v3074
        %v3079 = vadd.f32 %v3051, %v3075
        %v3080 = vadd.f32 %v3056, %v3076
        %v3081 = vadd.f32 %v3059, %v3077
        %v3082 = vmul.f32 %v3078, 0.7978846
        %v3083 = vmul.f32 %v3079, 0.7978846
        %v3084 = vmul.f32 %v3080, 0.7978846
        %v3085 = vmul.f32 %v3081, 0.7978846
        %v3086 = vtanh.pop %v3082
        %v3087 = vtanh.pop %v3083
        %v3088 = vtanh.pop %v3084
        %v3089 = vtanh.pop %v3085
        %v3090 = vadd.f32 %v3086, 1.0
        %v3091 = vadd.f32 %v3087, 1.0
        %v3092 = vadd.f32 %v3088, 1.0
        %v3093 = vadd.f32 %v3089, 1.0
        %v3094 = vmul.f32 %v3062, %v3090
        %v3095 = vmul.f32 %v3063, %v3091
        %v3096 = vmul.f32 %v3064, %v3092
        %v3097 = vmul.f32 %v3065, %v3093
        %v3098 = vpack.c.bf16 %v3095, %v3094
        %v3099 = vpack.c.bf16 %v3097, %v3096
        %v3100 = vld [vmem:[%s511] sm:$0xf]
        %v3101 = vld [vmem:[%s511 + $0x4] sm:$0xf]
        %v3102 = vld [vmem:[%s511 + $0x8] sm:$0xf]
        %v3103 = vld [vmem:[%s511 + $0xc] sm:$0xf]
        %v3104 = vld [vmem:[%s511 + $0x10] sm:$0xf]
        %v3105 = vld [vmem:[%s511 + $0x14] sm:$0xf]
        %v3106 = vld [vmem:[%s511 + $0x18] sm:$0xf]
        %v3107 = vld [vmem:[%s511 + $0x1c] sm:$0xf]
        %v3116 = vunpack.c.l.b16 %v3100
        %v3117 = vunpack.c.l.b16 %v3101
        %v3118 = vunpack.c.l.b16 %v3102
        %v3119 = vunpack.c.l.b16 %v3103
        %v3120 = vunpack.c.l.b16 %v3104
        %v3121 = vunpack.c.l.b16 %v3105
        %v3122 = vunpack.c.l.b16 %v3106
        %v3123 = vunpack.c.l.b16 %v3107
        %v3124 = vpack.c.b16 %v3117, %v3116
        %v3125 = vpack.c.b16 %v3119, %v3118
        %v3126 = vpack.c.b16 %v3121, %v3120
        %v3127 = vpack.c.b16 %v3123, %v3122
        %vm3132 = vcmask 523264
        %v3134 = vsel %vm3132, %v3098, 0
        %v3137 = vsel %vm3132, %v3099, 0
        %3139 = vmatprep.subr.bf16.mxu0 0
        %3140 = vmatpush1.bf16.msra.mxu0 %v3124
        %3141 = vmatprep.subr.bf16.mxu0 0
        %3142 = vmatpush1.bf16.msra.mxu0 %v3125
        %3143 = vmatprep.subr.bf16.mxu0 0
        %3144 = vmatpush1.bf16.msra.mxu0 %v3126
        %3145 = vmatprep.subr.bf16.mxu0 0
        %3146 = vmatpush1.bf16.msra.mxu0 %v3127
        %3147 = vmatprep.subr.bf16.mxu0 0
        %3148 = vmatpush1.bf16.msra.mxu0 0
        %3149 = vmatprep.subr.bf16.mxu0 0
        %3150 = vmatpush1.bf16.msra.mxu0 0
        %3151 = vmatprep.subr.bf16.mxu0 0
        %3152 = vmatpush1.bf16.msra.mxu0 0
        %3153 = vmatprep.subr.bf16.mxu0 0
        %3154 = vmatpush1.bf16.msra.mxu0 0
        %3155 = vmatprep.subr.bf16.mxu0 0
        %3156 = vmatpush1.bf16.msra.mxu0 0
        %3157 = vmatprep.subr.bf16.mxu0 0
        %3158 = vmatpush1.bf16.msra.mxu0 0
        %3159 = vmatprep.subr.bf16.mxu0 0
        %3160 = vmatpush1.bf16.msra.mxu0 0
        %3161 = vmatprep.subr.bf16.mxu0 0
        %3162 = vmatpush1.bf16.msra.mxu0 0
        %3163 = vmatprep.subr.bf16.mxu0 0
        %3164 = vmatpush1.bf16.msra.mxu0 0
        %3165 = vmatprep.subr.bf16.mxu0 0
        %3166 = vmatpush1.bf16.msra.mxu0 0
        %3167 = vmatprep.subr.bf16.mxu0 0
        %3168 = vmatpush1.bf16.msra.mxu0 0
        %3169 = vmatprep.subr.bf16.mxu0 0
        %3170 = vmatpush1.bf16.msra.mxu0 0
        %3171 = vmatprep.mubr.bf16.mxu0 0
        %3172 = vmatmul.mubr.bf16.gmra.mrb[0].mxu0 %v3134
        %v3173 = vpop.f32.mrb[0].mxu0
        %v3174 = vadd.f32 0.0, %v3173
        %v3175 = vpop.f32.mrb[0].mxu0
        %v3176 = vpop.f32.mrb[0].mxu0
        %v3177 = vadd.f32 0.0, %v3176
        %v3178 = vpop.f32.mrb[0].mxu0
        %3179 = vmatprep.mubr.bf16.mxu0 0
        %3180 = vmatmul.mubr.bf16.gmra.mrb[0].mxu0 %v3137
        %v3181 = vpop.f32.mrb[0].mxu0
        %v3182 = vadd.f32 0.0, %v3181
        %v3183 = vpop.f32.mrb[0].mxu0
        %v3184 = vpop.f32.mrb[0].mxu0
        %v3185 = vadd.f32 0.0, %v3184
        %v3186 = vpop.f32.mrb[0].mxu0
        %3187 = vdwg.mxu0
        %v3188 = vadd.f32 %v2913, %v3174
        %v3189 = vadd.f32 %v2914, %v3177
        %v3190 = vadd.f32 %v2915, %v3182
        %v3191 = vadd.f32 %v2916, %v3185
        %v3192 = vlaneseq
        %v3193 = vshrl.u32 %v3192, 7
        %v3194 = vsub.s32 3, %v3193
        %v3195 = vrot.slane %v679, %v3194
        %v3196 = vadd.f32 %v3188, %v3195
        %v3197 = vadd.f32 %v3189, %v3195
        %v3198 = vadd.f32 %v3190, %v3195
        %v3199 = vadd.f32 %v3191, %v3195
        %3200 = vst.msk [vmem:[#allocation2] sm:$0xff] %vm684, %v3196
        %3201 = vst.msk [vmem:[#allocation2 + $0x8] sm:$0xff] %vm684, %v3197
        %3202 = vst.msk [vmem:[#allocation2 + $0x10] sm:$0xff] %vm684, %v3198
        %3203 = vst.msk [vmem:[#allocation2 + $0x18] sm:$0xff] %vm684, %v3199
        %p3204 = scmp.eq.s32.totalorder %s29, 1
        // Predicated region
        $region73: #{tpu_custom_call.1} parent=67 // pred_check
          %p3205 = pneg %p3204
        $region74: #{tpu_custom_call.1} parent=67 // pred_check_branch
          %3207 = sbr.rel (%p3205) target = $region76
        $region75: #{tpu_custom_call.1} parent=67 // pred_region
          %v3208 = vld [vmem:[%s11] sm:$0xf]
          %v3209 = vpack.c.bf16 %v3196, %v3196
          %v3210 = vpack.c.bf16 %v3197, %v3197
          %v3211 = vpack.c.bf16 %v3198, %v3198
          %v3212 = vpack.c.bf16 %v3199, %v3199
          %v3213 = vld [vmem:[%s9] sm:$0xf]
          %v3214 = vld [vmem:[%s9 + $0x4] sm:$0xf]
          %v3215 = vld [vmem:[%s9 + $0x8] sm:$0xf]
          %v3216 = vld [vmem:[%s9 + $0xc] sm:$0xf]
          %v3217 = vlaneseq
          %v3218 = vshrl.u32 %v3217, 7
          %v3219 = vsub.s32 0, %v3218
          %v3220 = vrot.slane %v3208, %v3219
          %v3225 = vunpack.c.l.b16 %v3209
          %v3226 = vunpack.c.l.b16 %v3210
          %v3227 = vunpack.c.l.b16 %v3211
          %v3228 = vunpack.c.l.b16 %v3212
          %v3229 = vrot.slane %v3225, 7
          %v3230 = vrot.slane %v3226, 6
          %vm3231 = vcmask 1041409
          %v3232 = vsel %vm3231, %v3230, %v3229
          %v3233 = vrot.slane %v3227, 5
          %vm3234 = vcmask 1042434
          %v3235 = vsel %vm3234, %v3233, %v3232
          %v3236 = vrot.slane %v3228, 4
          %vm3237 = vcmask 1043459
          %v3238 = vsel %vm3237, %v3236, %v3235
          %v3239 = vpack.c.b16 %v3238, %v3238
          %v3244 = vunpack.c.l.b16 %v3213
          %v3245 = vunpack.c.l.b16 %v3214
          %v3246 = vunpack.c.l.b16 %v3215
          %v3247 = vunpack.c.l.b16 %v3216
          %v3248 = vpack.c.b16 %v3245, %v3244
          %v3249 = vpack.c.b16 %v3247, %v3246
          %v3253 = vsel %vm684, %v3239, 0
          %3255 = vmatprep.subr.bf16.mxu0 0
          %3256 = vmatpush1.bf16.msra.mxu0 %v3248
          %3257 = vmatprep.subr.bf16.mxu0 0
          %3258 = vmatpush1.bf16.msra.mxu0 %v3249
          %3259 = vmatprep.subr.bf16.mxu0 0
          %3260 = vmatpush1.bf16.msra.mxu0 0
          %3261 = vmatprep.subr.bf16.mxu0 0
          %3262 = vmatpush1.bf16.msra.mxu0 0
          %3263 = vmatprep.subr.bf16.mxu0 0
          %3264 = vmatpush1.bf16.msra.mxu0 0
          %3265 = vmatprep.subr.bf16.mxu0 0
          %3266 = vmatpush1.bf16.msra.mxu0 0
          %3267 = vmatprep.subr.bf16.mxu0 0
          %3268 = vmatpush1.bf16.msra.mxu0 0
          %3269 = vmatprep.subr.bf16.mxu0 0
          %3270 = vmatpush1.bf16.msra.mxu0 0
          %3271 = vmatprep.subr.bf16.mxu0 0
          %3272 = vmatpush1.bf16.msra.mxu0 0
          %3273 = vmatprep.subr.bf16.mxu0 0
          %3274 = vmatpush1.bf16.msra.mxu0 0
          %3275 = vmatprep.subr.bf16.mxu0 0
          %3276 = vmatpush1.bf16.msra.mxu0 0
          %3277 = vmatprep.subr.bf16.mxu0 0
          %3278 = vmatpush1.bf16.msra.mxu0 0
          %3279 = vmatprep.subr.bf16.mxu0 0
          %3280 = vmatpush1.bf16.msra.mxu0 0
          %3281 = vmatprep.subr.bf16.mxu0 0
          %3282 = vmatpush1.bf16.msra.mxu0 0
          %3283 = vmatprep.subr.bf16.mxu0 0
          %3284 = vmatpush1.bf16.msra.mxu0 0
          %3285 = vmatprep.subr.bf16.mxu0 0
          %3286 = vmatpush1.bf16.msra.mxu0 0
          %3287 = vmatprep.mubr.bf16.mxu0 0
          %3288 = vmatmul.mubr.bf16.gmra.mrb[0].mxu0 %v3253
          %v3289 = vpop.f32.mrb[0].mxu0
          %v3290 = vadd.f32 %v3220, %v3289
          %v3291 = vpop.f32.mrb[0].mxu0
          %v3292 = vpop.f32.mrb[0].mxu0
          %v3293 = vpop.f32.mrb[0].mxu0
          %3294 = vdwg.mxu0
          %vm3295 = vcmask 125952
          %v3296 = vsel %vm3295, %v3290, 0.0
          %3297 = vadd.xlane.f32.xlu0 %v3296
          %v3298 = vpop.xlane.xlu0 %3297
          %v3299 = vrcp.pop 16.0
          %v3300 = vmul.f32 %v3298, %v3299
          %v3301 = vsub.f32 %v3290, %v3300
          %v3302 = vmul.f32 %v3301, %v3301
          %v3303 = vsel %vm3295, %v3302, 0.0
          %3304 = vadd.xlane.f32.xlu0 %v3303
          %v3305 = vpop.xlane.xlu0 %3304
          %v3306 = vmul.f32 %v3305, %v3299
          %v3307 = vadd.f32 %v3306, 1e-05
          %v3308 = vrsqrt.pop %v3307
          %v3309 = vmul.f32 %v3301, %v3308
          %v3310 = vlaneseq
          %v3311 = vshrl.u32 %v3310, 7
          %v3312 = vsub.s32 1, %v3311
          %v3313 = vrot.slane %v3208, %v3312
          %v3314 = vmul.f32 %v3309, %v3313
          %v3315 = vlaneseq
          %v3316 = vshrl.u32 %v3315, 7
          %v3317 = vsub.s32 2, %v3316
          %v3318 = vrot.slane %v3208, %v3317
          %v3319 = vadd.f32 %v3314, %v3318
          %v3320 = vmax.f32 %v3319, 0.0
          %v3321 = vpack.c.bf16 %v3320, %v3320
          %v3322 = vld [vmem:[%s10] sm:$0xf]
          %v3323 = vld [vmem:[%s10 + $0x4] sm:$0xf]
          %v3324 = vlaneseq
          %v3325 = vshrl.u32 %v3324, 7
          %v3326 = vsub.s32 3, %v3325
          %v3327 = vrot.slane %v3208, %v3326
          %v3330 = vunpack.c.l.b16 %v3322
          %v3331 = vunpack.c.l.b16 %v3323
          %v3332 = vpack.c.b16 %v3331, %v3330
          %vm3334 = vcmask 130048
          %v3336 = vsel %vm3334, %v3321, 0
          %3338 = vmatprep.subr.bf16.mxu0 0
          %3339 = vmatpush1.bf16.msra.mxu0 %v3332
          %3340 = vmatprep.subr.bf16.mxu0 0
          %3341 = vmatpush1.bf16.msra.mxu0 0
          %3342 = vmatprep.subr.bf16.mxu0 0
          %3343 = vmatpush1.bf16.msra.mxu0 0
          %3344 = vmatprep.subr.bf16.mxu0 0
          %3345 = vmatpush1.bf16.msra.mxu0 0
          %3346 = vmatprep.subr.bf16.mxu0 0
          %3347 = vmatpush1.bf16.msra.mxu0 0
          %3348 = vmatprep.subr.bf16.mxu0 0
          %3349 = vmatpush1.bf16.msra.mxu0 0
          %3350 = vmatprep.subr.bf16.mxu0 0
          %3351 = vmatpush1.bf16.msra.mxu0 0
          %3352 = vmatprep.subr.bf16.mxu0 0
          %3353 = vmatpush1.bf16.msra.mxu0 0
          %3354 = vmatprep.subr.bf16.mxu0 0
          %3355 = vmatpush1.bf16.msra.mxu0 0
          %3356 = vmatprep.subr.bf16.mxu0 0
          %3357 = vmatpush1.bf16.msra.mxu0 0
          %3358 = vmatprep.subr.bf16.mxu0 0
          %3359 = vmatpush1.bf16.msra.mxu0 0
          %3360 = vmatprep.subr.bf16.mxu0 0
          %3361 = vmatpush1.bf16.msra.mxu0 0
          %3362 = vmatprep.subr.bf16.mxu0 0
          %3363 = vmatpush1.bf16.msra.mxu0 0
          %3364 = vmatprep.subr.bf16.mxu0 0
          %3365 = vmatpush1.bf16.msra.mxu0 0
          %3366 = vmatprep.subr.bf16.mxu0 0
          %3367 = vmatpush1.bf16.msra.mxu0 0
          %3368 = vmatprep.subr.bf16.mxu0 0
          %3369 = vmatpush1.bf16.msra.mxu0 0
          %3370 = vmatprep.mubr.bf16.mxu0 0
          %3371 = vmatmul.mubr.bf16.gmra.mrb[0].mxu0 %v3336
          %v3372 = vpop.f32.mrb[0].mxu0
          %v3373 = vadd.f32 %v3327, %v3372
          %v3374 = vpop.f32.mrb[0].mxu0
          %v3375 = vpop.f32.mrb[0].mxu0
          %v3376 = vpop.f32.mrb[0].mxu0
          %3377 = vdwg.mxu0
          %3378 = vst [vmem:[#allocation3] sm:$0xf] %v3373
        $region76: #{tpu_custom_call.1} parent=67 // pred_fallthru
          _
        // Predicated region
        $region77: #{tpu_custom_call.1} parent=67 // pred_check
          %p3379 = pneg %p336
        $region78: #{tpu_custom_call.1} parent=67 // pred_check_branch
          %3381 = sbr.rel (%p3379) target = $region80
        $region79: #{tpu_custom_call.1} parent=67 // pred_region
          %s3383 = ssub.s32 64, 64
          %3384 = vsyncadd [#allocation4], %s3383
          %s3385 = smul.addr %s28, 64
          %s3386 = scalar_lea.hbm %s12, %s3385
          %s3388 = sshll.u32 [#allocation3], 4
          %s3389 = int_to_ptr.vmem [resolvable:$true] %s3388
          %3391 = dma.vmem_to_hbm [thread:$0]  %s3389, 64, %s3386, [#allocation4]
        $region80: #{tpu_custom_call.1} parent=67 // pred_fallthru
          _
        // Predicated region
        $region81: #{tpu_custom_call.1} parent=67 // pred_check
          %p3392 = pneg %p336
        $region82: #{tpu_custom_call.1} parent=67 // pred_check_branch
          %3394 = sbr.rel (%p3392) target = $region84
        $region83: #{tpu_custom_call.1} parent=67 // pred_region
          %3395 = dma.done [#allocation4], 64
        $region84: #{tpu_custom_call.1} parent=67 // pred_fallthru
          _
      $region68: #{tpu_custom_call.1} parent=5 // pred_fallthru
        _
      %p3396 = scmp.le.s32.totalorder 2, %s19
      // Predicated region
      $region85: #{tpu_custom_call.1} parent=5 // pred_check
        %p3397 = pneg %p3396
      $region86: #{tpu_custom_call.1} parent=5 // pred_check_branch
        %3399 = sbr.rel (%p3397) target = $region88
      $region87: #{tpu_custom_call.1} parent=5 // pred_region
        %s3400 = ssub.s32 %s19, 2
      $region88: #{tpu_custom_call.1} parent=5 // pred_fallthru
        _
    $region6: #{tpu_custom_call.1} parent=1 // loop_footer
      %s23 = sadd.s32 1, %s19
    $region7: #{tpu_custom_call.1} parent=1 // loop_footer_branch
      %18 = sbr.rel target = $region3
    $region8: #{tpu_custom_call.1} parent=1 // loop_exit
      _
    %3401 = vsyncpa [#allocation4], 1
    %s3402 = scalar_lea.sflag [#allocation4], 1
    %3403 = vsyncpa %s3402, 1

</llo_original>
